<compile_context>
chip_gen: v5e
topology: v5e:2x2
jax: 0.10.0
libtpu: 0.0.40
codegen_flags: <defaults>
</compile_context>

<pallas_src>
import functools

import jax
import jax.numpy as jnp
from jax import lax
from jax.experimental import pallas as pl
from jax.experimental.pallas import tpu as pltpu

PAD_IDX = 0   # Vocab.PAD_IDX
LANE = 128

VMEM_SPEC = pl.BlockSpec(memory_space=pltpu.MemorySpace.VMEM)


def _round_up(x, m):
    return ((x + m - 1) // m) * m


# --------------------------------------------------------------------------
# The single fused kernel.
# --------------------------------------------------------------------------
def hybrid_kernel(video_ref, vlens_ref, ids_ref, tlens_ref, emb_ref,
                  wiv_ref, wit_ref, whb_ref, bfold_ref, bhn_ref,
                  *rest,
                  conv_offsets, Lv, Lt, Hv, Ht, GP, V, Cv, Ct, alpha):
    f32 = jnp.float32
    n_off = len(conv_offsets)
    conv_w_refs = rest[:n_off]
    conv_b_ref = rest[n_off]
    (wvl_ref, bvl_ref, wtl_ref, btl_ref,
     wvc_ref, bvc_ref, wtc_ref, btc_ref) = rest[n_off + 1:n_off + 9]
    o_ref = rest[n_off + 9]
    hid_ref = rest[n_off + 10]                       # VMEM scratch (L, B, GP)

    L = max(Lv, Lt)
    B = video_ref.shape[1]
    F = video_ref.shape[2]
    C_tot = Cv + Ct
    G3 = 3 * GP

    # ---------------- per-modality input embeddings (batched, no time loop) ----------
    xv = video_ref[...]                              # (Lv, B, F) time-major
    vlens = vlens_ref[...]                           # (B, 1) int32
    tlens = tlens_ref[...]                           # (B, 1) int32
    # Reference sums ALL padded frames and divides by the true length.
    feature_emb = jnp.sum(xv, axis=0) / vlens.astype(f32)          # (B, F)

    ids = ids_ref[...]                               # (Lt, B) int32, time-major
    iota_v = lax.broadcasted_iota(jnp.int32, (Lt, B, V), 2)
    oh = (ids[:, :, None] == iota_v).astype(f32)     # (Lt, B, V)
    bow = jnp.sum(oh, axis=0)                        # (B, V)
    vcol = lax.broadcasted_iota(jnp.int32, (1, V), 1)
    bow = bow * (vcol != PAD_IDX).astype(f32)        # bow[:, PAD_IDX] = 0
    # TODO(synk): production vocab -> gather-based embedding + segment-sum bow.
    xe = jnp.dot(oh.reshape(Lt * B, V), emb_ref[...],
                 preferred_element_type=f32)          # (Lt*B, E) embedding lookup

    # Hoisted input->hidden projections, gate-major / lane-padded; biases folded once.
    ih_v = jnp.dot(xv.reshape(Lv * B, F), wiv_ref[...],
                   preferred_element_type=f32).reshape(Lv, B, G3)
    ih_t = jnp.dot(xe, wit_ref[...],
                   preferred_element_type=f32).reshape(Lt, B, G3)
    if Lv < L:
        ih_v = jnp.concatenate([ih_v, jnp.zeros((L - Lv, B, G3), f32)], axis=0)
    if Lt < L:
        ih_t = jnp.concatenate([ih_t, jnp.zeros((L - Lt, B, G3), f32)], axis=0)
    # video/text occupy disjoint lane ranges inside each 128-lane gate block
    ih_all = ih_v + ih_t + bfold_ref[...][None]       # + (bi + bh_{r,z}) once, not per step

    # ---------------- fused GRU recurrence (both modalities per step) -----------------
    wh = whb_ref[...]                                 # (GP, 3GP) block-diag fused Wh
    bhn = jnp.broadcast_to(bhn_ref[...], (B, GP))     # bh_n pre-broadcast ONCE
    h = jnp.zeros((B, GP), f32)
    for t in range(L):                                # static unroll, L small
        gi = ih_all[t]                                # (B, 3GP) leading-axis slab read
        gh = jnp.dot(h, wh, preferred_element_type=f32)   # only op on the serial path
        r = jax.nn.sigmoid(gi[:, 0:GP] + gh[:, 0:GP])         # lane-tile aligned slices
        z = jax.nn.sigmoid(gi[:, GP:2 * GP] + gh[:, GP:2 * GP])
        n = jnp.tanh(gi[:, 2 * GP:3 * GP] + r * (gh[:, 2 * GP:3 * GP] + bhn))
        h = (1.0 - z) * n + z * h
        hid_ref[t] = h                                # slab store into VMEM scratch
    # TODO(synk): keep Wh stationary in the MXU via matmul_push_rhs/acc_lhs/pop.

    # pad_packed_sequence semantics: zero hiddens beyond each sample's true length.
    hid = hid_ref[...]                                # (L, B, GP)
    t_idx = lax.broadcasted_iota(jnp.int32, (L, B, GP), 0)
    lane = lax.broadcasted_iota(jnp.int32, (L, B, GP), 2)
    len_sel = jnp.where(lane < Hv, vlens.reshape(1, B, 1), tlens.reshape(1, B, 1))
    hid = hid * (t_idx < len_sel).astype(f32)

    # Temporal mean: reference divides by the padded length x.shape[1], per modality.
    rnn_sum = jnp.sum(hid, axis=0)                    # (B, GP)
    rnn_v = rnn_sum[:, 0:Hv] * (1.0 / Lv)
    rnn_t = rnn_sum[:, Hv:Hv + Ht] * (1.0 / Lt)

    # ---------------- Conv1d('same') + ReLU + global max: one matmul per offset -------
    hid_flat = hid.reshape(L * B, GP)
    acc = jnp.zeros((L, B, C_tot), f32)
    for o, w_ref in zip(conv_offsets, conv_w_refs):
        u = jnp.dot(hid_flat, w_ref[...],
                    preferred_element_type=f32).reshape(L, B, C_tot)
        if o == 0:                                    # acc[t] += u[t + o], static shifts
            sh = u
        elif o > 0:
            sh = jnp.concatenate([u[o:], jnp.zeros((o, B, C_tot), f32)], axis=0)
        else:
            sh = jnp.concatenate([jnp.zeros((-o, B, C_tot), f32), u[:o]], axis=0)
        acc = acc + sh
    acc = jnp.maximum(acc + conv_b_ref[...][None], 0.0)    # Conv1d bias + ReLU
    cnn_v = jnp.max(acc[:Lv, :, 0:Cv], axis=0)        # (B, Cv) global max over time
    cnn_t = jnp.max(acc[:Lt, :, Cv:C_tot], axis=0)    # (B, Ct)

    # ---------------- encoder concat + dual-space projection + fused similarity -------
    v_feat = jnp.concatenate([feature_emb, rnn_v, cnn_v], axis=1)   # (B, F+Hv+Cv)
    t_feat = jnp.concatenate([bow, rnn_t, cnn_t], axis=1)           # (B, V+Ht+Ct)

    # Latent space: Linear(+Dropout eval +BN eval folded) -> l2-normalize -> cosine sim.
    v_lat = jnp.dot(v_feat, wvl_ref[...], preferred_element_type=f32) + bvl_ref[...]
    t_lat = jnp.dot(t_feat, wtl_ref[...], preferred_element_type=f32) + btl_ref[...]
    v_lat = v_lat * lax.rsqrt(jnp.sum(v_lat * v_lat, axis=-1, keepdims=True) + 1e-12)
    t_lat = t_lat * lax.rsqrt(jnp.sum(t_lat * t_lat, axis=-1, keepdims=True) + 1e-12)
    sim_lat = lax.dot_general(v_lat, t_lat, (((1,), (1,)), ((), ())),
                              preferred_element_type=f32)

    # Concept space: Linear(+BN folded) -> sigmoid -> generalized Jaccard similarity.
    v_con = jax.nn.sigmoid(
        jnp.dot(v_feat, wvc_ref[...], preferred_element_type=f32) + bvc_ref[...])
    t_con = jax.nn.sigmoid(
        jnp.dot(t_feat, wtc_ref[...], preferred_element_type=f32) + btc_ref[...])
    Dc = v_con.shape[1]
    inter = jnp.sum(jnp.minimum(v_con[:, None, :], t_con[None, :, :]), axis=-1)
    # union via sum(max) = sum(a) + sum(b) - sum(min): only ONE (Bv,Bt,Dc) broadcast.
    row_t = lax.dot_general(jnp.ones((1, Dc), f32), t_con, (((1,), (1,)), ((), ())),
                            preferred_element_type=f32)             # (1, Bt)
    union = jnp.sum(v_con, axis=1, keepdims=True) + row_t - inter
    sim_con = inter / union

    def min_max(x):  # utils.min_max_normalize (global, eps-guarded)
        lo = jnp.min(x, axis=(0, 1), keepdims=True)
        hi = jnp.max(x, axis=(0, 1), keepdims=True)
        return (x - lo) / jnp.maximum(hi - lo, 1e-12)

    o_ref[...] = alpha * min_max(sim_lat) + (1.0 - alpha) * min_max(sim_con)


# --------------------------------------------------------------------------
# Fused-operand construction (gate-major lane-padded GRU, per-offset CNN).
# --------------------------------------------------------------------------
def build_fused_gru(vid_gru, text_gru, GP):
    wi_v, wh_v, bi_v, bh_v = vid_gru
    wi_t, wh_t, bi_t, bh_t = text_gru
    Hv, Ht = wh_v.shape[0], wh_t.shape[0]
    F, E = wi_v.shape[0], wi_t.shape[0]
    wiv = jnp.zeros((F, 3 * GP), jnp.float32)
    wit = jnp.zeros((E, 3 * GP), jnp.float32)
    whb = jnp.zeros((GP, 3 * GP), jnp.float32)
    bfold = jnp.zeros((1, 3 * GP), jnp.float32)
    bhn = jnp.zeros((1, GP), jnp.float32)
    for g in range(3):                    # gate order r, z, n
        wiv = wiv.at[:, g * GP:g * GP + Hv].set(wi_v[:, g * Hv:(g + 1) * Hv])
        wit = wit.at[:, g * GP + Hv:g * GP + Hv + Ht].set(wi_t[:, g * Ht:(g + 1) * Ht])
        whb = whb.at[0:Hv, g * GP:g * GP + Hv].set(wh_v[:, g * Hv:(g + 1) * Hv])
        whb = whb.at[Hv:Hv + Ht, g * GP + Hv:g * GP + Hv + Ht].set(
            wh_t[:, g * Ht:(g + 1) * Ht])
        bv = bi_v[:, g * Hv:(g + 1) * Hv]
        bt = bi_t[:, g * Ht:(g + 1) * Ht]
        if g < 2:  # bh folds into the hoisted term for r/z; bh_n stays inside r*(.)
            bv = bv + bh_v[:, g * Hv:(g + 1) * Hv]
            bt = bt + bh_t[:, g * Ht:(g + 1) * Ht]
        bfold = bfold.at[:, g * GP:g * GP + Hv].set(bv)
        bfold = bfold.at[:, g * GP + Hv:g * GP + Hv + Ht].set(bt)
    bhn = bhn.at[:, 0:Hv].set(bh_v[:, 2 * Hv:3 * Hv])
    bhn = bhn.at[:, Hv:Hv + Ht].set(bh_t[:, 2 * Ht:3 * Ht])
    return wiv, wit, whb, bfold, bhn


def build_fused_cnn(vid_cnn, vid_ks, text_cnn, text_ks, Hv, Ht, GP):
    Cv = sum(int(w.shape[2]) for w, _ in vid_cnn)
    Ct = sum(int(w.shape[2]) for w, _ in text_cnn)
    C_tot = Cv + Ct
    offsets = sorted({j - (k - 1) // 2
                      for ks in (vid_ks, text_ks) for k in ks for j in range(k)})
    w_by_off = {o: jnp.zeros((GP, C_tot), jnp.float32) for o in offsets}
    b_cat = jnp.zeros((1, C_tot), jnp.float32)
    col = 0
    for row0, cnn, ks in ((0, vid_cnn, vid_ks), (Hv, text_cnn, text_ks)):
        for (w, b), k in zip(cnn, ks):
            C = int(w.shape[2])
            left = (k - 1) // 2           # matches PyTorch padding='same' split
            for j in range(k):
                o = j - left
                w_by_off[o] = w_by_off[o].at[row0:row0 + w.shape[1],
                                             col:col + C].set(w[j])
            b_cat = b_cat.at[:, col:col + C].set(b)
            col += C
    return tuple(offsets), [w_by_off[o] for o in offsets], b_cat, Cv, Ct


def prepare_fused(p):
    _, wh_v, _, _ = p["vid_gru"]
    _, wh_t, _, _ = p["text_gru"]
    Hv, Ht = int(wh_v.shape[0]), int(wh_t.shape[0])
    GP = max(LANE, _round_up(Hv + Ht, LANE))       # lane-aligned gate blocks
    wiv, wit, whb, bfold, bhn = build_fused_gru(p["vid_gru"], p["text_gru"], GP)
    offsets, conv_ws, conv_b, Cv, Ct = build_fused_cnn(
        p["vid_cnn"], tuple(p["vid_filter_sizes"]),
        p["text_cnn"], tuple(p["text_filter_sizes"]), Hv, Ht, GP)
    return dict(Hv=Hv, Ht=Ht, GP=GP, Cv=Cv, Ct=Ct,
                wiv=wiv, wit=wit, whb=whb, bfold=bfold, bhn=bhn,
                conv_offsets=offsets, conv_ws=conv_ws, conv_b=conv_b,
                embedding=p["embedding"],
                lat_v_w=p["lat_v_w"], lat_v_b=p["lat_v_b"],
                lat_t_w=p["lat_t_w"], lat_t_b=p["lat_t_b"],
                con_v_w=p["con_v_w"], con_v_b=p["con_v_b"],
                con_t_w=p["con_t_w"], con_t_b=p["con_t_b"])


# --------------------------------------------------------------------------
# Wrapper: a single pallas_call for the whole forward pass.
# --------------------------------------------------------------------------
def hybrid_forward(video, vid_lens, text, text_lens, fp, alpha):
    B, Lv, F = video.shape
    Bt, Lt = text.shape
    assert B == Bt  # TODO(synk): Bv != Bt retrieval batches need separate recurrences.
    V, E = fp["embedding"].shape
    Hv, Ht, GP, Cv, Ct = fp["Hv"], fp["Ht"], fp["GP"], fp["Cv"], fp["Ct"]
    L = max(Lv, Lt)
    C_tot = Cv + Ct
    offsets = fp["conv_offsets"]
    Dl = fp["lat_v_w"].shape[1]
    Dc = fp["con_v_w"].shape[1]
    Dv = F + Hv + Cv
    Dt = V + Ht + Ct

    # Layout plumbing only (time-major inputs for leading-axis slab access in-kernel).
    video_t = jnp.transpose(video, (1, 0, 2))                     # (Lv, B, F)
    ids_t = jnp.transpose(text.astype(jnp.int32), (1, 0))         # (Lt, B)
    vlens_col = vid_lens.astype(jnp.int32).reshape(B, 1)
    tlens_col = text_lens.astype(jnp.int32).reshape(B, 1)

    operands = [video_t, vlens_col, ids_t, tlens_col, fp["embedding"],
                fp["wiv"], fp["wit"], fp["whb"], fp["bfold"], fp["bhn"],
                *fp["conv_ws"], fp["conv_b"],
                fp["lat_v_w"], fp["lat_v_b"], fp["lat_t_w"], fp["lat_t_b"],
                fp["con_v_w"], fp["con_v_b"], fp["con_t_w"], fp["con_t_b"]]

    flops = (2 * B * Lt * V * E + 2 * B * Lv * F * 3 * GP + 2 * B * Lt * E * 3 * GP
             + 2 * L * B * GP * 3 * GP + len(offsets) * 2 * L * B * GP * C_tot
             + 2 * B * (Dv + Dt) * (Dl + Dc) + 2 * B * B * Dl + 4 * B * B * Dc)
    transcendentals = 3 * L * B * GP + 2 * B * Dc
    bytes_accessed = 4 * (sum(int(x.size) for x in operands) + B * B)

    kernel = functools.partial(
        hybrid_kernel, conv_offsets=offsets, Lv=Lv, Lt=Lt, Hv=Hv, Ht=Ht,
        GP=GP, V=V, Cv=Cv, Ct=Ct, alpha=float(alpha))

    logits = pl.pallas_call(
        kernel,
        out_shape=jax.ShapeDtypeStruct((B, B), jnp.float32),
        in_specs=[VMEM_SPEC] * len(operands),
        out_specs=VMEM_SPEC,
        scratch_shapes=[pltpu.VMEM((L, B, GP), jnp.float32)],
        compiler_params=pltpu.CompilerParams(vmem_limit_bytes=32 * 1024 * 1024),
        cost_estimate=pl.CostEstimate(flops=int(flops),
                                      transcendentals=int(transcendentals),
                                      bytes_accessed=int(bytes_accessed)),
    )(*operands)
    return logits, logits.T


# --------------------------------------------------------------------------
# Deterministic parameter construction (module-style params).
# --------------------------------------------------------------------------
def make_gru_params(key, in_dim, hidden):
    """Fused-gate GRU weights, gate order [r|z|n] along the 3H axis."""
    k1, k2, k3, k4 = jax.random.split(key, 4)
    s = 1.0 / jnp.sqrt(float(hidden))
    wi = jax.random.uniform(k1, (in_dim, 3 * hidden), jnp.float32, -s, s)
    wh = jax.random.uniform(k2, (hidden, 3 * hidden), jnp.float32, -s, s)
    bi = jax.random.uniform(k3, (1, 3 * hidden), jnp.float32, -s, s)
    bh = jax.random.uniform(k4, (1, 3 * hidden), jnp.float32, -s, s)
    return wi, wh, bi, bh


def make_cnn_params(key, in_channels, out_channels_list, filter_sizes):
    params = []
    for c_out, k in zip(out_channels_list, filter_sizes):
        key, kw, kb = jax.random.split(key, 3)
        s = 1.0 / jnp.sqrt(float(in_channels * k))
        w = jax.random.uniform(kw, (k, in_channels, c_out), jnp.float32, -s, s)
        b = jax.random.uniform(kb, (1, c_out), jnp.float32, -s, s)
        params.append((w, b))
    return params


def make_projection(key, in_dim, out_dim):
    """Linear (xavier) + BatchNorm1d(eval, default init) folded into (W_eff, b_eff)."""
    kw, kb = jax.random.split(key)
    bound = jnp.sqrt(6.0 / float(in_dim + out_dim))
    W = jax.random.uniform(kw, (in_dim, out_dim), jnp.float32, -bound, bound)
    bl = 1.0 / jnp.sqrt(float(in_dim))
    b = jax.random.uniform(kb, (out_dim,), jnp.float32, -bl, bl)
    gamma = jnp.ones((out_dim,), jnp.float32)
    beta = jnp.zeros((out_dim,), jnp.float32)
    mean = jnp.zeros((out_dim,), jnp.float32)
    var = jnp.ones((out_dim,), jnp.float32)
    scale = gamma / jnp.sqrt(var + 1e-5)
    W_eff = W * scale[None, :]
    b_eff = ((b - mean) * scale + beta).reshape(1, out_dim)
    return W_eff, b_eff


if __name__ == "__main__":
    # --- small synthetic configuration ---
    B = 4
    Lv, F = 8, 32                       # video: frames, frame_feature_dim
    Lt, V, Ew = 8, 64, 32               # text: seq len, vocab_size, word_embedding_dim
    Hv = Ht = 32                        # GRU hidden sizes (unidirectional)
    vid_cnn_out, vid_cnn_k = [16, 16], [2, 3]
    text_cnn_out, text_cnn_k = [16, 16], [2, 3]
    embed_dim_lat = 32
    tag_vocab_size = 48
    alpha = 0.6

    vid_out_dim = F + Hv + sum(vid_cnn_out)        # 96
    text_out_dim = V + Ht + sum(text_cnn_out)      # 128

    key = jax.random.PRNGKey(0)
    (k_vgru, k_tgru, k_vcnn, k_tcnn, k_emb,
     k_lv, k_lt, k_cv, k_ct, k_vid, k_txt) = jax.random.split(key, 11)

    emb_table = jax.random.uniform(k_emb, (V, Ew), jnp.float32, -0.1, 0.1)
    emb_table = emb_table.at[PAD_IDX].set(0.0)     # padding_idx row

    params = {
        "vid_gru": make_gru_params(k_vgru, F, Hv),
        "text_gru": make_gru_params(k_tgru, Ew, Ht),
        "vid_cnn": make_cnn_params(k_vcnn, Hv, vid_cnn_out, vid_cnn_k),
        "text_cnn": make_cnn_params(k_tcnn, Ht, text_cnn_out, text_cnn_k),
        "vid_filter_sizes": vid_cnn_k,
        "text_filter_sizes": text_cnn_k,
        "embedding": emb_table,
    }
    params["lat_v_w"], params["lat_v_b"] = make_projection(
        jax.random.fold_in(k_lv, 0), vid_out_dim, embed_dim_lat)
    params["lat_t_w"], params["lat_t_b"] = make_projection(
        jax.random.fold_in(k_lt, 0), text_out_dim, embed_dim_lat)
    params["con_v_w"], params["con_v_b"] = make_projection(
        jax.random.fold_in(k_cv, 0), vid_out_dim, tag_vocab_size)
    params["con_t_w"], params["con_t_b"] = make_projection(
        jax.random.fold_in(k_ct, 0), text_out_dim, tag_vocab_size)

    fused = prepare_fused(params)       # build fused/padded operands once, not per forward

    # --- inputs ---
    video = jax.random.normal(k_vid, (B, Lv, F), jnp.float32)
    vid_true_lens = jnp.array([8, 6, 7, 5], jnp.int32)          # at least one full-length
    text = jax.random.randint(k_txt, (B, Lt), 1, V, jnp.int32)
    text_true_lens = jnp.array([8, 5, 7, 6], jnp.int32)
    text = jnp.where(jnp.arange(Lt)[None, :] < text_true_lens[:, None], text, PAD_IDX)

    # pad_packed total_length == L assumption (see header comment).
    assert int(jnp.max(vid_true_lens)) == Lv
    assert int(jnp.max(text_true_lens)) == Lt

    logits, logits_T = jax.block_until_ready(
        hybrid_forward(video, vid_true_lens, text, text_true_lens, fused, alpha)
    )

    assert logits.shape == (B, B) and logits_T.shape == (B, B)
    assert bool(jnp.all(jnp.isfinite(logits)))
    assert bool(jnp.allclose(logits_T, logits.T))
    print("KERNEL_OK")
</pallas_src>

<mosaic_0001>
module attributes {stable_mosaic.version = 11 : i64} {
  func.func @hybrid_kernel(%arg0: memref<8x4x32xf32, #tpu.memory_space<vmem>>, %arg1: memref<4x1xi32, #tpu.memory_space<vmem>>, %arg2: memref<8x4xi32, #tpu.memory_space<vmem>>, %arg3: memref<4x1xi32, #tpu.memory_space<vmem>>, %arg4: memref<64x32xf32, #tpu.memory_space<vmem>>, %arg5: memref<32x384xf32, #tpu.memory_space<vmem>>, %arg6: memref<32x384xf32, #tpu.memory_space<vmem>>, %arg7: memref<128x384xf32, #tpu.memory_space<vmem>>, %arg8: memref<1x384xf32, #tpu.memory_space<vmem>>, %arg9: memref<1x128xf32, #tpu.memory_space<vmem>>, %arg10: memref<128x64xf32, #tpu.memory_space<vmem>>, %arg11: memref<128x64xf32, #tpu.memory_space<vmem>>, %arg12: memref<128x64xf32, #tpu.memory_space<vmem>>, %arg13: memref<1x64xf32, #tpu.memory_space<vmem>>, %arg14: memref<96x32xf32, #tpu.memory_space<vmem>>, %arg15: memref<1x32xf32, #tpu.memory_space<vmem>>, %arg16: memref<128x32xf32, #tpu.memory_space<vmem>>, %arg17: memref<1x32xf32, #tpu.memory_space<vmem>>, %arg18: memref<96x48xf32, #tpu.memory_space<vmem>>, %arg19: memref<1x48xf32, #tpu.memory_space<vmem>>, %arg20: memref<128x48xf32, #tpu.memory_space<vmem>>, %arg21: memref<1x48xf32, #tpu.memory_space<vmem>>, %arg22: memref<4x4xf32, #tpu.memory_space<vmem>>, %arg23: memref<8x4x128xf32, #tpu.memory_space<vmem>>) attributes {dimension_semantics = [], scalar_prefetch = 0 : i64, scratch_operands = 1 : i64, tpu.core_type = #tpu.core_type<tc>} {
    %c0 = arith.constant 0 : index
    %c0_0 = arith.constant 0 : index
    %c0_1 = arith.constant 0 : index
    %0 = vector.load %arg0[%c0, %c0_0, %c0_1] : memref<8x4x32xf32, #tpu.memory_space<vmem>>, vector<8x4x32xf32>
    %c0_2 = arith.constant 0 : index
    %c0_3 = arith.constant 0 : index
    %1 = vector.load %arg1[%c0_2, %c0_3] : memref<4x1xi32, #tpu.memory_space<vmem>>, vector<4x1xi32>
    %c0_4 = arith.constant 0 : index
    %c0_5 = arith.constant 0 : index
    %2 = vector.load %arg3[%c0_4, %c0_5] : memref<4x1xi32, #tpu.memory_space<vmem>>, vector<4x1xi32>
    %cst = arith.constant dense<0.000000e+00> : vector<4x32xf32>
    %3 = vector.multi_reduction <add>, %0, %cst [0] : vector<8x4x32xf32> to vector<4x32xf32>
    %4 = arith.sitofp %1 : vector<4x1xi32> to vector<4x1xf32>
    %5 = vector.broadcast %4 : vector<4x1xf32> to vector<4x32xf32>
    %6 = arith.divf %3, %5 : vector<4x32xf32>
    %c0_6 = arith.constant 0 : index
    %c0_7 = arith.constant 0 : index
    %7 = vector.load %arg2[%c0_6, %c0_7] : memref<8x4xi32, #tpu.memory_space<vmem>>, vector<8x4xi32>
    %8 = tpu.iota {dimensions = array<i32: 2>} : vector<8x4x64xi32>
    %9 = vector.shape_cast %7 : vector<8x4xi32> to vector<8x4x1xi32>
    %10 = vector.broadcast %9 : vector<8x4x1xi32> to vector<8x4x64xi32>
    %11 = arith.cmpi eq, %10, %8 : vector<8x4x64xi32>
    %12 = arith.extui %11 : vector<8x4x64xi1> to vector<8x4x64xi32>
    %13 = arith.sitofp %12 : vector<8x4x64xi32> to vector<8x4x64xf32>
    %cst_8 = arith.constant dense<0.000000e+00> : vector<4x64xf32>
    %14 = vector.multi_reduction <add>, %13, %cst_8 [0] : vector<8x4x64xf32> to vector<4x64xf32>
    %15 = tpu.iota {dimensions = array<i32: 1>} : vector<1x64xi32>
    %c0_i32 = arith.constant 0 : i32
    %16 = vector.broadcast %c0_i32 : i32 to vector<1x64xi32>
    %17 = arith.cmpi ne, %15, %16 : vector<1x64xi32>
    %18 = arith.extui %17 : vector<1x64xi1> to vector<1x64xi32>
    %19 = arith.sitofp %18 : vector<1x64xi32> to vector<1x64xf32>
    %20 = vector.broadcast %19 : vector<1x64xf32> to vector<4x64xf32>
    %21 = arith.mulf %14, %20 : vector<4x64xf32>
    %22 = vector.shape_cast %13 : vector<8x4x64xf32> to vector<32x64xf32>
    %c0_9 = arith.constant 0 : index
    %c0_10 = arith.constant 0 : index
    %23 = vector.load %arg4[%c0_9, %c0_10] : memref<64x32xf32, #tpu.memory_space<vmem>>, vector<64x32xf32>
    %cst_11 = arith.constant dense<0.000000e+00> : vector<32x32xf32>
    %24 = tpu.matmul %22, %23, %cst_11 {dimension_numbers = #tpu.dot_dimension_numbers<[1], [0], [0], [1], [0, 0, 1, 1], [], []>} : vector<32x64xf32>, vector<64x32xf32>, vector<32x32xf32> -> vector<32x32xf32>
    %25 = vector.shape_cast %0 : vector<8x4x32xf32> to vector<32x32xf32>
    %c0_12 = arith.constant 0 : index
    %c0_13 = arith.constant 0 : index
    %26 = vector.load %arg5[%c0_12, %c0_13] : memref<32x384xf32, #tpu.memory_space<vmem>>, vector<32x384xf32>
    %cst_14 = arith.constant dense<0.000000e+00> : vector<32x384xf32>
    %27 = tpu.matmul %25, %26, %cst_14 {dimension_numbers = #tpu.dot_dimension_numbers<[1], [0], [0], [1], [0, 0, 1, 1], [], []>} : vector<32x32xf32>, vector<32x384xf32>, vector<32x384xf32> -> vector<32x384xf32>
    %28 = vector.shape_cast %27 : vector<32x384xf32> to vector<8x4x384xf32>
    %c0_15 = arith.constant 0 : index
    %c0_16 = arith.constant 0 : index
    %29 = vector.load %arg6[%c0_15, %c0_16] : memref<32x384xf32, #tpu.memory_space<vmem>>, vector<32x384xf32>
    %cst_17 = arith.constant dense<0.000000e+00> : vector<32x384xf32>
    %30 = tpu.matmul %24, %29, %cst_17 {dimension_numbers = #tpu.dot_dimension_numbers<[1], [0], [0], [1], [0, 0, 1, 1], [], []>} : vector<32x32xf32>, vector<32x384xf32>, vector<32x384xf32> -> vector<32x384xf32>
    %31 = vector.shape_cast %30 : vector<32x384xf32> to vector<8x4x384xf32>
    %32 = arith.addf %28, %31 : vector<8x4x384xf32>
    %c0_18 = arith.constant 0 : index
    %c0_19 = arith.constant 0 : index
    %33 = vector.load %arg8[%c0_18, %c0_19] : memref<1x384xf32, #tpu.memory_space<vmem>>, vector<1x384xf32>
    %34 = vector.shape_cast %33 : vector<1x384xf32> to vector<1x1x384xf32>
    %35 = vector.broadcast %34 : vector<1x1x384xf32> to vector<8x4x384xf32>
    %36 = arith.addf %32, %35 : vector<8x4x384xf32>
    %c0_20 = arith.constant 0 : index
    %c0_21 = arith.constant 0 : index
    %37 = vector.load %arg7[%c0_20, %c0_21] : memref<128x384xf32, #tpu.memory_space<vmem>>, vector<128x384xf32>
    %c0_22 = arith.constant 0 : index
    %c0_23 = arith.constant 0 : index
    %38 = vector.load %arg9[%c0_22, %c0_23] : memref<1x128xf32, #tpu.memory_space<vmem>>, vector<1x128xf32>
    %39 = vector.shape_cast %38 : vector<1x128xf32> to vector<1x128xf32>
    %40 = vector.broadcast %39 : vector<1x128xf32> to vector<4x128xf32>
    %cst_24 = arith.constant 0.000000e+00 : f32
    %41 = vector.broadcast %cst_24 : f32 to vector<4x128xf32>
    %42 = vector.extract_strided_slice %36 {offsets = [0, 0, 0], sizes = [1, 4, 384], strides = [1, 1, 1]} : vector<8x4x384xf32> to vector<1x4x384xf32>
    %43 = vector.shape_cast %42 : vector<1x4x384xf32> to vector<4x384xf32>
    %cst_25 = arith.constant dense<0.000000e+00> : vector<4x384xf32>
    %44 = tpu.matmul %41, %37, %cst_25 {dimension_numbers = #tpu.dot_dimension_numbers<[1], [0], [0], [1], [0, 0, 1, 1], [], []>} : vector<4x128xf32>, vector<128x384xf32>, vector<4x384xf32> -> vector<4x384xf32>
    %45 = vector.extract_strided_slice %43 {offsets = [0, 0], sizes = [4, 128], strides = [1, 1]} : vector<4x384xf32> to vector<4x128xf32>
    %46 = vector.extract_strided_slice %44 {offsets = [0, 0], sizes = [4, 128], strides = [1, 1]} : vector<4x384xf32> to vector<4x128xf32>
    %47 = arith.addf %45, %46 : vector<4x128xf32>
    %48 = arith.negf %47 : vector<4x128xf32>
    %49 = math.exp %48 : vector<4x128xf32>
    %cst_26 = arith.constant 1.000000e+00 : f32
    %50 = vector.broadcast %cst_26 : f32 to vector<4x128xf32>
    %51 = arith.addf %50, %49 : vector<4x128xf32>
    %52 = arith.divf %50, %51 : vector<4x128xf32>
    %53 = vector.extract_strided_slice %43 {offsets = [0, 128], sizes = [4, 128], strides = [1, 1]} : vector<4x384xf32> to vector<4x128xf32>
    %54 = vector.extract_strided_slice %44 {offsets = [0, 128], sizes = [4, 128], strides = [1, 1]} : vector<4x384xf32> to vector<4x128xf32>
    %55 = arith.addf %53, %54 : vector<4x128xf32>
    %56 = arith.negf %55 : vector<4x128xf32>
    %57 = math.exp %56 : vector<4x128xf32>
    %cst_27 = arith.constant 1.000000e+00 : f32
    %58 = vector.broadcast %cst_27 : f32 to vector<4x128xf32>
    %59 = arith.addf %58, %57 : vector<4x128xf32>
    %60 = arith.divf %58, %59 : vector<4x128xf32>
    %61 = vector.extract_strided_slice %43 {offsets = [0, 256], sizes = [4, 128], strides = [1, 1]} : vector<4x384xf32> to vector<4x128xf32>
    %62 = vector.extract_strided_slice %44 {offsets = [0, 256], sizes = [4, 128], strides = [1, 1]} : vector<4x384xf32> to vector<4x128xf32>
    %63 = arith.addf %62, %40 : vector<4x128xf32>
    %64 = arith.mulf %52, %63 : vector<4x128xf32>
    %65 = arith.addf %61, %64 : vector<4x128xf32>
    %66 = math.tanh %65 : vector<4x128xf32>
    %cst_28 = arith.constant 1.000000e+00 : f32
    %67 = vector.broadcast %cst_28 : f32 to vector<4x128xf32>
    %68 = arith.subf %67, %60 : vector<4x128xf32>
    %69 = arith.mulf %68, %66 : vector<4x128xf32>
    %70 = arith.mulf %60, %41 : vector<4x128xf32>
    %71 = arith.addf %69, %70 : vector<4x128xf32>
    %c0_29 = arith.constant 0 : index
    %c0_30 = arith.constant 0 : index
    %c0_31 = arith.constant 0 : index
    %72 = vector.load %arg23[%c0_29, %c0_30, %c0_31] : memref<8x4x128xf32, #tpu.memory_space<vmem>>, vector<1x4x128xf32>
    %73 = vector.shape_cast %72 : vector<1x4x128xf32> to vector<4x128xf32>
    %74 = vector.shape_cast %71 : vector<4x128xf32> to vector<1x4x128xf32>
    tpu.vector_store %arg23[%c0_29, %c0_30, %c0_31], %74 {strides = array<i32>} : memref<8x4x128xf32, #tpu.memory_space<vmem>>, vector<1x4x128xf32>,
    %75 = vector.extract_strided_slice %36 {offsets = [1, 0, 0], sizes = [1, 4, 384], strides = [1, 1, 1]} : vector<8x4x384xf32> to vector<1x4x384xf32>
    %76 = vector.shape_cast %75 : vector<1x4x384xf32> to vector<4x384xf32>
    %cst_32 = arith.constant dense<0.000000e+00> : vector<4x384xf32>
    %77 = tpu.matmul %71, %37, %cst_32 {dimension_numbers = #tpu.dot_dimension_numbers<[1], [0], [0], [1], [0, 0, 1, 1], [], []>} : vector<4x128xf32>, vector<128x384xf32>, vector<4x384xf32> -> vector<4x384xf32>
    %78 = vector.extract_strided_slice %76 {offsets = [0, 0], sizes = [4, 128], strides = [1, 1]} : vector<4x384xf32> to vector<4x128xf32>
    %79 = vector.extract_strided_slice %77 {offsets = [0, 0], sizes = [4, 128], strides = [1, 1]} : vector<4x384xf32> to vector<4x128xf32>
    %80 = arith.addf %78, %79 : vector<4x128xf32>
    %81 = arith.negf %80 : vector<4x128xf32>
    %82 = math.exp %81 : vector<4x128xf32>
    %cst_33 = arith.constant 1.000000e+00 : f32
    %83 = vector.broadcast %cst_33 : f32 to vector<4x128xf32>
    %84 = arith.addf %83, %82 : vector<4x128xf32>
    %85 = arith.divf %83, %84 : vector<4x128xf32>
    %86 = vector.extract_strided_slice %76 {offsets = [0, 128], sizes = [4, 128], strides = [1, 1]} : vector<4x384xf32> to vector<4x128xf32>
    %87 = vector.extract_strided_slice %77 {offsets = [0, 128], sizes = [4, 128], strides = [1, 1]} : vector<4x384xf32> to vector<4x128xf32>
    %88 = arith.addf %86, %87 : vector<4x128xf32>
    %89 = arith.negf %88 : vector<4x128xf32>
    %90 = math.exp %89 : vector<4x128xf32>
    %cst_34 = arith.constant 1.000000e+00 : f32
    %91 = vector.broadcast %cst_34 : f32 to vector<4x128xf32>
    %92 = arith.addf %91, %90 : vector<4x128xf32>
    %93 = arith.divf %91, %92 : vector<4x128xf32>
    %94 = vector.extract_strided_slice %76 {offsets = [0, 256], sizes = [4, 128], strides = [1, 1]} : vector<4x384xf32> to vector<4x128xf32>
    %95 = vector.extract_strided_slice %77 {offsets = [0, 256], sizes = [4, 128], strides = [1, 1]} : vector<4x384xf32> to vector<4x128xf32>
    %96 = arith.addf %95, %40 : vector<4x128xf32>
    %97 = arith.mulf %85, %96 : vector<4x128xf32>
    %98 = arith.addf %94, %97 : vector<4x128xf32>
    %99 = math.tanh %98 : vector<4x128xf32>
    %cst_35 = arith.constant 1.000000e+00 : f32
    %100 = vector.broadcast %cst_35 : f32 to vector<4x128xf32>
    %101 = arith.subf %100, %93 : vector<4x128xf32>
    %102 = arith.mulf %101, %99 : vector<4x128xf32>
    %103 = arith.mulf %93, %71 : vector<4x128xf32>
    %104 = arith.addf %102, %103 : vector<4x128xf32>
    %c1 = arith.constant 1 : index
    %c0_36 = arith.constant 0 : index
    %c0_37 = arith.constant 0 : index
    %105 = vector.load %arg23[%c1, %c0_36, %c0_37] : memref<8x4x128xf32, #tpu.memory_space<vmem>>, vector<1x4x128xf32>
    %106 = vector.shape_cast %105 : vector<1x4x128xf32> to vector<4x128xf32>
    %107 = vector.shape_cast %104 : vector<4x128xf32> to vector<1x4x128xf32>
    tpu.vector_store %arg23[%c1, %c0_36, %c0_37], %107 {strides = array<i32>} : memref<8x4x128xf32, #tpu.memory_space<vmem>>, vector<1x4x128xf32>,
    %108 = vector.extract_strided_slice %36 {offsets = [2, 0, 0], sizes = [1, 4, 384], strides = [1, 1, 1]} : vector<8x4x384xf32> to vector<1x4x384xf32>
    %109 = vector.shape_cast %108 : vector<1x4x384xf32> to vector<4x384xf32>
    %cst_38 = arith.constant dense<0.000000e+00> : vector<4x384xf32>
    %110 = tpu.matmul %104, %37, %cst_38 {dimension_numbers = #tpu.dot_dimension_numbers<[1], [0], [0], [1], [0, 0, 1, 1], [], []>} : vector<4x128xf32>, vector<128x384xf32>, vector<4x384xf32> -> vector<4x384xf32>
    %111 = vector.extract_strided_slice %109 {offsets = [0, 0], sizes = [4, 128], strides = [1, 1]} : vector<4x384xf32> to vector<4x128xf32>
    %112 = vector.extract_strided_slice %110 {offsets = [0, 0], sizes = [4, 128], strides = [1, 1]} : vector<4x384xf32> to vector<4x128xf32>
    %113 = arith.addf %111, %112 : vector<4x128xf32>
    %114 = arith.negf %113 : vector<4x128xf32>
    %115 = math.exp %114 : vector<4x128xf32>
    %cst_39 = arith.constant 1.000000e+00 : f32
    %116 = vector.broadcast %cst_39 : f32 to vector<4x128xf32>
    %117 = arith.addf %116, %115 : vector<4x128xf32>
    %118 = arith.divf %116, %117 : vector<4x128xf32>
    %119 = vector.extract_strided_slice %109 {offsets = [0, 128], sizes = [4, 128], strides = [1, 1]} : vector<4x384xf32> to vector<4x128xf32>
    %120 = vector.extract_strided_slice %110 {offsets = [0, 128], sizes = [4, 128], strides = [1, 1]} : vector<4x384xf32> to vector<4x128xf32>
    %121 = arith.addf %119, %120 : vector<4x128xf32>
    %122 = arith.negf %121 : vector<4x128xf32>
    %123 = math.exp %122 : vector<4x128xf32>
    %cst_40 = arith.constant 1.000000e+00 : f32
    %124 = vector.broadcast %cst_40 : f32 to vector<4x128xf32>
    %125 = arith.addf %124, %123 : vector<4x128xf32>
    %126 = arith.divf %124, %125 : vector<4x128xf32>
    %127 = vector.extract_strided_slice %109 {offsets = [0, 256], sizes = [4, 128], strides = [1, 1]} : vector<4x384xf32> to vector<4x128xf32>
    %128 = vector.extract_strided_slice %110 {offsets = [0, 256], sizes = [4, 128], strides = [1, 1]} : vector<4x384xf32> to vector<4x128xf32>
    %129 = arith.addf %128, %40 : vector<4x128xf32>
    %130 = arith.mulf %118, %129 : vector<4x128xf32>
    %131 = arith.addf %127, %130 : vector<4x128xf32>
    %132 = math.tanh %131 : vector<4x128xf32>
    %cst_41 = arith.constant 1.000000e+00 : f32
    %133 = vector.broadcast %cst_41 : f32 to vector<4x128xf32>
    %134 = arith.subf %133, %126 : vector<4x128xf32>
    %135 = arith.mulf %134, %132 : vector<4x128xf32>
    %136 = arith.mulf %126, %104 : vector<4x128xf32>
    %137 = arith.addf %135, %136 : vector<4x128xf32>
    %c2 = arith.constant 2 : index
    %c0_42 = arith.constant 0 : index
    %c0_43 = arith.constant 0 : index
    %138 = vector.load %arg23[%c2, %c0_42, %c0_43] : memref<8x4x128xf32, #tpu.memory_space<vmem>>, vector<1x4x128xf32>
    %139 = vector.shape_cast %138 : vector<1x4x128xf32> to vector<4x128xf32>
    %140 = vector.shape_cast %137 : vector<4x128xf32> to vector<1x4x128xf32>
    tpu.vector_store %arg23[%c2, %c0_42, %c0_43], %140 {strides = array<i32>} : memref<8x4x128xf32, #tpu.memory_space<vmem>>, vector<1x4x128xf32>,
    %141 = vector.extract_strided_slice %36 {offsets = [3, 0, 0], sizes = [1, 4, 384], strides = [1, 1, 1]} : vector<8x4x384xf32> to vector<1x4x384xf32>
    %142 = vector.shape_cast %141 : vector<1x4x384xf32> to vector<4x384xf32>
    %cst_44 = arith.constant dense<0.000000e+00> : vector<4x384xf32>
    %143 = tpu.matmul %137, %37, %cst_44 {dimension_numbers = #tpu.dot_dimension_numbers<[1], [0], [0], [1], [0, 0, 1, 1], [], []>} : vector<4x128xf32>, vector<128x384xf32>, vector<4x384xf32> -> vector<4x384xf32>
    %144 = vector.extract_strided_slice %142 {offsets = [0, 0], sizes = [4, 128], strides = [1, 1]} : vector<4x384xf32> to vector<4x128xf32>
    %145 = vector.extract_strided_slice %143 {offsets = [0, 0], sizes = [4, 128], strides = [1, 1]} : vector<4x384xf32> to vector<4x128xf32>
    %146 = arith.addf %144, %145 : vector<4x128xf32>
    %147 = arith.negf %146 : vector<4x128xf32>
    %148 = math.exp %147 : vector<4x128xf32>
    %cst_45 = arith.constant 1.000000e+00 : f32
    %149 = vector.broadcast %cst_45 : f32 to vector<4x128xf32>
    %150 = arith.addf %149, %148 : vector<4x128xf32>
    %151 = arith.divf %149, %150 : vector<4x128xf32>
    %152 = vector.extract_strided_slice %142 {offsets = [0, 128], sizes = [4, 128], strides = [1, 1]} : vector<4x384xf32> to vector<4x128xf32>
    %153 = vector.extract_strided_slice %143 {offsets = [0, 128], sizes = [4, 128], strides = [1, 1]} : vector<4x384xf32> to vector<4x128xf32>
    %154 = arith.addf %152, %153 : vector<4x128xf32>
    %155 = arith.negf %154 : vector<4x128xf32>
    %156 = math.exp %155 : vector<4x128xf32>
    %cst_46 = arith.constant 1.000000e+00 : f32
    %157 = vector.broadcast %cst_46 : f32 to vector<4x128xf32>
    %158 = arith.addf %157, %156 : vector<4x128xf32>
    %159 = arith.divf %157, %158 : vector<4x128xf32>
    %160 = vector.extract_strided_slice %142 {offsets = [0, 256], sizes = [4, 128], strides = [1, 1]} : vector<4x384xf32> to vector<4x128xf32>
    %161 = vector.extract_strided_slice %143 {offsets = [0, 256], sizes = [4, 128], strides = [1, 1]} : vector<4x384xf32> to vector<4x128xf32>
    %162 = arith.addf %161, %40 : vector<4x128xf32>
    %163 = arith.mulf %151, %162 : vector<4x128xf32>
    %164 = arith.addf %160, %163 : vector<4x128xf32>
    %165 = math.tanh %164 : vector<4x128xf32>
    %cst_47 = arith.constant 1.000000e+00 : f32
    %166 = vector.broadcast %cst_47 : f32 to vector<4x128xf32>
    %167 = arith.subf %166, %159 : vector<4x128xf32>
    %168 = arith.mulf %167, %165 : vector<4x128xf32>
    %169 = arith.mulf %159, %137 : vector<4x128xf32>
    %170 = arith.addf %168, %169 : vector<4x128xf32>
    %c3 = arith.constant 3 : index
    %c0_48 = arith.constant 0 : index
    %c0_49 = arith.constant 0 : index
    %171 = vector.load %arg23[%c3, %c0_48, %c0_49] : memref<8x4x128xf32, #tpu.memory_space<vmem>>, vector<1x4x128xf32>
    %172 = vector.shape_cast %171 : vector<1x4x128xf32> to vector<4x128xf32>
    %173 = vector.shape_cast %170 : vector<4x128xf32> to vector<1x4x128xf32>
    tpu.vector_store %arg23[%c3, %c0_48, %c0_49], %173 {strides = array<i32>} : memref<8x4x128xf32, #tpu.memory_space<vmem>>, vector<1x4x128xf32>,
    %174 = vector.extract_strided_slice %36 {offsets = [4, 0, 0], sizes = [1, 4, 384], strides = [1, 1, 1]} : vector<8x4x384xf32> to vector<1x4x384xf32>
    %175 = vector.shape_cast %174 : vector<1x4x384xf32> to vector<4x384xf32>
    %cst_50 = arith.constant dense<0.000000e+00> : vector<4x384xf32>
    %176 = tpu.matmul %170, %37, %cst_50 {dimension_numbers = #tpu.dot_dimension_numbers<[1], [0], [0], [1], [0, 0, 1, 1], [], []>} : vector<4x128xf32>, vector<128x384xf32>, vector<4x384xf32> -> vector<4x384xf32>
    %177 = vector.extract_strided_slice %175 {offsets = [0, 0], sizes = [4, 128], strides = [1, 1]} : vector<4x384xf32> to vector<4x128xf32>
    %178 = vector.extract_strided_slice %176 {offsets = [0, 0], sizes = [4, 128], strides = [1, 1]} : vector<4x384xf32> to vector<4x128xf32>
    %179 = arith.addf %177, %178 : vector<4x128xf32>
    %180 = arith.negf %179 : vector<4x128xf32>
    %181 = math.exp %180 : vector<4x128xf32>
    %cst_51 = arith.constant 1.000000e+00 : f32
    %182 = vector.broadcast %cst_51 : f32 to vector<4x128xf32>
    %183 = arith.addf %182, %181 : vector<4x128xf32>
    %184 = arith.divf %182, %183 : vector<4x128xf32>
    %185 = vector.extract_strided_slice %175 {offsets = [0, 128], sizes = [4, 128], strides = [1, 1]} : vector<4x384xf32> to vector<4x128xf32>
    %186 = vector.extract_strided_slice %176 {offsets = [0, 128], sizes = [4, 128], strides = [1, 1]} : vector<4x384xf32> to vector<4x128xf32>
    %187 = arith.addf %185, %186 : vector<4x128xf32>
    %188 = arith.negf %187 : vector<4x128xf32>
    %189 = math.exp %188 : vector<4x128xf32>
    %cst_52 = arith.constant 1.000000e+00 : f32
    %190 = vector.broadcast %cst_52 : f32 to vector<4x128xf32>
    %191 = arith.addf %190, %189 : vector<4x128xf32>
    %192 = arith.divf %190, %191 : vector<4x128xf32>
    %193 = vector.extract_strided_slice %175 {offsets = [0, 256], sizes = [4, 128], strides = [1, 1]} : vector<4x384xf32> to vector<4x128xf32>
    %194 = vector.extract_strided_slice %176 {offsets = [0, 256], sizes = [4, 128], strides = [1, 1]} : vector<4x384xf32> to vector<4x128xf32>
    %195 = arith.addf %194, %40 : vector<4x128xf32>
    %196 = arith.mulf %184, %195 : vector<4x128xf32>
    %197 = arith.addf %193, %196 : vector<4x128xf32>
    %198 = math.tanh %197 : vector<4x128xf32>
    %cst_53 = arith.constant 1.000000e+00 : f32
    %199 = vector.broadcast %cst_53 : f32 to vector<4x128xf32>
    %200 = arith.subf %199, %192 : vector<4x128xf32>
    %201 = arith.mulf %200, %198 : vector<4x128xf32>
    %202 = arith.mulf %192, %170 : vector<4x128xf32>
    %203 = arith.addf %201, %202 : vector<4x128xf32>
    %c4 = arith.constant 4 : index
    %c0_54 = arith.constant 0 : index
    %c0_55 = arith.constant 0 : index
    %204 = vector.load %arg23[%c4, %c0_54, %c0_55] : memref<8x4x128xf32, #tpu.memory_space<vmem>>, vector<1x4x128xf32>
    %205 = vector.shape_cast %204 : vector<1x4x128xf32> to vector<4x128xf32>
    %206 = vector.shape_cast %203 : vector<4x128xf32> to vector<1x4x128xf32>
    tpu.vector_store %arg23[%c4, %c0_54, %c0_55], %206 {strides = array<i32>} : memref<8x4x128xf32, #tpu.memory_space<vmem>>, vector<1x4x128xf32>,
    %207 = vector.extract_strided_slice %36 {offsets = [5, 0, 0], sizes = [1, 4, 384], strides = [1, 1, 1]} : vector<8x4x384xf32> to vector<1x4x384xf32>
    %208 = vector.shape_cast %207 : vector<1x4x384xf32> to vector<4x384xf32>
    %cst_56 = arith.constant dense<0.000000e+00> : vector<4x384xf32>
    %209 = tpu.matmul %203, %37, %cst_56 {dimension_numbers = #tpu.dot_dimension_numbers<[1], [0], [0], [1], [0, 0, 1, 1], [], []>} : vector<4x128xf32>, vector<128x384xf32>, vector<4x384xf32> -> vector<4x384xf32>
    %210 = vector.extract_strided_slice %208 {offsets = [0, 0], sizes = [4, 128], strides = [1, 1]} : vector<4x384xf32> to vector<4x128xf32>
    %211 = vector.extract_strided_slice %209 {offsets = [0, 0], sizes = [4, 128], strides = [1, 1]} : vector<4x384xf32> to vector<4x128xf32>
    %212 = arith.addf %210, %211 : vector<4x128xf32>
    %213 = arith.negf %212 : vector<4x128xf32>
    %214 = math.exp %213 : vector<4x128xf32>
    %cst_57 = arith.constant 1.000000e+00 : f32
    %215 = vector.broadcast %cst_57 : f32 to vector<4x128xf32>
    %216 = arith.addf %215, %214 : vector<4x128xf32>
    %217 = arith.divf %215, %216 : vector<4x128xf32>
    %218 = vector.extract_strided_slice %208 {offsets = [0, 128], sizes = [4, 128], strides = [1, 1]} : vector<4x384xf32> to vector<4x128xf32>
    %219 = vector.extract_strided_slice %209 {offsets = [0, 128], sizes = [4, 128], strides = [1, 1]} : vector<4x384xf32> to vector<4x128xf32>
    %220 = arith.addf %218, %219 : vector<4x128xf32>
    %221 = arith.negf %220 : vector<4x128xf32>
    %222 = math.exp %221 : vector<4x128xf32>
    %cst_58 = arith.constant 1.000000e+00 : f32
    %223 = vector.broadcast %cst_58 : f32 to vector<4x128xf32>
    %224 = arith.addf %223, %222 : vector<4x128xf32>
    %225 = arith.divf %223, %224 : vector<4x128xf32>
    %226 = vector.extract_strided_slice %208 {offsets = [0, 256], sizes = [4, 128], strides = [1, 1]} : vector<4x384xf32> to vector<4x128xf32>
    %227 = vector.extract_strided_slice %209 {offsets = [0, 256], sizes = [4, 128], strides = [1, 1]} : vector<4x384xf32> to vector<4x128xf32>
    %228 = arith.addf %227, %40 : vector<4x128xf32>
    %229 = arith.mulf %217, %228 : vector<4x128xf32>
    %230 = arith.addf %226, %229 : vector<4x128xf32>
    %231 = math.tanh %230 : vector<4x128xf32>
    %cst_59 = arith.constant 1.000000e+00 : f32
    %232 = vector.broadcast %cst_59 : f32 to vector<4x128xf32>
    %233 = arith.subf %232, %225 : vector<4x128xf32>
    %234 = arith.mulf %233, %231 : vector<4x128xf32>
    %235 = arith.mulf %225, %203 : vector<4x128xf32>
    %236 = arith.addf %234, %235 : vector<4x128xf32>
    %c5 = arith.constant 5 : index
    %c0_60 = arith.constant 0 : index
    %c0_61 = arith.constant 0 : index
    %237 = vector.load %arg23[%c5, %c0_60, %c0_61] : memref<8x4x128xf32, #tpu.memory_space<vmem>>, vector<1x4x128xf32>
    %238 = vector.shape_cast %237 : vector<1x4x128xf32> to vector<4x128xf32>
    %239 = vector.shape_cast %236 : vector<4x128xf32> to vector<1x4x128xf32>
    tpu.vector_store %arg23[%c5, %c0_60, %c0_61], %239 {strides = array<i32>} : memref<8x4x128xf32, #tpu.memory_space<vmem>>, vector<1x4x128xf32>,
    %240 = vector.extract_strided_slice %36 {offsets = [6, 0, 0], sizes = [1, 4, 384], strides = [1, 1, 1]} : vector<8x4x384xf32> to vector<1x4x384xf32>
    %241 = vector.shape_cast %240 : vector<1x4x384xf32> to vector<4x384xf32>
    %cst_62 = arith.constant dense<0.000000e+00> : vector<4x384xf32>
    %242 = tpu.matmul %236, %37, %cst_62 {dimension_numbers = #tpu.dot_dimension_numbers<[1], [0], [0], [1], [0, 0, 1, 1], [], []>} : vector<4x128xf32>, vector<128x384xf32>, vector<4x384xf32> -> vector<4x384xf32>
    %243 = vector.extract_strided_slice %241 {offsets = [0, 0], sizes = [4, 128], strides = [1, 1]} : vector<4x384xf32> to vector<4x128xf32>
    %244 = vector.extract_strided_slice %242 {offsets = [0, 0], sizes = [4, 128], strides = [1, 1]} : vector<4x384xf32> to vector<4x128xf32>
    %245 = arith.addf %243, %244 : vector<4x128xf32>
    %246 = arith.negf %245 : vector<4x128xf32>
    %247 = math.exp %246 : vector<4x128xf32>
    %cst_63 = arith.constant 1.000000e+00 : f32
    %248 = vector.broadcast %cst_63 : f32 to vector<4x128xf32>
    %249 = arith.addf %248, %247 : vector<4x128xf32>
    %250 = arith.divf %248, %249 : vector<4x128xf32>
    %251 = vector.extract_strided_slice %241 {offsets = [0, 128], sizes = [4, 128], strides = [1, 1]} : vector<4x384xf32> to vector<4x128xf32>
    %252 = vector.extract_strided_slice %242 {offsets = [0, 128], sizes = [4, 128], strides = [1, 1]} : vector<4x384xf32> to vector<4x128xf32>
    %253 = arith.addf %251, %252 : vector<4x128xf32>
    %254 = arith.negf %253 : vector<4x128xf32>
    %255 = math.exp %254 : vector<4x128xf32>
    %cst_64 = arith.constant 1.000000e+00 : f32
    %256 = vector.broadcast %cst_64 : f32 to vector<4x128xf32>
    %257 = arith.addf %256, %255 : vector<4x128xf32>
    %258 = arith.divf %256, %257 : vector<4x128xf32>
    %259 = vector.extract_strided_slice %241 {offsets = [0, 256], sizes = [4, 128], strides = [1, 1]} : vector<4x384xf32> to vector<4x128xf32>
    %260 = vector.extract_strided_slice %242 {offsets = [0, 256], sizes = [4, 128], strides = [1, 1]} : vector<4x384xf32> to vector<4x128xf32>
    %261 = arith.addf %260, %40 : vector<4x128xf32>
    %262 = arith.mulf %250, %261 : vector<4x128xf32>
    %263 = arith.addf %259, %262 : vector<4x128xf32>
    %264 = math.tanh %263 : vector<4x128xf32>
    %cst_65 = arith.constant 1.000000e+00 : f32
    %265 = vector.broadcast %cst_65 : f32 to vector<4x128xf32>
    %266 = arith.subf %265, %258 : vector<4x128xf32>
    %267 = arith.mulf %266, %264 : vector<4x128xf32>
    %268 = arith.mulf %258, %236 : vector<4x128xf32>
    %269 = arith.addf %267, %268 : vector<4x128xf32>
    %c6 = arith.constant 6 : index
    %c0_66 = arith.constant 0 : index
    %c0_67 = arith.constant 0 : index
    %270 = vector.load %arg23[%c6, %c0_66, %c0_67] : memref<8x4x128xf32, #tpu.memory_space<vmem>>, vector<1x4x128xf32>
    %271 = vector.shape_cast %270 : vector<1x4x128xf32> to vector<4x128xf32>
    %272 = vector.shape_cast %269 : vector<4x128xf32> to vector<1x4x128xf32>
    tpu.vector_store %arg23[%c6, %c0_66, %c0_67], %272 {strides = array<i32>} : memref<8x4x128xf32, #tpu.memory_space<vmem>>, vector<1x4x128xf32>,
    %273 = vector.extract_strided_slice %36 {offsets = [7, 0, 0], sizes = [1, 4, 384], strides = [1, 1, 1]} : vector<8x4x384xf32> to vector<1x4x384xf32>
    %274 = vector.shape_cast %273 : vector<1x4x384xf32> to vector<4x384xf32>
    %cst_68 = arith.constant dense<0.000000e+00> : vector<4x384xf32>
    %275 = tpu.matmul %269, %37, %cst_68 {dimension_numbers = #tpu.dot_dimension_numbers<[1], [0], [0], [1], [0, 0, 1, 1], [], []>} : vector<4x128xf32>, vector<128x384xf32>, vector<4x384xf32> -> vector<4x384xf32>
    %276 = vector.extract_strided_slice %274 {offsets = [0, 0], sizes = [4, 128], strides = [1, 1]} : vector<4x384xf32> to vector<4x128xf32>
    %277 = vector.extract_strided_slice %275 {offsets = [0, 0], sizes = [4, 128], strides = [1, 1]} : vector<4x384xf32> to vector<4x128xf32>
    %278 = arith.addf %276, %277 : vector<4x128xf32>
    %279 = arith.negf %278 : vector<4x128xf32>
    %280 = math.exp %279 : vector<4x128xf32>
    %cst_69 = arith.constant 1.000000e+00 : f32
    %281 = vector.broadcast %cst_69 : f32 to vector<4x128xf32>
    %282 = arith.addf %281, %280 : vector<4x128xf32>
    %283 = arith.divf %281, %282 : vector<4x128xf32>
    %284 = vector.extract_strided_slice %274 {offsets = [0, 128], sizes = [4, 128], strides = [1, 1]} : vector<4x384xf32> to vector<4x128xf32>
    %285 = vector.extract_strided_slice %275 {offsets = [0, 128], sizes = [4, 128], strides = [1, 1]} : vector<4x384xf32> to vector<4x128xf32>
    %286 = arith.addf %284, %285 : vector<4x128xf32>
    %287 = arith.negf %286 : vector<4x128xf32>
    %288 = math.exp %287 : vector<4x128xf32>
    %cst_70 = arith.constant 1.000000e+00 : f32
    %289 = vector.broadcast %cst_70 : f32 to vector<4x128xf32>
    %290 = arith.addf %289, %288 : vector<4x128xf32>
    %291 = arith.divf %289, %290 : vector<4x128xf32>
    %292 = vector.extract_strided_slice %274 {offsets = [0, 256], sizes = [4, 128], strides = [1, 1]} : vector<4x384xf32> to vector<4x128xf32>
    %293 = vector.extract_strided_slice %275 {offsets = [0, 256], sizes = [4, 128], strides = [1, 1]} : vector<4x384xf32> to vector<4x128xf32>
    %294 = arith.addf %293, %40 : vector<4x128xf32>
    %295 = arith.mulf %283, %294 : vector<4x128xf32>
    %296 = arith.addf %292, %295 : vector<4x128xf32>
    %297 = math.tanh %296 : vector<4x128xf32>
    %cst_71 = arith.constant 1.000000e+00 : f32
    %298 = vector.broadcast %cst_71 : f32 to vector<4x128xf32>
    %299 = arith.subf %298, %291 : vector<4x128xf32>
    %300 = arith.mulf %299, %297 : vector<4x128xf32>
    %301 = arith.mulf %291, %269 : vector<4x128xf32>
    %302 = arith.addf %300, %301 : vector<4x128xf32>
    %c7 = arith.constant 7 : index
    %c0_72 = arith.constant 0 : index
    %c0_73 = arith.constant 0 : index
    %303 = vector.load %arg23[%c7, %c0_72, %c0_73] : memref<8x4x128xf32, #tpu.memory_space<vmem>>, vector<1x4x128xf32>
    %304 = vector.shape_cast %303 : vector<1x4x128xf32> to vector<4x128xf32>
    %305 = vector.shape_cast %302 : vector<4x128xf32> to vector<1x4x128xf32>
    tpu.vector_store %arg23[%c7, %c0_72, %c0_73], %305 {strides = array<i32>} : memref<8x4x128xf32, #tpu.memory_space<vmem>>, vector<1x4x128xf32>,
    %c0_74 = arith.constant 0 : index
    %c0_75 = arith.constant 0 : index
    %c0_76 = arith.constant 0 : index
    %306 = vector.load %arg23[%c0_74, %c0_75, %c0_76] : memref<8x4x128xf32, #tpu.memory_space<vmem>>, vector<8x4x128xf32>
    %307 = tpu.iota {dimensions = array<i32: 0>} : vector<8x4x128xi32>
    %308 = tpu.iota {dimensions = array<i32: 2>} : vector<8x4x128xi32>
    %c32_i32 = arith.constant 32 : i32
    %309 = vector.broadcast %c32_i32 : i32 to vector<8x4x128xi32>
    %310 = arith.cmpi slt, %308, %309 : vector<8x4x128xi32>
    %311 = vector.shape_cast %1 : vector<4x1xi32> to vector<1x4x1xi32>
    %312 = vector.shape_cast %2 : vector<4x1xi32> to vector<1x4x1xi32>
    %313 = vector.shape_cast %311 : vector<1x4x1xi32> to vector<1x4x1xi32>
    %314 = vector.broadcast %313 : vector<1x4x1xi32> to vector<8x4x128xi32>
    %315 = vector.shape_cast %312 : vector<1x4x1xi32> to vector<1x4x1xi32>
    %316 = vector.broadcast %315 : vector<1x4x1xi32> to vector<8x4x128xi32>
    %317 = arith.select %310, %314, %316 : vector<8x4x128xi1>, vector<8x4x128xi32>
    %318 = arith.cmpi slt, %307, %317 : vector<8x4x128xi32>
    %319 = arith.extui %318 : vector<8x4x128xi1> to vector<8x4x128xi32>
    %320 = arith.sitofp %319 : vector<8x4x128xi32> to vector<8x4x128xf32>
    %321 = arith.mulf %306, %320 : vector<8x4x128xf32>
    %cst_77 = arith.constant dense<0.000000e+00> : vector<4x128xf32>
    %322 = vector.multi_reduction <add>, %321, %cst_77 [0] : vector<8x4x128xf32> to vector<4x128xf32>
    %323 = vector.extract_strided_slice %322 {offsets = [0, 0], sizes = [4, 32], strides = [1, 1]} : vector<4x128xf32> to vector<4x32xf32>
    %cst_78 = arith.constant 1.250000e-01 : f32
    %324 = vector.broadcast %cst_78 : f32 to vector<4x32xf32>
    %325 = arith.mulf %323, %324 : vector<4x32xf32>
    %326 = vector.extract_strided_slice %322 {offsets = [0, 32], sizes = [4, 32], strides = [1, 1]} : vector<4x128xf32> to vector<4x32xf32>
    %cst_79 = arith.constant 1.250000e-01 : f32
    %327 = vector.broadcast %cst_79 : f32 to vector<4x32xf32>
    %328 = arith.mulf %326, %327 : vector<4x32xf32>
    %329 = vector.shape_cast %321 : vector<8x4x128xf32> to vector<32x128xf32>
    %cst_80 = arith.constant 0.000000e+00 : f32
    %330 = vector.broadcast %cst_80 : f32 to vector<8x4x64xf32>
    %c0_81 = arith.constant 0 : index
    %c0_82 = arith.constant 0 : index
    %331 = vector.load %arg10[%c0_81, %c0_82] : memref<128x64xf32, #tpu.memory_space<vmem>>, vector<128x64xf32>
    %cst_83 = arith.constant dense<0.000000e+00> : vector<32x64xf32>
    %332 = tpu.matmul %329, %331, %cst_83 {dimension_numbers = #tpu.dot_dimension_numbers<[1], [0], [0], [1], [0, 0, 1, 1], [], []>} : vector<32x128xf32>, vector<128x64xf32>, vector<32x64xf32> -> vector<32x64xf32>
    %333 = vector.shape_cast %332 : vector<32x64xf32> to vector<8x4x64xf32>
    %cst_84 = arith.constant 0.000000e+00 : f32
    %334 = vector.broadcast %cst_84 : f32 to vector<1x4x64xf32>
    %335 = vector.extract_strided_slice %333 {offsets = [0, 0, 0], sizes = [7, 4, 64], strides = [1, 1, 1]} : vector<8x4x64xf32> to vector<7x4x64xf32>
    %336 = tpu.concatenate %334, %335 in 0 : vector<1x4x64xf32>, vector<7x4x64xf32> -> vector<8x4x64xf32>
    %337 = arith.addf %330, %336 : vector<8x4x64xf32>
    %c0_85 = arith.constant 0 : index
    %c0_86 = arith.constant 0 : index
    %338 = vector.load %arg11[%c0_85, %c0_86] : memref<128x64xf32, #tpu.memory_space<vmem>>, vector<128x64xf32>
    %cst_87 = arith.constant dense<0.000000e+00> : vector<32x64xf32>
    %339 = tpu.matmul %329, %338, %cst_87 {dimension_numbers = #tpu.dot_dimension_numbers<[1], [0], [0], [1], [0, 0, 1, 1], [], []>} : vector<32x128xf32>, vector<128x64xf32>, vector<32x64xf32> -> vector<32x64xf32>
    %340 = vector.shape_cast %339 : vector<32x64xf32> to vector<8x4x64xf32>
    %341 = arith.addf %337, %340 : vector<8x4x64xf32>
    %c0_88 = arith.constant 0 : index
    %c0_89 = arith.constant 0 : index
    %342 = vector.load %arg12[%c0_88, %c0_89] : memref<128x64xf32, #tpu.memory_space<vmem>>, vector<128x64xf32>
    %cst_90 = arith.constant dense<0.000000e+00> : vector<32x64xf32>
    %343 = tpu.matmul %329, %342, %cst_90 {dimension_numbers = #tpu.dot_dimension_numbers<[1], [0], [0], [1], [0, 0, 1, 1], [], []>} : vector<32x128xf32>, vector<128x64xf32>, vector<32x64xf32> -> vector<32x64xf32>
    %344 = vector.shape_cast %343 : vector<32x64xf32> to vector<8x4x64xf32>
    %345 = vector.extract_strided_slice %344 {offsets = [1, 0, 0], sizes = [7, 4, 64], strides = [1, 1, 1]} : vector<8x4x64xf32> to vector<7x4x64xf32>
    %cst_91 = arith.constant 0.000000e+00 : f32
    %346 = vector.broadcast %cst_91 : f32 to vector<1x4x64xf32>
    %347 = tpu.concatenate %345, %346 in 0 : vector<7x4x64xf32>, vector<1x4x64xf32> -> vector<8x4x64xf32>
    %348 = arith.addf %341, %347 : vector<8x4x64xf32>
    %c0_92 = arith.constant 0 : index
    %c0_93 = arith.constant 0 : index
    %349 = vector.load %arg13[%c0_92, %c0_93] : memref<1x64xf32, #tpu.memory_space<vmem>>, vector<1x64xf32>
    %350 = vector.shape_cast %349 : vector<1x64xf32> to vector<1x1x64xf32>
    %351 = vector.broadcast %350 : vector<1x1x64xf32> to vector<8x4x64xf32>
    %352 = arith.addf %348, %351 : vector<8x4x64xf32>
    %cst_94 = arith.constant 0.000000e+00 : f32
    %353 = vector.broadcast %cst_94 : f32 to vector<8x4x64xf32>
    %354 = arith.maximumf %352, %353 : vector<8x4x64xf32>
    %355 = vector.extract_strided_slice %354 {offsets = [0, 0, 0], sizes = [8, 4, 32], strides = [1, 1, 1]} : vector<8x4x64xf32> to vector<8x4x32xf32>
    %cst_95 = arith.constant dense<0xFF800000> : vector<4x32xf32>
    %356 = vector.multi_reduction <maximumf>, %355, %cst_95 [0] : vector<8x4x32xf32> to vector<4x32xf32>
    %357 = vector.extract_strided_slice %354 {offsets = [0, 0, 32], sizes = [8, 4, 32], strides = [1, 1, 1]} : vector<8x4x64xf32> to vector<8x4x32xf32>
    %cst_96 = arith.constant dense<0xFF800000> : vector<4x32xf32>
    %358 = vector.multi_reduction <maximumf>, %357, %cst_96 [0] : vector<8x4x32xf32> to vector<4x32xf32>
    %359 = tpu.concatenate %6, %325, %356 in 1 : vector<4x32xf32>, vector<4x32xf32>, vector<4x32xf32> -> vector<4x96xf32>
    %360 = tpu.concatenate %21, %328, %358 in 1 : vector<4x64xf32>, vector<4x32xf32>, vector<4x32xf32> -> vector<4x128xf32>
    %c0_97 = arith.constant 0 : index
    %c0_98 = arith.constant 0 : index
    %361 = vector.load %arg14[%c0_97, %c0_98] : memref<96x32xf32, #tpu.memory_space<vmem>>, vector<96x32xf32>
    %cst_99 = arith.constant dense<0.000000e+00> : vector<4x32xf32>
    %362 = tpu.matmul %359, %361, %cst_99 {dimension_numbers = #tpu.dot_dimension_numbers<[1], [0], [0], [1], [0, 0, 1, 1], [], []>} : vector<4x96xf32>, vector<96x32xf32>, vector<4x32xf32> -> vector<4x32xf32>
    %c0_100 = arith.constant 0 : index
    %c0_101 = arith.constant 0 : index
    %363 = vector.load %arg15[%c0_100, %c0_101] : memref<1x32xf32, #tpu.memory_space<vmem>>, vector<1x32xf32>
    %364 = vector.broadcast %363 : vector<1x32xf32> to vector<4x32xf32>
    %365 = arith.addf %362, %364 : vector<4x32xf32>
    %c0_102 = arith.constant 0 : index
    %c0_103 = arith.constant 0 : index
    %366 = vector.load %arg16[%c0_102, %c0_103] : memref<128x32xf32, #tpu.memory_space<vmem>>, vector<128x32xf32>
    %cst_104 = arith.constant dense<0.000000e+00> : vector<4x32xf32>
    %367 = tpu.matmul %360, %366, %cst_104 {dimension_numbers = #tpu.dot_dimension_numbers<[1], [0], [0], [1], [0, 0, 1, 1], [], []>} : vector<4x128xf32>, vector<128x32xf32>, vector<4x32xf32> -> vector<4x32xf32>
    %c0_105 = arith.constant 0 : index
    %c0_106 = arith.constant 0 : index
    %368 = vector.load %arg17[%c0_105, %c0_106] : memref<1x32xf32, #tpu.memory_space<vmem>>, vector<1x32xf32>
    %369 = vector.broadcast %368 : vector<1x32xf32> to vector<4x32xf32>
    %370 = arith.addf %367, %369 : vector<4x32xf32>
    %371 = arith.mulf %365, %365 : vector<4x32xf32>
    %cst_107 = arith.constant dense<0.000000e+00> : vector<4xf32>
    %372 = vector.multi_reduction <add>, %371, %cst_107 [1] : vector<4x32xf32> to vector<4xf32>
    %373 = vector.shape_cast %372 : vector<4xf32> to vector<4x1xf32>
    %cst_108 = arith.constant 9.99999996E-13 : f32
    %374 = vector.broadcast %cst_108 : f32 to vector<4x1xf32>
    %375 = arith.addf %373, %374 : vector<4x1xf32>
    %376 = math.rsqrt %375 : vector<4x1xf32>
    %377 = vector.broadcast %376 : vector<4x1xf32> to vector<4x32xf32>
    %378 = arith.mulf %365, %377 : vector<4x32xf32>
    %379 = arith.mulf %370, %370 : vector<4x32xf32>
    %cst_109 = arith.constant dense<0.000000e+00> : vector<4xf32>
    %380 = vector.multi_reduction <add>, %379, %cst_109 [1] : vector<4x32xf32> to vector<4xf32>
    %381 = vector.shape_cast %380 : vector<4xf32> to vector<4x1xf32>
    %cst_110 = arith.constant 9.99999996E-13 : f32
    %382 = vector.broadcast %cst_110 : f32 to vector<4x1xf32>
    %383 = arith.addf %381, %382 : vector<4x1xf32>
    %384 = math.rsqrt %383 : vector<4x1xf32>
    %385 = vector.broadcast %384 : vector<4x1xf32> to vector<4x32xf32>
    %386 = arith.mulf %370, %385 : vector<4x32xf32>
    %cst_111 = arith.constant dense<0.000000e+00> : vector<4x4xf32>
    %387 = tpu.matmul %378, %386, %cst_111 {dimension_numbers = #tpu.dot_dimension_numbers<[1], [1], [0], [0], [0, 0, 1, 0], [], []>} : vector<4x32xf32>, vector<4x32xf32>, vector<4x4xf32> -> vector<4x4xf32>
    %c0_112 = arith.constant 0 : index
    %c0_113 = arith.constant 0 : index
    %388 = vector.load %arg18[%c0_112, %c0_113] : memref<96x48xf32, #tpu.memory_space<vmem>>, vector<96x48xf32>
    %cst_114 = arith.constant dense<0.000000e+00> : vector<4x48xf32>
    %389 = tpu.matmul %359, %388, %cst_114 {dimension_numbers = #tpu.dot_dimension_numbers<[1], [0], [0], [1], [0, 0, 1, 1], [], []>} : vector<4x96xf32>, vector<96x48xf32>, vector<4x48xf32> -> vector<4x48xf32>
    %c0_115 = arith.constant 0 : index
    %c0_116 = arith.constant 0 : index
    %390 = vector.load %arg19[%c0_115, %c0_116] : memref<1x48xf32, #tpu.memory_space<vmem>>, vector<1x48xf32>
    %391 = vector.broadcast %390 : vector<1x48xf32> to vector<4x48xf32>
    %392 = arith.addf %389, %391 : vector<4x48xf32>
    %393 = arith.negf %392 : vector<4x48xf32>
    %394 = math.exp %393 : vector<4x48xf32>
    %cst_117 = arith.constant 1.000000e+00 : f32
    %395 = vector.broadcast %cst_117 : f32 to vector<4x48xf32>
    %396 = arith.addf %395, %394 : vector<4x48xf32>
    %397 = arith.divf %395, %396 : vector<4x48xf32>
    %c0_118 = arith.constant 0 : index
    %c0_119 = arith.constant 0 : index
    %398 = vector.load %arg20[%c0_118, %c0_119] : memref<128x48xf32, #tpu.memory_space<vmem>>, vector<128x48xf32>
    %cst_120 = arith.constant dense<0.000000e+00> : vector<4x48xf32>
    %399 = tpu.matmul %360, %398, %cst_120 {dimension_numbers = #tpu.dot_dimension_numbers<[1], [0], [0], [1], [0, 0, 1, 1], [], []>} : vector<4x128xf32>, vector<128x48xf32>, vector<4x48xf32> -> vector<4x48xf32>
    %c0_121 = arith.constant 0 : index
    %c0_122 = arith.constant 0 : index
    %400 = vector.load %arg21[%c0_121, %c0_122] : memref<1x48xf32, #tpu.memory_space<vmem>>, vector<1x48xf32>
    %401 = vector.broadcast %400 : vector<1x48xf32> to vector<4x48xf32>
    %402 = arith.addf %399, %401 : vector<4x48xf32>
    %403 = arith.negf %402 : vector<4x48xf32>
    %404 = math.exp %403 : vector<4x48xf32>
    %cst_123 = arith.constant 1.000000e+00 : f32
    %405 = vector.broadcast %cst_123 : f32 to vector<4x48xf32>
    %406 = arith.addf %405, %404 : vector<4x48xf32>
    %407 = arith.divf %405, %406 : vector<4x48xf32>
    %408 = vector.shape_cast %397 : vector<4x48xf32> to vector<4x1x48xf32>
    %409 = vector.shape_cast %407 : vector<4x48xf32> to vector<1x4x48xf32>
    %410 = vector.broadcast %408 : vector<4x1x48xf32> to vector<4x4x48xf32>
    %411 = vector.broadcast %409 : vector<1x4x48xf32> to vector<4x4x48xf32>
    %412 = arith.minimumf %410, %411 : vector<4x4x48xf32>
    %cst_124 = arith.constant dense<0.000000e+00> : vector<4x4xf32>
    %413 = vector.multi_reduction <add>, %412, %cst_124 [2] : vector<4x4x48xf32> to vector<4x4xf32>
    %cst_125 = arith.constant 1.000000e+00 : f32
    %414 = vector.broadcast %cst_125 : f32 to vector<1x48xf32>
    %cst_126 = arith.constant dense<0.000000e+00> : vector<1x4xf32>
    %415 = tpu.matmul %414, %407, %cst_126 {dimension_numbers = #tpu.dot_dimension_numbers<[1], [1], [0], [0], [0, 0, 1, 0], [], []>} : vector<1x48xf32>, vector<4x48xf32>, vector<1x4xf32> -> vector<1x4xf32>
    %cst_127 = arith.constant dense<0.000000e+00> : vector<4xf32>
    %416 = vector.multi_reduction <add>, %397, %cst_127 [1] : vector<4x48xf32> to vector<4xf32>
    %417 = vector.shape_cast %416 : vector<4xf32> to vector<4x1xf32>
    %418 = vector.broadcast %417 : vector<4x1xf32> to vector<4x4xf32>
    %419 = vector.broadcast %415 : vector<1x4xf32> to vector<4x4xf32>
    %420 = arith.addf %418, %419 : vector<4x4xf32>
    %421 = arith.subf %420, %413 : vector<4x4xf32>
    %422 = arith.divf %413, %421 : vector<4x4xf32>
    %423 = vector.shape_cast %387 : vector<4x4xf32> to vector<1x4x4xf32>
    %cst_128 = arith.constant dense<0x7F800000> : vector<1xf32>
    %424 = vector.multi_reduction <minimumf>, %423, %cst_128 [1, 2] : vector<1x4x4xf32> to vector<1xf32>
    %425 = vector.shape_cast %424 : vector<1xf32> to vector<1x1x1xf32>
    %426 = vector.extract %425[0, 0, 0] : f32 from vector<1x1x1xf32>
    %427 = vector.broadcast %426 : f32 to vector<1x1xf32>
    %428 = vector.shape_cast %387 : vector<4x4xf32> to vector<1x4x4xf32>
    %cst_129 = arith.constant dense<0xFF800000> : vector<1xf32>
    %429 = vector.multi_reduction <maximumf>, %428, %cst_129 [1, 2] : vector<1x4x4xf32> to vector<1xf32>
    %430 = vector.shape_cast %429 : vector<1xf32> to vector<1x1x1xf32>
    %431 = vector.extract %430[0, 0, 0] : f32 from vector<1x1x1xf32>
    %432 = vector.broadcast %431 : f32 to vector<1x1xf32>
    %433 = vector.broadcast %427 : vector<1x1xf32> to vector<4x4xf32>
    %434 = arith.subf %387, %433 : vector<4x4xf32>
    %435 = arith.subf %432, %427 : vector<1x1xf32>
    %cst_130 = arith.constant 9.99999996E-13 : f32
    %436 = vector.broadcast %cst_130 : f32 to vector<1x1xf32>
    %437 = arith.maximumf %435, %436 : vector<1x1xf32>
    %438 = vector.broadcast %437 : vector<1x1xf32> to vector<4x4xf32>
    %439 = arith.divf %434, %438 : vector<4x4xf32>
    %cst_131 = arith.constant 6.000000e-01 : f32
    %440 = vector.broadcast %cst_131 : f32 to vector<4x4xf32>
    %441 = arith.mulf %440, %439 : vector<4x4xf32>
    %442 = vector.shape_cast %422 : vector<4x4xf32> to vector<1x4x4xf32>
    %cst_132 = arith.constant dense<0x7F800000> : vector<1xf32>
    %443 = vector.multi_reduction <minimumf>, %442, %cst_132 [1, 2] : vector<1x4x4xf32> to vector<1xf32>
    %444 = vector.shape_cast %443 : vector<1xf32> to vector<1x1x1xf32>
    %445 = vector.extract %444[0, 0, 0] : f32 from vector<1x1x1xf32>
    %446 = vector.broadcast %445 : f32 to vector<1x1xf32>
    %447 = vector.shape_cast %422 : vector<4x4xf32> to vector<1x4x4xf32>
    %cst_133 = arith.constant dense<0xFF800000> : vector<1xf32>
    %448 = vector.multi_reduction <maximumf>, %447, %cst_133 [1, 2] : vector<1x4x4xf32> to vector<1xf32>
    %449 = vector.shape_cast %448 : vector<1xf32> to vector<1x1x1xf32>
    %450 = vector.extract %449[0, 0, 0] : f32 from vector<1x1x1xf32>
    %451 = vector.broadcast %450 : f32 to vector<1x1xf32>
    %452 = vector.broadcast %446 : vector<1x1xf32> to vector<4x4xf32>
    %453 = arith.subf %422, %452 : vector<4x4xf32>
    %454 = arith.subf %451, %446 : vector<1x1xf32>
    %cst_134 = arith.constant 9.99999996E-13 : f32
    %455 = vector.broadcast %cst_134 : f32 to vector<1x1xf32>
    %456 = arith.maximumf %454, %455 : vector<1x1xf32>
    %457 = vector.broadcast %456 : vector<1x1xf32> to vector<4x4xf32>
    %458 = arith.divf %453, %457 : vector<4x4xf32>
    %cst_135 = arith.constant 4.000000e-01 : f32
    %459 = vector.broadcast %cst_135 : f32 to vector<4x4xf32>
    %460 = arith.mulf %459, %458 : vector<4x4xf32>
    %461 = arith.addf %441, %460 : vector<4x4xf32>
    %c0_136 = arith.constant 0 : index
    %c0_137 = arith.constant 0 : index
    %462 = vector.load %arg22[%c0_136, %c0_137] : memref<4x4xf32, #tpu.memory_space<vmem>>, vector<4x4xf32>
    tpu.vector_store %arg22[%c0_136, %c0_137], %461 {strides = array<i32>} : memref<4x4xf32, #tpu.memory_space<vmem>>, vector<4x4xf32>,
    return
  }
}

</mosaic_0001>

<llo_original>
// kernel: tpu_custom_call.1
$region0: #{tpu_custom_call.1}
  #allocation0 [shape = 'u32[]', space=smem, size = 0x4, offset = 0x4, fixed_abs, tag = 'smem constant byte address 0x4 - core index']
  #allocation1 [shape = 'u32[72,128]{1,0:T(1,128)}', space=vmem, size = 0x9000, scoped, tag = 'internal scratch']
  #allocation2 [shape = 'f32[8,4,128]{2,1,0:T(4,128)}', space=vmem, size = 0x4000, scoped, tag = 'scratch operand']
  %s0 = inlined_call_operand.vmem [shape: f32[8,4,32], index: 0, kind: input, shape index: {}]
  %s1 = inlined_call_operand.vmem [shape: s32[4,1], index: 1, kind: input, shape index: {}]
  %s2 = inlined_call_operand.vmem [shape: s32[8,4], index: 2, kind: input, shape index: {}]
  %s3 = inlined_call_operand.vmem [shape: s32[4,1], index: 3, kind: input, shape index: {}]
  %s4 = inlined_call_operand.vmem [shape: f32[64,32], index: 4, kind: input, shape index: {}]
  %s5 = inlined_call_operand.vmem [shape: f32[32,384], index: 5, kind: input, shape index: {}]
  %s6 = inlined_call_operand.vmem [shape: f32[32,384], index: 6, kind: input, shape index: {}]
  %s7 = inlined_call_operand.vmem [shape: f32[128,384], index: 7, kind: input, shape index: {}]
  %s8 = inlined_call_operand.vmem [shape: f32[1,384], index: 8, kind: input, shape index: {}]
  %s9 = inlined_call_operand.vmem [shape: f32[1,128], index: 9, kind: input, shape index: {}]
  %s10 = inlined_call_operand.vmem [shape: f32[128,64], index: 10, kind: input, shape index: {}]
  %s11 = inlined_call_operand.vmem [shape: f32[128,64], index: 11, kind: input, shape index: {}]
  %s12 = inlined_call_operand.vmem [shape: f32[128,64], index: 12, kind: input, shape index: {}]
  %s13 = inlined_call_operand.vmem [shape: f32[1,64], index: 13, kind: input, shape index: {}]
  %s14 = inlined_call_operand.vmem [shape: f32[96,32], index: 14, kind: input, shape index: {}]
  %s15 = inlined_call_operand.vmem [shape: f32[1,32], index: 15, kind: input, shape index: {}]
  %s16 = inlined_call_operand.vmem [shape: f32[128,32], index: 16, kind: input, shape index: {}]
  %s17 = inlined_call_operand.vmem [shape: f32[1,32], index: 17, kind: input, shape index: {}]
  %s18 = inlined_call_operand.vmem [shape: f32[96,48], index: 18, kind: input, shape index: {}]
  %s19 = inlined_call_operand.vmem [shape: f32[1,48], index: 19, kind: input, shape index: {}]
  %s20 = inlined_call_operand.vmem [shape: f32[128,48], index: 20, kind: input, shape index: {}]
  %s21 = inlined_call_operand.vmem [shape: f32[1,48], index: 21, kind: input, shape index: {}]
  %s22 = inlined_call_operand.hbm [shape: f32[4,4], index: 22, kind: output, shape index: {}]
  %s23 = sld [smem:[#allocation0]]
  $region98: #{tpu_custom_call.1} parent=0
    _
  %s25 = ssub.s32 1, %s23
  %s26 = scalar_select 0, %s25, %s23
  $region1: #{tpu_custom_call.1} parent=0
    #allocation3 [shape = 'u8[2048]{0}', space=vmem, size = 0x800, scoped, tag = 'output window, operand 0, single buffered']
    #allocation4 [shape = 's32[1]{0}', space=sflag, size = 0x4, scoped, tag = 'scoped memory for tpu_custom_call.1']
    %27 = vsyncpa [#allocation4], 0
    // Predicated region
    $region2: #{tpu_custom_call.1} parent=1 // pred_check
      _
    $region3: #{tpu_custom_call.1} parent=1 // pred_check_branch
      %29 = sbr.rel (0) target = $region5
    $region4: #{tpu_custom_call.1} parent=1 // pred_region
      _
    $region5: #{tpu_custom_call.1} parent=1 // pred_fallthru
      _
    // Predicated region
    $region6: #{tpu_custom_call.1} parent=1 // pred_check
      _
    $region7: #{tpu_custom_call.1} parent=1 // pred_check_branch
      %31 = sbr.rel (0) target = $region9
    $region8: #{tpu_custom_call.1} parent=1 // pred_region
      _
    $region9: #{tpu_custom_call.1} parent=1 // pred_fallthru
      _
    // Predicated region
    $region10: #{tpu_custom_call.1} parent=1 // pred_check
      _
    $region11: #{tpu_custom_call.1} parent=1 // pred_check_branch
      %33 = sbr.rel (0) target = $region13
    $region12: #{tpu_custom_call.1} parent=1 // pred_region
      _
    $region13: #{tpu_custom_call.1} parent=1 // pred_fallthru
      _
    // Predicated region
    $region14: #{tpu_custom_call.1} parent=1 // pred_check
      _
    $region15: #{tpu_custom_call.1} parent=1 // pred_check_branch
      %35 = sbr.rel (0) target = $region17
    $region16: #{tpu_custom_call.1} parent=1 // pred_region
      _
    $region17: #{tpu_custom_call.1} parent=1 // pred_fallthru
      _
    // Predicated region
    $region18: #{tpu_custom_call.1} parent=1 // pred_check
      _
    $region19: #{tpu_custom_call.1} parent=1 // pred_check_branch
      %37 = sbr.rel (0) target = $region21
    $region20: #{tpu_custom_call.1} parent=1 // pred_region
      _
    $region21: #{tpu_custom_call.1} parent=1 // pred_fallthru
      _
    // Predicated region
    $region22: #{tpu_custom_call.1} parent=1 // pred_check
      _
    $region23: #{tpu_custom_call.1} parent=1 // pred_check_branch
      %39 = sbr.rel (0) target = $region25
    $region24: #{tpu_custom_call.1} parent=1 // pred_region
      _
    $region25: #{tpu_custom_call.1} parent=1 // pred_fallthru
      _
    // Predicated region
    $region26: #{tpu_custom_call.1} parent=1 // pred_check
      _
    $region27: #{tpu_custom_call.1} parent=1 // pred_check_branch
      %41 = sbr.rel (0) target = $region29
    $region28: #{tpu_custom_call.1} parent=1 // pred_region
      _
    $region29: #{tpu_custom_call.1} parent=1 // pred_fallthru
      _
    // Predicated region
    $region30: #{tpu_custom_call.1} parent=1 // pred_check
      _
    $region31: #{tpu_custom_call.1} parent=1 // pred_check_branch
      %43 = sbr.rel (0) target = $region33
    $region32: #{tpu_custom_call.1} parent=1 // pred_region
      _
    $region33: #{tpu_custom_call.1} parent=1 // pred_fallthru
      _
    // Predicated region
    $region34: #{tpu_custom_call.1} parent=1 // pred_check
      _
    $region35: #{tpu_custom_call.1} parent=1 // pred_check_branch
      %45 = sbr.rel (0) target = $region37
    $region36: #{tpu_custom_call.1} parent=1 // pred_region
      _
    $region37: #{tpu_custom_call.1} parent=1 // pred_fallthru
      _
    // Predicated region
    $region38: #{tpu_custom_call.1} parent=1 // pred_check
      _
    $region39: #{tpu_custom_call.1} parent=1 // pred_check_branch
      %47 = sbr.rel (0) target = $region41
    $region40: #{tpu_custom_call.1} parent=1 // pred_region
      _
    $region41: #{tpu_custom_call.1} parent=1 // pred_fallthru
      _
    // Predicated region
    $region42: #{tpu_custom_call.1} parent=1 // pred_check
      _
    $region43: #{tpu_custom_call.1} parent=1 // pred_check_branch
      %49 = sbr.rel (0) target = $region45
    $region44: #{tpu_custom_call.1} parent=1 // pred_region
      _
    $region45: #{tpu_custom_call.1} parent=1 // pred_fallthru
      _
    // Predicated region
    $region46: #{tpu_custom_call.1} parent=1 // pred_check
      _
    $region47: #{tpu_custom_call.1} parent=1 // pred_check_branch
      %51 = sbr.rel (0) target = $region49
    $region48: #{tpu_custom_call.1} parent=1 // pred_region
      _
    $region49: #{tpu_custom_call.1} parent=1 // pred_fallthru
      _
    // Predicated region
    $region50: #{tpu_custom_call.1} parent=1 // pred_check
      _
    $region51: #{tpu_custom_call.1} parent=1 // pred_check_branch
      %53 = sbr.rel (0) target = $region53
    $region52: #{tpu_custom_call.1} parent=1 // pred_region
      _
    $region53: #{tpu_custom_call.1} parent=1 // pred_fallthru
      _
    // Predicated region
    $region54: #{tpu_custom_call.1} parent=1 // pred_check
      _
    $region55: #{tpu_custom_call.1} parent=1 // pred_check_branch
      %55 = sbr.rel (0) target = $region57
    $region56: #{tpu_custom_call.1} parent=1 // pred_region
      _
    $region57: #{tpu_custom_call.1} parent=1 // pred_fallthru
      _
    // Predicated region
    $region58: #{tpu_custom_call.1} parent=1 // pred_check
      _
    $region59: #{tpu_custom_call.1} parent=1 // pred_check_branch
      %57 = sbr.rel (0) target = $region61
    $region60: #{tpu_custom_call.1} parent=1 // pred_region
      _
    $region61: #{tpu_custom_call.1} parent=1 // pred_fallthru
      _
    // Predicated region
    $region62: #{tpu_custom_call.1} parent=1 // pred_check
      _
    $region63: #{tpu_custom_call.1} parent=1 // pred_check_branch
      %59 = sbr.rel (0) target = $region65
    $region64: #{tpu_custom_call.1} parent=1 // pred_region
      _
    $region65: #{tpu_custom_call.1} parent=1 // pred_fallthru
      _
    // Predicated region
    $region66: #{tpu_custom_call.1} parent=1 // pred_check
      _
    $region67: #{tpu_custom_call.1} parent=1 // pred_check_branch
      %61 = sbr.rel (0) target = $region69
    $region68: #{tpu_custom_call.1} parent=1 // pred_region
      _
    $region69: #{tpu_custom_call.1} parent=1 // pred_fallthru
      _
    // Predicated region
    $region70: #{tpu_custom_call.1} parent=1 // pred_check
      _
    $region71: #{tpu_custom_call.1} parent=1 // pred_check_branch
      %63 = sbr.rel (0) target = $region73
    $region72: #{tpu_custom_call.1} parent=1 // pred_region
      _
    $region73: #{tpu_custom_call.1} parent=1 // pred_fallthru
      _
    // Predicated region
    $region74: #{tpu_custom_call.1} parent=1 // pred_check
      _
    $region75: #{tpu_custom_call.1} parent=1 // pred_check_branch
      %65 = sbr.rel (0) target = $region77
    $region76: #{tpu_custom_call.1} parent=1 // pred_region
      _
    $region77: #{tpu_custom_call.1} parent=1 // pred_fallthru
      _
    // Predicated region
    $region78: #{tpu_custom_call.1} parent=1 // pred_check
      _
    $region79: #{tpu_custom_call.1} parent=1 // pred_check_branch
      %67 = sbr.rel (0) target = $region81
    $region80: #{tpu_custom_call.1} parent=1 // pred_region
      _
    $region81: #{tpu_custom_call.1} parent=1 // pred_fallthru
      _
    // Predicated region
    $region82: #{tpu_custom_call.1} parent=1 // pred_check
      _
    $region83: #{tpu_custom_call.1} parent=1 // pred_check_branch
      %69 = sbr.rel (0) target = $region85
    $region84: #{tpu_custom_call.1} parent=1 // pred_region
      _
    $region85: #{tpu_custom_call.1} parent=1 // pred_fallthru
      _
    // Predicated region
    $region86: #{tpu_custom_call.1} parent=1 // pred_check
      _
    $region87: #{tpu_custom_call.1} parent=1 // pred_check_branch
      %71 = sbr.rel (0) target = $region89
    $region88: #{tpu_custom_call.1} parent=1 // pred_region
      _
    $region89: #{tpu_custom_call.1} parent=1 // pred_fallthru
      _
    %v72 = vld [vmem:[%s0] sm:$0xf]
    %v73 = vld [vmem:[%s0 + $0x4] sm:$0xf]
    %v74 = vld [vmem:[%s0 + $0x8] sm:$0xf]
    %v75 = vld [vmem:[%s0 + $0xc] sm:$0xf]
    %v76 = vld [vmem:[%s0 + $0x10] sm:$0xf]
    %v77 = vld [vmem:[%s0 + $0x14] sm:$0xf]
    %v78 = vld [vmem:[%s0 + $0x18] sm:$0xf]
    %v79 = vld [vmem:[%s0 + $0x1c] sm:$0xf]
    %v80 = vld [vmem:[%s1] sm:$0xf]
    %v81 = vld [vmem:[%s3] sm:$0xf]
    %vm82 = vcmask 257024
    %v83 = vsel %vm82, %v72, 0.0
    %v84 = vsel %vm82, %v73, 0.0
    %v85 = vadd.f32 %v83, %v84
    %v86 = vsel %vm82, %v74, 0.0
    %v87 = vadd.f32 %v85, %v86
    %v88 = vsel %vm82, %v75, 0.0
    %v89 = vadd.f32 %v87, %v88
    %v90 = vsel %vm82, %v76, 0.0
    %v91 = vadd.f32 %v89, %v90
    %v92 = vsel %vm82, %v77, 0.0
    %v93 = vadd.f32 %v91, %v92
    %v94 = vsel %vm82, %v78, 0.0
    %v95 = vadd.f32 %v93, %v94
    %v96 = vsel %vm82, %v79, 0.0
    %v97 = vadd.f32 %v95, %v96
    %v98 = vcvt.s32.f32 %v80
    %100 = vset.pattern.permute.xlu0 0
    %101 = vperm.xlu0 %100, %v98
    %v102 = vpop.permute.xlu0 %101
    %v104 = vrcp.pop %v102
    %v105 = vmul.f32 %v102, %v104
    %v106 = vsub.f32 1.0, %v105
    %v107 = vmul.f32 %v104, %v106
    %v108 = vadd.f32 %v104, %v107
    %vm109 = vweird.f32 %v102
    %vm110 = vweird.f32 %v104
    %vm111 = vmor %vm109, %vm110
    %v112 = vsel %vm111, %v104, %v108
    %v113 = vand.u32 2147483647, %v102
    %vm114 = vcmp.eq.f32.partialorder %v113, 8.507059e+37
    %v115 = vand.u32 %v102, 2147483648
    %v116 = vor.u32 1.1754944e-38, %v115
    %v117 = vsel %vm114, %v116, %v112
    %v118 = vmul.f32 %v97, %v117
    %v119 = vld [vmem:[%s2] sm:$0xff]
    %v120 = vlaneseq
    %v121 = vand.u32 %v120, 127
    %v122 = vperm.slane %v119, 0
    %v123 = vlaneseq
    %v124 = vshrl.u32 %v123, 7
    %126 = vset.pattern.permute.xlu0 %v124
    %127 = vperm.xlu0 %126, %v122
    %v128 = vpop.permute.xlu0 %127
    %v129 = vperm.slane %v119, 1
    %v130 = vlaneseq
    %v131 = vshrl.u32 %v130, 7
    %133 = vset.pattern.permute.xlu0 %v131
    %134 = vperm.xlu0 %133, %v129
    %v135 = vpop.permute.xlu0 %134
    %v136 = vperm.slane %v119, 2
    %v137 = vlaneseq
    %v138 = vshrl.u32 %v137, 7
    %140 = vset.pattern.permute.xlu0 %v138
    %141 = vperm.xlu0 %140, %v136
    %v142 = vpop.permute.xlu0 %141
    %v143 = vperm.slane %v119, 3
    %v144 = vlaneseq
    %v145 = vshrl.u32 %v144, 7
    %147 = vset.pattern.permute.xlu0 %v145
    %148 = vperm.xlu0 %147, %v143
    %v149 = vpop.permute.xlu0 %148
    %v150 = vperm.slane %v119, 4
    %v151 = vlaneseq
    %v152 = vshrl.u32 %v151, 7
    %154 = vset.pattern.permute.xlu0 %v152
    %155 = vperm.xlu0 %154, %v150
    %v156 = vpop.permute.xlu0 %155
    %v157 = vperm.slane %v119, 5
    %v158 = vlaneseq
    %v159 = vshrl.u32 %v158, 7
    %161 = vset.pattern.permute.xlu0 %v159
    %162 = vperm.xlu0 %161, %v157
    %v163 = vpop.permute.xlu0 %162
    %v164 = vperm.slane %v119, 6
    %v165 = vlaneseq
    %v166 = vshrl.u32 %v165, 7
    %168 = vset.pattern.permute.xlu0 %v166
    %169 = vperm.xlu0 %168, %v164
    %v170 = vpop.permute.xlu0 %169
    %v171 = vperm.slane %v119, 7
    %v172 = vlaneseq
    %v173 = vshrl.u32 %v172, 7
    %175 = vset.pattern.permute.xlu0 %v173
    %176 = vperm.xlu0 %175, %v171
    %v177 = vpop.permute.xlu0 %176
    %vm178 = vcmp.eq.s32.totalorder %v128, %v121
    %vm179 = vcmp.eq.s32.totalorder %v135, %v121
    %vm180 = vcmp.eq.s32.totalorder %v142, %v121
    %vm181 = vcmp.eq.s32.totalorder %v149, %v121
    %vm182 = vcmp.eq.s32.totalorder %v156, %v121
    %vm183 = vcmp.eq.s32.totalorder %v163, %v121
    %vm184 = vcmp.eq.s32.totalorder %v170, %v121
    %vm185 = vcmp.eq.s32.totalorder %v177, %v121
    %v186 = vsel %vm178, 1, 0
    %v187 = vsel %vm179, 1, 0
    %v188 = vsel %vm180, 1, 0
    %v189 = vsel %vm181, 1, 0
    %v190 = vsel %vm182, 1, 0
    %v191 = vsel %vm183, 1, 0
    %v192 = vsel %vm184, 1, 0
    %v193 = vsel %vm185, 1, 0
    %v194 = vcvt.s32.f32 %v186
    %v195 = vcvt.s32.f32 %v187
    %v196 = vcvt.s32.f32 %v188
    %v197 = vcvt.s32.f32 %v189
    %v198 = vcvt.s32.f32 %v190
    %v199 = vcvt.s32.f32 %v191
    %v200 = vcvt.s32.f32 %v192
    %v201 = vcvt.s32.f32 %v193
    %vm202 = vcmask 519168
    %v203 = vsel %vm202, %v194, 0.0
    %v204 = vsel %vm202, %v195, 0.0
    %v205 = vadd.f32 %v203, %v204
    %v206 = vsel %vm202, %v196, 0.0
    %v207 = vadd.f32 %v205, %v206
    %v208 = vsel %vm202, %v197, 0.0
    %v209 = vadd.f32 %v207, %v208
    %v210 = vsel %vm202, %v198, 0.0
    %v211 = vadd.f32 %v209, %v210
    %v212 = vsel %vm202, %v199, 0.0
    %v213 = vadd.f32 %v211, %v212
    %v214 = vsel %vm202, %v200, 0.0
    %v215 = vadd.f32 %v213, %v214
    %v216 = vsel %vm202, %v201, 0.0
    %v217 = vadd.f32 %v215, %v216
    %vm218 = vcmp.ne.s32.totalorder %v121, 0
    %v219 = vsel %vm218, 1, 0
    %v220 = vcvt.s32.f32 %v219
    %v221 = vmul.f32 %v217, %v220
    %v222 = vld [vmem:[%s4] sm:$0xff]
    %v223 = vld [vmem:[%s4 + $0x8] sm:$0xff]
    %v224 = vld [vmem:[%s4 + $0x10] sm:$0xff]
    %v225 = vld [vmem:[%s4 + $0x18] sm:$0xff]
    %v226 = vld [vmem:[%s4 + $0x20] sm:$0xff]
    %v227 = vld [vmem:[%s4 + $0x28] sm:$0xff]
    %v228 = vld [vmem:[%s4 + $0x30] sm:$0xff]
    %v229 = vld [vmem:[%s4 + $0x38] sm:$0xff]
    %238 = vst [vmem:[#allocation1] ss:$2 sm:$0xff] %v194
    %s239 = scalar_lea.vmem [#allocation1], 1
    %240 = vst [vmem:[%s239] ss:$2 sm:$0xff] %v195
    %s241 = scalar_lea.vmem [#allocation1], 16
    %242 = vst [vmem:[%s241] ss:$2 sm:$0xff] %v196
    %s243 = scalar_lea.vmem [#allocation1], 17
    %244 = vst [vmem:[%s243] ss:$2 sm:$0xff] %v197
    %s245 = scalar_lea.vmem [#allocation1], 32
    %246 = vst [vmem:[%s245] ss:$2 sm:$0xff] %v198
    %s247 = scalar_lea.vmem [#allocation1], 33
    %248 = vst [vmem:[%s247] ss:$2 sm:$0xff] %v199
    %s249 = scalar_lea.vmem [#allocation1], 48
    %250 = vst [vmem:[%s249] ss:$2 sm:$0xff] %v200
    %s251 = scalar_lea.vmem [#allocation1], 49
    %252 = vst [vmem:[%s251] ss:$2 sm:$0xff] %v201
    %v253 = vld.sshfl [vmem:[#allocation1] sm:$0xff pattern:$0x75316420]
    %v254 = vld.sshfl [vmem:[#allocation1 + $0x10] sm:$0xff pattern:$0x75316420]
    %v255 = vld.sshfl [vmem:[#allocation1 + $0x20] sm:$0xff pattern:$0x75316420]
    %v256 = vld.sshfl [vmem:[#allocation1 + $0x30] sm:$0xff pattern:$0x75316420]
    %vm257 = vcmask 523264
    %v258 = vsel %vm257, %v253, 0
    %v260 = vsel %vm257, %v254, 0
    %v262 = vsel %vm257, %v255, 0
    %v264 = vsel %vm257, %v256, 0
    %266 = vmatpush.msra.mxu0 0.0
    %267 = vmatpush.msra.mxu0 0.0
    %268 = vmatpush.msra.mxu0 0.0
    %269 = vmatpush.msra.mxu0 0.0
    %270 = vmatpush.msra.mxu0 0.0
    %271 = vmatpush.msra.mxu0 0.0
    %272 = vmatpush.msra.mxu0 0.0
    %273 = vmatpush.msra.mxu0 0.0
    %274 = vmatpush.msra.mxu0 %v229
    %275 = vmatpush.msra.mxu0 %v228
    %276 = vmatpush.msra.mxu0 %v227
    %277 = vmatpush.msra.mxu0 %v226
    %278 = vmatpush.msra.mxu0 %v225
    %279 = vmatpush.msra.mxu0 %v224
    %280 = vmatpush.msra.mxu0 %v223
    %281 = vmatpush.msra.mxu0 %v222
    %282 = vmatmul.f32.gmra.mxu0 %v258
    %v283 = vpop.f32.mrf.mxu0
    %v284 = vadd.f32 0.0, %v283
    %285 = vmatmul.f32.gmra.mxu0 %v260
    %v286 = vpop.f32.mrf.mxu0
    %v287 = vadd.f32 0.0, %v286
    %288 = vmatmul.f32.gmra.mxu0 %v262
    %v289 = vpop.f32.mrf.mxu0
    %v290 = vadd.f32 0.0, %v289
    %291 = vmatmul.f32.gmra.mxu0 %v264
    %v292 = vpop.f32.mrf.mxu0
    %v293 = vadd.f32 0.0, %v292
    %294 = vdwg.mxu0
    %v295 = vld [vmem:[%s5] sm:$0xff]
    %v296 = vld [vmem:[%s5 + $0x8] sm:$0xff]
    %v297 = vld [vmem:[%s5 + $0x10] sm:$0xff]
    %v298 = vld [vmem:[%s5 + $0x18] sm:$0xff]
    %v299 = vld [vmem:[%s5 + $0x20] sm:$0xff]
    %v300 = vld [vmem:[%s5 + $0x28] sm:$0xff]
    %v301 = vld [vmem:[%s5 + $0x30] sm:$0xff]
    %v302 = vld [vmem:[%s5 + $0x38] sm:$0xff]
    %v303 = vld [vmem:[%s5 + $0x40] sm:$0xff]
    %v304 = vld [vmem:[%s5 + $0x48] sm:$0xff]
    %v305 = vld [vmem:[%s5 + $0x50] sm:$0xff]
    %v306 = vld [vmem:[%s5 + $0x58] sm:$0xff]
    %315 = vst [vmem:[#allocation1] ss:$2 sm:$0xff] %v72
    %s316 = scalar_lea.vmem [#allocation1], 1
    %317 = vst [vmem:[%s316] ss:$2 sm:$0xff] %v73
    %s318 = scalar_lea.vmem [#allocation1], 16
    %319 = vst [vmem:[%s318] ss:$2 sm:$0xff] %v74
    %s320 = scalar_lea.vmem [#allocation1], 17
    %321 = vst [vmem:[%s320] ss:$2 sm:$0xff] %v75
    %s322 = scalar_lea.vmem [#allocation1], 32
    %323 = vst [vmem:[%s322] ss:$2 sm:$0xff] %v76
    %s324 = scalar_lea.vmem [#allocation1], 33
    %325 = vst [vmem:[%s324] ss:$2 sm:$0xff] %v77
    %s326 = scalar_lea.vmem [#allocation1], 48
    %327 = vst [vmem:[%s326] ss:$2 sm:$0xff] %v78
    %s328 = scalar_lea.vmem [#allocation1], 49
    %329 = vst [vmem:[%s328] ss:$2 sm:$0xff] %v79
    %v330 = vld.sshfl [vmem:[#allocation1] sm:$0xff pattern:$0x75316420]
    %v331 = vld.sshfl [vmem:[#allocation1 + $0x10] sm:$0xff pattern:$0x75316420]
    %v332 = vld.sshfl [vmem:[#allocation1 + $0x20] sm:$0xff pattern:$0x75316420]
    %v333 = vld.sshfl [vmem:[#allocation1 + $0x30] sm:$0xff pattern:$0x75316420]
    %vm334 = vcmask 261120
    %v335 = vsel %vm334, %v330, 0
    %v337 = vsel %vm334, %v331, 0
    %v339 = vsel %vm334, %v332, 0
    %v341 = vsel %vm334, %v333, 0
    %343 = vmatpush.msra.mxu0 0.0
    %344 = vmatpush.msra.mxu0 0.0
    %345 = vmatpush.msra.mxu0 0.0
    %346 = vmatpush.msra.mxu0 0.0
    %347 = vmatpush.msra.mxu0 0.0
    %348 = vmatpush.msra.mxu0 0.0
    %349 = vmatpush.msra.mxu0 0.0
    %350 = vmatpush.msra.mxu0 0.0
    %351 = vmatpush.msra.mxu0 0.0
    %352 = vmatpush.msra.mxu0 0.0
    %353 = vmatpush.msra.mxu0 0.0
    %354 = vmatpush.msra.mxu0 0.0
    %355 = vmatpush.msra.mxu0 %v304
    %356 = vmatpush.msra.mxu0 %v301
    %357 = vmatpush.msra.mxu0 %v298
    %358 = vmatpush.msra.mxu0 %v295
    %359 = vmatmul.f32.gmra.mxu0 %v335
    %v360 = vpop.f32.mrf.mxu0
    %v361 = vadd.f32 0.0, %v360
    %362 = vmatmul.f32.gmra.mxu0 %v337
    %v363 = vpop.f32.mrf.mxu0
    %v364 = vadd.f32 0.0, %v363
    %365 = vmatmul.f32.gmra.mxu0 %v339
    %v366 = vpop.f32.mrf.mxu0
    %v367 = vadd.f32 0.0, %v366
    %368 = vmatmul.f32.gmra.mxu0 %v341
    %v369 = vpop.f32.mrf.mxu0
    %v370 = vadd.f32 0.0, %v369
    %371 = vdwg.mxu0
    %372 = vmatpush.msra.mxu0 0.0
    %373 = vmatpush.msra.mxu0 0.0
    %374 = vmatpush.msra.mxu0 0.0
    %375 = vmatpush.msra.mxu0 0.0
    %376 = vmatpush.msra.mxu0 0.0
    %377 = vmatpush.msra.mxu0 0.0
    %378 = vmatpush.msra.mxu0 0.0
    %379 = vmatpush.msra.mxu0 0.0
    %380 = vmatpush.msra.mxu0 0.0
    %381 = vmatpush.msra.mxu0 0.0
    %382 = vmatpush.msra.mxu0 0.0
    %383 = vmatpush.msra.mxu0 0.0
    %384 = vmatpush.msra.mxu0 %v305
    %385 = vmatpush.msra.mxu0 %v302
    %386 = vmatpush.msra.mxu0 %v299
    %387 = vmatpush.msra.mxu0 %v296
    %388 = vmatmul.f32.gmra.mxu0 %v335
    %v389 = vpop.f32.mrf.mxu0
    %v390 = vadd.f32 0.0, %v389
    %391 = vmatmul.f32.gmra.mxu0 %v337
    %v392 = vpop.f32.mrf.mxu0
    %v393 = vadd.f32 0.0, %v392
    %394 = vmatmul.f32.gmra.mxu0 %v339
    %v395 = vpop.f32.mrf.mxu0
    %v396 = vadd.f32 0.0, %v395
    %397 = vmatmul.f32.gmra.mxu0 %v341
    %v398 = vpop.f32.mrf.mxu0
    %v399 = vadd.f32 0.0, %v398
    %400 = vdwg.mxu0
    %401 = vmatpush.msra.mxu0 0.0
    %402 = vmatpush.msra.mxu0 0.0
    %403 = vmatpush.msra.mxu0 0.0
    %404 = vmatpush.msra.mxu0 0.0
    %405 = vmatpush.msra.mxu0 0.0
    %406 = vmatpush.msra.mxu0 0.0
    %407 = vmatpush.msra.mxu0 0.0
    %408 = vmatpush.msra.mxu0 0.0
    %409 = vmatpush.msra.mxu0 0.0
    %410 = vmatpush.msra.mxu0 0.0
    %411 = vmatpush.msra.mxu0 0.0
    %412 = vmatpush.msra.mxu0 0.0
    %413 = vmatpush.msra.mxu0 %v306
    %414 = vmatpush.msra.mxu0 %v303
    %415 = vmatpush.msra.mxu0 %v300
    %416 = vmatpush.msra.mxu0 %v297
    %417 = vmatmul.f32.gmra.mxu0 %v335
    %v418 = vpop.f32.mrf.mxu0
    %v419 = vadd.f32 0.0, %v418
    %420 = vmatmul.f32.gmra.mxu0 %v337
    %v421 = vpop.f32.mrf.mxu0
    %v422 = vadd.f32 0.0, %v421
    %423 = vmatmul.f32.gmra.mxu0 %v339
    %v424 = vpop.f32.mrf.mxu0
    %v425 = vadd.f32 0.0, %v424
    %426 = vmatmul.f32.gmra.mxu0 %v341
    %v427 = vpop.f32.mrf.mxu0
    %v428 = vadd.f32 0.0, %v427
    %429 = vdwg.mxu0
    %v442 = vrot.slane %v390, 4
    %v443 = vrot.slane %v393, 4
    %v444 = vrot.slane %v396, 4
    %v445 = vrot.slane %v399, 4
    %vm446 = vcmask 1043456
    %v447 = vsel %vm446, %v361, %v442
    %v448 = vsel %vm446, %v442, %v361
    %v449 = vrot.slane %v448, 4
    %v450 = vrot.slane %v419, 4
    %v451 = vsel %vm446, %v364, %v443
    %v452 = vsel %vm446, %v443, %v364
    %v453 = vrot.slane %v452, 4
    %v454 = vrot.slane %v422, 4
    %v455 = vsel %vm446, %v367, %v444
    %v456 = vsel %vm446, %v444, %v367
    %v457 = vrot.slane %v456, 4
    %v458 = vrot.slane %v425, 4
    %v459 = vsel %vm446, %v370, %v445
    %v460 = vsel %vm446, %v445, %v370
    %v461 = vrot.slane %v460, 4
    %v462 = vrot.slane %v428, 4
    %v475 = vld [vmem:[%s6] sm:$0xff]
    %v476 = vld [vmem:[%s6 + $0x8] sm:$0xff]
    %v477 = vld [vmem:[%s6 + $0x10] sm:$0xff]
    %v478 = vld [vmem:[%s6 + $0x18] sm:$0xff]
    %v479 = vld [vmem:[%s6 + $0x20] sm:$0xff]
    %v480 = vld [vmem:[%s6 + $0x28] sm:$0xff]
    %v481 = vld [vmem:[%s6 + $0x30] sm:$0xff]
    %v482 = vld [vmem:[%s6 + $0x38] sm:$0xff]
    %v483 = vld [vmem:[%s6 + $0x40] sm:$0xff]
    %v484 = vld [vmem:[%s6 + $0x48] sm:$0xff]
    %v485 = vld [vmem:[%s6 + $0x50] sm:$0xff]
    %v486 = vld [vmem:[%s6 + $0x58] sm:$0xff]
    %v488 = vsel %vm334, %v284, 0
    %v491 = vsel %vm334, %v287, 0
    %v494 = vsel %vm334, %v290, 0
    %v497 = vsel %vm334, %v293, 0
    %499 = vmatpush.msra.mxu0 0.0
    %500 = vmatpush.msra.mxu0 0.0
    %501 = vmatpush.msra.mxu0 0.0
    %502 = vmatpush.msra.mxu0 0.0
    %503 = vmatpush.msra.mxu0 0.0
    %504 = vmatpush.msra.mxu0 0.0
    %505 = vmatpush.msra.mxu0 0.0
    %506 = vmatpush.msra.mxu0 0.0
    %507 = vmatpush.msra.mxu0 0.0
    %508 = vmatpush.msra.mxu0 0.0
    %509 = vmatpush.msra.mxu0 0.0
    %510 = vmatpush.msra.mxu0 0.0
    %511 = vmatpush.msra.mxu0 %v484
    %512 = vmatpush.msra.mxu0 %v481
    %513 = vmatpush.msra.mxu0 %v478
    %514 = vmatpush.msra.mxu0 %v475
    %515 = vmatmul.f32.gmra.mxu0 %v488
    %v516 = vpop.f32.mrf.mxu0
    %v517 = vadd.f32 0.0, %v516
    %518 = vmatmul.f32.gmra.mxu0 %v491
    %v519 = vpop.f32.mrf.mxu0
    %v520 = vadd.f32 0.0, %v519
    %521 = vmatmul.f32.gmra.mxu0 %v494
    %v522 = vpop.f32.mrf.mxu0
    %v523 = vadd.f32 0.0, %v522
    %524 = vmatmul.f32.gmra.mxu0 %v497
    %v525 = vpop.f32.mrf.mxu0
    %v526 = vadd.f32 0.0, %v525
    %527 = vdwg.mxu0
    %528 = vmatpush.msra.mxu0 0.0
    %529 = vmatpush.msra.mxu0 0.0
    %530 = vmatpush.msra.mxu0 0.0
    %531 = vmatpush.msra.mxu0 0.0
    %532 = vmatpush.msra.mxu0 0.0
    %533 = vmatpush.msra.mxu0 0.0
    %534 = vmatpush.msra.mxu0 0.0
    %535 = vmatpush.msra.mxu0 0.0
    %536 = vmatpush.msra.mxu0 0.0
    %537 = vmatpush.msra.mxu0 0.0
    %538 = vmatpush.msra.mxu0 0.0
    %539 = vmatpush.msra.mxu0 0.0
    %540 = vmatpush.msra.mxu0 %v485
    %541 = vmatpush.msra.mxu0 %v482
    %542 = vmatpush.msra.mxu0 %v479
    %543 = vmatpush.msra.mxu0 %v476
    %544 = vmatmul.f32.gmra.mxu0 %v488
    %v545 = vpop.f32.mrf.mxu0
    %v546 = vadd.f32 0.0, %v545
    %547 = vmatmul.f32.gmra.mxu0 %v491
    %v548 = vpop.f32.mrf.mxu0
    %v549 = vadd.f32 0.0, %v548
    %550 = vmatmul.f32.gmra.mxu0 %v494
    %v551 = vpop.f32.mrf.mxu0
    %v552 = vadd.f32 0.0, %v551
    %553 = vmatmul.f32.gmra.mxu0 %v497
    %v554 = vpop.f32.mrf.mxu0
    %v555 = vadd.f32 0.0, %v554
    %556 = vdwg.mxu0
    %557 = vmatpush.msra.mxu0 0.0
    %558 = vmatpush.msra.mxu0 0.0
    %559 = vmatpush.msra.mxu0 0.0
    %560 = vmatpush.msra.mxu0 0.0
    %561 = vmatpush.msra.mxu0 0.0
    %562 = vmatpush.msra.mxu0 0.0
    %563 = vmatpush.msra.mxu0 0.0
    %564 = vmatpush.msra.mxu0 0.0
    %565 = vmatpush.msra.mxu0 0.0
    %566 = vmatpush.msra.mxu0 0.0
    %567 = vmatpush.msra.mxu0 0.0
    %568 = vmatpush.msra.mxu0 0.0
    %569 = vmatpush.msra.mxu0 %v486
    %570 = vmatpush.msra.mxu0 %v483
    %571 = vmatpush.msra.mxu0 %v480
    %572 = vmatpush.msra.mxu0 %v477
    %573 = vmatmul.f32.gmra.mxu0 %v488
    %v574 = vpop.f32.mrf.mxu0
    %v575 = vadd.f32 0.0, %v574
    %576 = vmatmul.f32.gmra.mxu0 %v491
    %v577 = vpop.f32.mrf.mxu0
    %v578 = vadd.f32 0.0, %v577
    %579 = vmatmul.f32.gmra.mxu0 %v494
    %v580 = vpop.f32.mrf.mxu0
    %v581 = vadd.f32 0.0, %v580
    %582 = vmatmul.f32.gmra.mxu0 %v497
    %v583 = vpop.f32.mrf.mxu0
    %v584 = vadd.f32 0.0, %v583
    %585 = vdwg.mxu0
    %v598 = vrot.slane %v546, 4
    %v599 = vrot.slane %v549, 4
    %v600 = vrot.slane %v552, 4
    %v601 = vrot.slane %v555, 4
    %v602 = vsel %vm446, %v517, %v598
    %v603 = vsel %vm446, %v598, %v517
    %v604 = vrot.slane %v603, 4
    %v605 = vrot.slane %v575, 4
    %v606 = vsel %vm446, %v520, %v599
    %v607 = vsel %vm446, %v599, %v520
    %v608 = vrot.slane %v607, 4
    %v609 = vrot.slane %v578, 4
    %v610 = vsel %vm446, %v523, %v600
    %v611 = vsel %vm446, %v600, %v523
    %v612 = vrot.slane %v611, 4
    %v613 = vrot.slane %v581, 4
    %v614 = vsel %vm446, %v526, %v601
    %v615 = vsel %vm446, %v601, %v526
    %v616 = vrot.slane %v615, 4
    %v617 = vrot.slane %v584, 4
    %v630 = vadd.f32 %v447, %v602
    %v631 = vadd.f32 %v419, %v575
    %v632 = vadd.f32 %v449, %v604
    %v633 = vadd.f32 %v450, %v605
    %v634 = vadd.f32 %v451, %v606
    %v635 = vadd.f32 %v422, %v578
    %v636 = vadd.f32 %v453, %v608
    %v637 = vadd.f32 %v454, %v609
    %v638 = vadd.f32 %v455, %v610
    %v639 = vadd.f32 %v425, %v581
    %v640 = vadd.f32 %v457, %v612
    %v641 = vadd.f32 %v458, %v613
    %v642 = vadd.f32 %v459, %v614
    %v643 = vadd.f32 %v428, %v584
    %v644 = vadd.f32 %v461, %v616
    %v645 = vadd.f32 %v462, %v617
    %v646 = vld [vmem:[%s8] sm:$0x7]
    %v648 = vperm.slane %v646, 0
    %v649 = vperm.slane %v646, 1
    %v650 = vperm.slane %v646, 2
    %v652 = vrot.slane %v649, 4
    %v653 = vsel %vm446, %v648, %v652
    %v655 = vadd.f32 %v630, %v653
    %v656 = vadd.f32 %v631, %v650
    %v657 = vadd.f32 %v632, %v653
    %v658 = vadd.f32 %v633, %v650
    %v659 = vadd.f32 %v634, %v653
    %v660 = vadd.f32 %v635, %v650
    %v661 = vadd.f32 %v636, %v653
    %v662 = vadd.f32 %v637, %v650
    %v663 = vadd.f32 %v638, %v653
    %v664 = vadd.f32 %v639, %v650
    %v665 = vadd.f32 %v640, %v653
    %v666 = vadd.f32 %v641, %v650
    %v667 = vadd.f32 %v642, %v653
    %v668 = vadd.f32 %v643, %v650
    %v669 = vadd.f32 %v644, %v653
    %v670 = vadd.f32 %v645, %v650
    %v671 = vld [vmem:[%s7] sm:$0xff]
    %v672 = vld [vmem:[%s7 + $0x8] sm:$0xff]
    %v673 = vld [vmem:[%s7 + $0x10] sm:$0xff]
    %v674 = vld [vmem:[%s7 + $0x18] sm:$0xff]
    %v675 = vld [vmem:[%s7 + $0x20] sm:$0xff]
    %v676 = vld [vmem:[%s7 + $0x28] sm:$0xff]
    %v677 = vld [vmem:[%s7 + $0x30] sm:$0xff]
    %v678 = vld [vmem:[%s7 + $0x38] sm:$0xff]
    %v679 = vld [vmem:[%s7 + $0x40] sm:$0xff]
    %v680 = vld [vmem:[%s7 + $0x48] sm:$0xff]
    %v681 = vld [vmem:[%s7 + $0x50] sm:$0xff]
    %v682 = vld [vmem:[%s7 + $0x58] sm:$0xff]
    %v683 = vld [vmem:[%s7 + $0x60] sm:$0xff]
    %v684 = vld [vmem:[%s7 + $0x68] sm:$0xff]
    %v685 = vld [vmem:[%s7 + $0x70] sm:$0xff]
    %v686 = vld [vmem:[%s7 + $0x78] sm:$0xff]
    %v687 = vld [vmem:[%s7 + $0x80] sm:$0xff]
    %v688 = vld [vmem:[%s7 + $0x88] sm:$0xff]
    %v689 = vld [vmem:[%s7 + $0x90] sm:$0xff]
    %v690 = vld [vmem:[%s7 + $0x98] sm:$0xff]
    %v691 = vld [vmem:[%s7 + $0xa0] sm:$0xff]
    %v692 = vld [vmem:[%s7 + $0xa8] sm:$0xff]
    %v693 = vld [vmem:[%s7 + $0xb0] sm:$0xff]
    %v694 = vld [vmem:[%s7 + $0xb8] sm:$0xff]
    %v695 = vld [vmem:[%s7 + $0xc0] sm:$0xff]
    %v696 = vld [vmem:[%s7 + $0xc8] sm:$0xff]
    %v697 = vld [vmem:[%s7 + $0xd0] sm:$0xff]
    %v698 = vld [vmem:[%s7 + $0xd8] sm:$0xff]
    %v699 = vld [vmem:[%s7 + $0xe0] sm:$0xff]
    %v700 = vld [vmem:[%s7 + $0xe8] sm:$0xff]
    %v701 = vld [vmem:[%s7 + $0xf0] sm:$0xff]
    %v702 = vld [vmem:[%s7 + $0xf8] sm:$0xff]
    %v703 = vld [vmem:[%s7 + $0x100] sm:$0xff]
    %v704 = vld [vmem:[%s7 + $0x108] sm:$0xff]
    %v705 = vld [vmem:[%s7 + $0x110] sm:$0xff]
    %v706 = vld [vmem:[%s7 + $0x118] sm:$0xff]
    %v707 = vld [vmem:[%s7 + $0x120] sm:$0xff]
    %v708 = vld [vmem:[%s7 + $0x128] sm:$0xff]
    %v709 = vld [vmem:[%s7 + $0x130] sm:$0xff]
    %v710 = vld [vmem:[%s7 + $0x138] sm:$0xff]
    %v711 = vld [vmem:[%s7 + $0x140] sm:$0xff]
    %v712 = vld [vmem:[%s7 + $0x148] sm:$0xff]
    %v713 = vld [vmem:[%s7 + $0x150] sm:$0xff]
    %v714 = vld [vmem:[%s7 + $0x158] sm:$0xff]
    %v715 = vld [vmem:[%s7 + $0x160] sm:$0xff]
    %v716 = vld [vmem:[%s7 + $0x168] sm:$0xff]
    %v717 = vld [vmem:[%s7 + $0x170] sm:$0xff]
    %v718 = vld [vmem:[%s7 + $0x178] sm:$0xff]
    %v719 = vld [vmem:[%s9] sm:$0x1]
    %v721 = vperm.slane %v719, 0
    %723 = vmatpush.msra.mxu0 %v716
    %724 = vmatpush.msra.mxu0 %v713
    %725 = vmatpush.msra.mxu0 %v710
    %726 = vmatpush.msra.mxu0 %v707
    %727 = vmatpush.msra.mxu0 %v704
    %728 = vmatpush.msra.mxu0 %v701
    %729 = vmatpush.msra.mxu0 %v698
    %730 = vmatpush.msra.mxu0 %v695
    %731 = vmatpush.msra.mxu0 %v692
    %732 = vmatpush.msra.mxu0 %v689
    %733 = vmatpush.msra.mxu0 %v686
    %734 = vmatpush.msra.mxu0 %v683
    %735 = vmatpush.msra.mxu0 %v680
    %736 = vmatpush.msra.mxu0 %v677
    %737 = vmatpush.msra.mxu0 %v674
    %738 = vmatpush.msra.mxu0 %v671
    %739 = vmatmul.f32.gmra.mxu0 0.0
    %v740 = vpop.f32.mrf.mxu0
    %v741 = vadd.f32 0.0, %v740
    %742 = vdwg.mxu0
    %743 = vmatpush.msra.mxu0 %v717
    %744 = vmatpush.msra.mxu0 %v714
    %745 = vmatpush.msra.mxu0 %v711
    %746 = vmatpush.msra.mxu0 %v708
    %747 = vmatpush.msra.mxu0 %v705
    %748 = vmatpush.msra.mxu0 %v702
    %749 = vmatpush.msra.mxu0 %v699
    %750 = vmatpush.msra.mxu0 %v696
    %751 = vmatpush.msra.mxu0 %v693
    %752 = vmatpush.msra.mxu0 %v690
    %753 = vmatpush.msra.mxu0 %v687
    %754 = vmatpush.msra.mxu0 %v684
    %755 = vmatpush.msra.mxu0 %v681
    %756 = vmatpush.msra.mxu0 %v678
    %757 = vmatpush.msra.mxu0 %v675
    %758 = vmatpush.msra.mxu0 %v672
    %759 = vmatmul.f32.gmra.mxu0 0.0
    %v760 = vpop.f32.mrf.mxu0
    %v761 = vadd.f32 0.0, %v760
    %762 = vdwg.mxu0
    %763 = vmatpush.msra.mxu0 %v718
    %764 = vmatpush.msra.mxu0 %v715
    %765 = vmatpush.msra.mxu0 %v712
    %766 = vmatpush.msra.mxu0 %v709
    %767 = vmatpush.msra.mxu0 %v706
    %768 = vmatpush.msra.mxu0 %v703
    %769 = vmatpush.msra.mxu0 %v700
    %770 = vmatpush.msra.mxu0 %v697
    %771 = vmatpush.msra.mxu0 %v694
    %772 = vmatpush.msra.mxu0 %v691
    %773 = vmatpush.msra.mxu0 %v688
    %774 = vmatpush.msra.mxu0 %v685
    %775 = vmatpush.msra.mxu0 %v682
    %776 = vmatpush.msra.mxu0 %v679
    %777 = vmatpush.msra.mxu0 %v676
    %778 = vmatpush.msra.mxu0 %v673
    %779 = vmatmul.f32.gmra.mxu0 0.0
    %v780 = vpop.f32.mrf.mxu0
    %v781 = vadd.f32 0.0, %v780
    %782 = vdwg.mxu0
    %v783 = vadd.f32 %v655, %v741
    %v784 = vxor.u32 %v783, 2147483648
    %v785 = vmul.f32 %v784, 1.442695
    %v786 = vpow.pop %v785
    %v787 = vadd.f32 %v786, 1.0
    %v788 = vrcp.pop %v787
    %v789 = vmul.f32 %v787, %v788
    %v790 = vsub.f32 1.0, %v789
    %v791 = vmul.f32 %v788, %v790
    %v792 = vadd.f32 %v788, %v791
    %vm793 = vweird.f32 %v787
    %vm794 = vweird.f32 %v788
    %vm795 = vmor %vm793, %vm794
    %v796 = vsel %vm795, %v788, %v792
    %v797 = vand.u32 2147483647, %v787
    %vm798 = vcmp.eq.f32.partialorder %v797, 8.507059e+37
    %v799 = vand.u32 %v787, 2147483648
    %v800 = vor.u32 1.1754944e-38, %v799
    %v801 = vsel %vm798, %v800, %v796
    %v802 = vmul.f32 1.0, %v801
    %v804 = vrot.slane %v655, 4
    %v806 = vadd.f32 %v804, %v761
    %v807 = vxor.u32 %v806, 2147483648
    %v808 = vmul.f32 %v807, 1.442695
    %v809 = vpow.pop %v808
    %v810 = vadd.f32 %v809, 1.0
    %v811 = vrcp.pop %v810
    %v812 = vmul.f32 %v810, %v811
    %v813 = vsub.f32 1.0, %v812
    %v814 = vmul.f32 %v811, %v813
    %v815 = vadd.f32 %v811, %v814
    %vm816 = vweird.f32 %v810
    %vm817 = vweird.f32 %v811
    %vm818 = vmor %vm816, %vm817
    %v819 = vsel %vm818, %v811, %v815
    %v820 = vand.u32 2147483647, %v810
    %vm821 = vcmp.eq.f32.partialorder %v820, 8.507059e+37
    %v822 = vand.u32 %v810, 2147483648
    %v823 = vor.u32 1.1754944e-38, %v822
    %v824 = vsel %vm821, %v823, %v819
    %v825 = vmul.f32 1.0, %v824
    %v826 = vadd.f32 %v781, %v721
    %v827 = vmul.f32 %v802, %v826
    %v828 = vadd.f32 %v656, %v827
    %v829 = vtanh.pop %v828
    %v830 = vsub.f32 1.0, %v825
    %v831 = vmul.f32 %v830, %v829
    %v832 = vmul.f32 %v825, 0.0
    %v833 = vadd.f32 %v831, %v832
    %834 = vst [vmem:[#allocation2] sm:$0xf] %v833
    %835 = vmatpush.msra.mxu0 %v716
    %836 = vmatpush.msra.mxu0 %v713
    %837 = vmatpush.msra.mxu0 %v710
    %838 = vmatpush.msra.mxu0 %v707
    %839 = vmatpush.msra.mxu0 %v704
    %840 = vmatpush.msra.mxu0 %v701
    %841 = vmatpush.msra.mxu0 %v698
    %842 = vmatpush.msra.mxu0 %v695
    %843 = vmatpush.msra.mxu0 %v692
    %844 = vmatpush.msra.mxu0 %v689
    %845 = vmatpush.msra.mxu0 %v686
    %846 = vmatpush.msra.mxu0 %v683
    %847 = vmatpush.msra.mxu0 %v680
    %848 = vmatpush.msra.mxu0 %v677
    %849 = vmatpush.msra.mxu0 %v674
    %850 = vmatpush.msra.mxu0 %v671
    %851 = vmatmul.f32.gmra.mxu0 %v833
    %v852 = vpop.f32.mrf.mxu0
    %v853 = vadd.f32 0.0, %v852
    %854 = vdwg.mxu0
    %855 = vmatpush.msra.mxu0 %v717
    %856 = vmatpush.msra.mxu0 %v714
    %857 = vmatpush.msra.mxu0 %v711
    %858 = vmatpush.msra.mxu0 %v708
    %859 = vmatpush.msra.mxu0 %v705
    %860 = vmatpush.msra.mxu0 %v702
    %861 = vmatpush.msra.mxu0 %v699
    %862 = vmatpush.msra.mxu0 %v696
    %863 = vmatpush.msra.mxu0 %v693
    %864 = vmatpush.msra.mxu0 %v690
    %865 = vmatpush.msra.mxu0 %v687
    %866 = vmatpush.msra.mxu0 %v684
    %867 = vmatpush.msra.mxu0 %v681
    %868 = vmatpush.msra.mxu0 %v678
    %869 = vmatpush.msra.mxu0 %v675
    %870 = vmatpush.msra.mxu0 %v672
    %871 = vmatmul.f32.gmra.mxu0 %v833
    %v872 = vpop.f32.mrf.mxu0
    %v873 = vadd.f32 0.0, %v872
    %874 = vdwg.mxu0
    %875 = vmatpush.msra.mxu0 %v718
    %876 = vmatpush.msra.mxu0 %v715
    %877 = vmatpush.msra.mxu0 %v712
    %878 = vmatpush.msra.mxu0 %v709
    %879 = vmatpush.msra.mxu0 %v706
    %880 = vmatpush.msra.mxu0 %v703
    %881 = vmatpush.msra.mxu0 %v700
    %882 = vmatpush.msra.mxu0 %v697
    %883 = vmatpush.msra.mxu0 %v694
    %884 = vmatpush.msra.mxu0 %v691
    %885 = vmatpush.msra.mxu0 %v688
    %886 = vmatpush.msra.mxu0 %v685
    %887 = vmatpush.msra.mxu0 %v682
    %888 = vmatpush.msra.mxu0 %v679
    %889 = vmatpush.msra.mxu0 %v676
    %890 = vmatpush.msra.mxu0 %v673
    %891 = vmatmul.f32.gmra.mxu0 %v833
    %v892 = vpop.f32.mrf.mxu0
    %v893 = vadd.f32 0.0, %v892
    %894 = vdwg.mxu0
    %v895 = vadd.f32 %v657, %v853
    %v896 = vxor.u32 %v895, 2147483648
    %v897 = vmul.f32 %v896, 1.442695
    %v898 = vpow.pop %v897
    %v899 = vadd.f32 %v898, 1.0
    %v900 = vrcp.pop %v899
    %v901 = vmul.f32 %v899, %v900
    %v902 = vsub.f32 1.0, %v901
    %v903 = vmul.f32 %v900, %v902
    %v904 = vadd.f32 %v900, %v903
    %vm905 = vweird.f32 %v899
    %vm906 = vweird.f32 %v900
    %vm907 = vmor %vm905, %vm906
    %v908 = vsel %vm907, %v900, %v904
    %v909 = vand.u32 2147483647, %v899
    %vm910 = vcmp.eq.f32.partialorder %v909, 8.507059e+37
    %v911 = vand.u32 %v899, 2147483648
    %v912 = vor.u32 1.1754944e-38, %v911
    %v913 = vsel %vm910, %v912, %v908
    %v914 = vmul.f32 1.0, %v913
    %v916 = vrot.slane %v657, 4
    %v918 = vadd.f32 %v916, %v873
    %v919 = vxor.u32 %v918, 2147483648
    %v920 = vmul.f32 %v919, 1.442695
    %v921 = vpow.pop %v920
    %v922 = vadd.f32 %v921, 1.0
    %v923 = vrcp.pop %v922
    %v924 = vmul.f32 %v922, %v923
    %v925 = vsub.f32 1.0, %v924
    %v926 = vmul.f32 %v923, %v925
    %v927 = vadd.f32 %v923, %v926
    %vm928 = vweird.f32 %v922
    %vm929 = vweird.f32 %v923
    %vm930 = vmor %vm928, %vm929
    %v931 = vsel %vm930, %v923, %v927
    %v932 = vand.u32 2147483647, %v922
    %vm933 = vcmp.eq.f32.partialorder %v932, 8.507059e+37
    %v934 = vand.u32 %v922, 2147483648
    %v935 = vor.u32 1.1754944e-38, %v934
    %v936 = vsel %vm933, %v935, %v931
    %v937 = vmul.f32 1.0, %v936
    %v938 = vadd.f32 %v893, %v721
    %v939 = vmul.f32 %v914, %v938
    %v940 = vadd.f32 %v658, %v939
    %v941 = vtanh.pop %v940
    %v942 = vsub.f32 1.0, %v937
    %v943 = vmul.f32 %v942, %v941
    %v944 = vmul.f32 %v937, %v833
    %v945 = vadd.f32 %v943, %v944
    %s946 = scalar_lea.vmem [#allocation2], 4
    %947 = vst [vmem:[%s946] sm:$0xf] %v945
    %948 = vmatpush.msra.mxu0 %v716
    %949 = vmatpush.msra.mxu0 %v713
    %950 = vmatpush.msra.mxu0 %v710
    %951 = vmatpush.msra.mxu0 %v707
    %952 = vmatpush.msra.mxu0 %v704
    %953 = vmatpush.msra.mxu0 %v701
    %954 = vmatpush.msra.mxu0 %v698
    %955 = vmatpush.msra.mxu0 %v695
    %956 = vmatpush.msra.mxu0 %v692
    %957 = vmatpush.msra.mxu0 %v689
    %958 = vmatpush.msra.mxu0 %v686
    %959 = vmatpush.msra.mxu0 %v683
    %960 = vmatpush.msra.mxu0 %v680
    %961 = vmatpush.msra.mxu0 %v677
    %962 = vmatpush.msra.mxu0 %v674
    %963 = vmatpush.msra.mxu0 %v671
    %964 = vmatmul.f32.gmra.mxu0 %v945
    %v965 = vpop.f32.mrf.mxu0
    %v966 = vadd.f32 0.0, %v965
    %967 = vdwg.mxu0
    %968 = vmatpush.msra.mxu0 %v717
    %969 = vmatpush.msra.mxu0 %v714
    %970 = vmatpush.msra.mxu0 %v711
    %971 = vmatpush.msra.mxu0 %v708
    %972 = vmatpush.msra.mxu0 %v705
    %973 = vmatpush.msra.mxu0 %v702
    %974 = vmatpush.msra.mxu0 %v699
    %975 = vmatpush.msra.mxu0 %v696
    %976 = vmatpush.msra.mxu0 %v693
    %977 = vmatpush.msra.mxu0 %v690
    %978 = vmatpush.msra.mxu0 %v687
    %979 = vmatpush.msra.mxu0 %v684
    %980 = vmatpush.msra.mxu0 %v681
    %981 = vmatpush.msra.mxu0 %v678
    %982 = vmatpush.msra.mxu0 %v675
    %983 = vmatpush.msra.mxu0 %v672
    %984 = vmatmul.f32.gmra.mxu0 %v945
    %v985 = vpop.f32.mrf.mxu0
    %v986 = vadd.f32 0.0, %v985
    %987 = vdwg.mxu0
    %988 = vmatpush.msra.mxu0 %v718
    %989 = vmatpush.msra.mxu0 %v715
    %990 = vmatpush.msra.mxu0 %v712
    %991 = vmatpush.msra.mxu0 %v709
    %992 = vmatpush.msra.mxu0 %v706
    %993 = vmatpush.msra.mxu0 %v703
    %994 = vmatpush.msra.mxu0 %v700
    %995 = vmatpush.msra.mxu0 %v697
    %996 = vmatpush.msra.mxu0 %v694
    %997 = vmatpush.msra.mxu0 %v691
    %998 = vmatpush.msra.mxu0 %v688
    %999 = vmatpush.msra.mxu0 %v685
    %1000 = vmatpush.msra.mxu0 %v682
    %1001 = vmatpush.msra.mxu0 %v679
    %1002 = vmatpush.msra.mxu0 %v676
    %1003 = vmatpush.msra.mxu0 %v673
    %1004 = vmatmul.f32.gmra.mxu0 %v945
    %v1005 = vpop.f32.mrf.mxu0
    %v1006 = vadd.f32 0.0, %v1005
    %1007 = vdwg.mxu0
    %v1008 = vadd.f32 %v659, %v966
    %v1009 = vxor.u32 %v1008, 2147483648
    %v1010 = vmul.f32 %v1009, 1.442695
    %v1011 = vpow.pop %v1010
    %v1012 = vadd.f32 %v1011, 1.0
    %v1013 = vrcp.pop %v1012
    %v1014 = vmul.f32 %v1012, %v1013
    %v1015 = vsub.f32 1.0, %v1014
    %v1016 = vmul.f32 %v1013, %v1015
    %v1017 = vadd.f32 %v1013, %v1016
    %vm1018 = vweird.f32 %v1012
    %vm1019 = vweird.f32 %v1013
    %vm1020 = vmor %vm1018, %vm1019
    %v1021 = vsel %vm1020, %v1013, %v1017
    %v1022 = vand.u32 2147483647, %v1012
    %vm1023 = vcmp.eq.f32.partialorder %v1022, 8.507059e+37
    %v1024 = vand.u32 %v1012, 2147483648
    %v1025 = vor.u32 1.1754944e-38, %v1024
    %v1026 = vsel %vm1023, %v1025, %v1021
    %v1027 = vmul.f32 1.0, %v1026
    %v1029 = vrot.slane %v659, 4
    %v1031 = vadd.f32 %v1029, %v986
    %v1032 = vxor.u32 %v1031, 2147483648
    %v1033 = vmul.f32 %v1032, 1.442695
    %v1034 = vpow.pop %v1033
    %v1035 = vadd.f32 %v1034, 1.0
    %v1036 = vrcp.pop %v1035
    %v1037 = vmul.f32 %v1035, %v1036
    %v1038 = vsub.f32 1.0, %v1037
    %v1039 = vmul.f32 %v1036, %v1038
    %v1040 = vadd.f32 %v1036, %v1039
    %vm1041 = vweird.f32 %v1035
    %vm1042 = vweird.f32 %v1036
    %vm1043 = vmor %vm1041, %vm1042
    %v1044 = vsel %vm1043, %v1036, %v1040
    %v1045 = vand.u32 2147483647, %v1035
    %vm1046 = vcmp.eq.f32.partialorder %v1045, 8.507059e+37
    %v1047 = vand.u32 %v1035, 2147483648
    %v1048 = vor.u32 1.1754944e-38, %v1047
    %v1049 = vsel %vm1046, %v1048, %v1044
    %v1050 = vmul.f32 1.0, %v1049
    %v1051 = vadd.f32 %v1006, %v721
    %v1052 = vmul.f32 %v1027, %v1051
    %v1053 = vadd.f32 %v660, %v1052
    %v1054 = vtanh.pop %v1053
    %v1055 = vsub.f32 1.0, %v1050
    %v1056 = vmul.f32 %v1055, %v1054
    %v1057 = vmul.f32 %v1050, %v945
    %v1058 = vadd.f32 %v1056, %v1057
    %s1059 = scalar_lea.vmem [#allocation2], 8
    %1060 = vst [vmem:[%s1059] sm:$0xf] %v1058
    %1061 = vmatpush.msra.mxu0 %v716
    %1062 = vmatpush.msra.mxu0 %v713
    %1063 = vmatpush.msra.mxu0 %v710
    %1064 = vmatpush.msra.mxu0 %v707
    %1065 = vmatpush.msra.mxu0 %v704
    %1066 = vmatpush.msra.mxu0 %v701
    %1067 = vmatpush.msra.mxu0 %v698
    %1068 = vmatpush.msra.mxu0 %v695
    %1069 = vmatpush.msra.mxu0 %v692
    %1070 = vmatpush.msra.mxu0 %v689
    %1071 = vmatpush.msra.mxu0 %v686
    %1072 = vmatpush.msra.mxu0 %v683
    %1073 = vmatpush.msra.mxu0 %v680
    %1074 = vmatpush.msra.mxu0 %v677
    %1075 = vmatpush.msra.mxu0 %v674
    %1076 = vmatpush.msra.mxu0 %v671
    %1077 = vmatmul.f32.gmra.mxu0 %v1058
    %v1078 = vpop.f32.mrf.mxu0
    %v1079 = vadd.f32 0.0, %v1078
    %1080 = vdwg.mxu0
    %1081 = vmatpush.msra.mxu0 %v717
    %1082 = vmatpush.msra.mxu0 %v714
    %1083 = vmatpush.msra.mxu0 %v711
    %1084 = vmatpush.msra.mxu0 %v708
    %1085 = vmatpush.msra.mxu0 %v705
    %1086 = vmatpush.msra.mxu0 %v702
    %1087 = vmatpush.msra.mxu0 %v699
    %1088 = vmatpush.msra.mxu0 %v696
    %1089 = vmatpush.msra.mxu0 %v693
    %1090 = vmatpush.msra.mxu0 %v690
    %1091 = vmatpush.msra.mxu0 %v687
    %1092 = vmatpush.msra.mxu0 %v684
    %1093 = vmatpush.msra.mxu0 %v681
    %1094 = vmatpush.msra.mxu0 %v678
    %1095 = vmatpush.msra.mxu0 %v675
    %1096 = vmatpush.msra.mxu0 %v672
    %1097 = vmatmul.f32.gmra.mxu0 %v1058
    %v1098 = vpop.f32.mrf.mxu0
    %v1099 = vadd.f32 0.0, %v1098
    %1100 = vdwg.mxu0
    %1101 = vmatpush.msra.mxu0 %v718
    %1102 = vmatpush.msra.mxu0 %v715
    %1103 = vmatpush.msra.mxu0 %v712
    %1104 = vmatpush.msra.mxu0 %v709
    %1105 = vmatpush.msra.mxu0 %v706
    %1106 = vmatpush.msra.mxu0 %v703
    %1107 = vmatpush.msra.mxu0 %v700
    %1108 = vmatpush.msra.mxu0 %v697
    %1109 = vmatpush.msra.mxu0 %v694
    %1110 = vmatpush.msra.mxu0 %v691
    %1111 = vmatpush.msra.mxu0 %v688
    %1112 = vmatpush.msra.mxu0 %v685
    %1113 = vmatpush.msra.mxu0 %v682
    %1114 = vmatpush.msra.mxu0 %v679
    %1115 = vmatpush.msra.mxu0 %v676
    %1116 = vmatpush.msra.mxu0 %v673
    %1117 = vmatmul.f32.gmra.mxu0 %v1058
    %v1118 = vpop.f32.mrf.mxu0
    %v1119 = vadd.f32 0.0, %v1118
    %1120 = vdwg.mxu0
    %v1121 = vadd.f32 %v661, %v1079
    %v1122 = vxor.u32 %v1121, 2147483648
    %v1123 = vmul.f32 %v1122, 1.442695
    %v1124 = vpow.pop %v1123
    %v1125 = vadd.f32 %v1124, 1.0
    %v1126 = vrcp.pop %v1125
    %v1127 = vmul.f32 %v1125, %v1126
    %v1128 = vsub.f32 1.0, %v1127
    %v1129 = vmul.f32 %v1126, %v1128
    %v1130 = vadd.f32 %v1126, %v1129
    %vm1131 = vweird.f32 %v1125
    %vm1132 = vweird.f32 %v1126
    %vm1133 = vmor %vm1131, %vm1132
    %v1134 = vsel %vm1133, %v1126, %v1130
    %v1135 = vand.u32 2147483647, %v1125
    %vm1136 = vcmp.eq.f32.partialorder %v1135, 8.507059e+37
    %v1137 = vand.u32 %v1125, 2147483648
    %v1138 = vor.u32 1.1754944e-38, %v1137
    %v1139 = vsel %vm1136, %v1138, %v1134
    %v1140 = vmul.f32 1.0, %v1139
    %v1142 = vrot.slane %v661, 4
    %v1144 = vadd.f32 %v1142, %v1099
    %v1145 = vxor.u32 %v1144, 2147483648
    %v1146 = vmul.f32 %v1145, 1.442695
    %v1147 = vpow.pop %v1146
    %v1148 = vadd.f32 %v1147, 1.0
    %v1149 = vrcp.pop %v1148
    %v1150 = vmul.f32 %v1148, %v1149
    %v1151 = vsub.f32 1.0, %v1150
    %v1152 = vmul.f32 %v1149, %v1151
    %v1153 = vadd.f32 %v1149, %v1152
    %vm1154 = vweird.f32 %v1148
    %vm1155 = vweird.f32 %v1149
    %vm1156 = vmor %vm1154, %vm1155
    %v1157 = vsel %vm1156, %v1149, %v1153
    %v1158 = vand.u32 2147483647, %v1148
    %vm1159 = vcmp.eq.f32.partialorder %v1158, 8.507059e+37
    %v1160 = vand.u32 %v1148, 2147483648
    %v1161 = vor.u32 1.1754944e-38, %v1160
    %v1162 = vsel %vm1159, %v1161, %v1157
    %v1163 = vmul.f32 1.0, %v1162
    %v1164 = vadd.f32 %v1119, %v721
    %v1165 = vmul.f32 %v1140, %v1164
    %v1166 = vadd.f32 %v662, %v1165
    %v1167 = vtanh.pop %v1166
    %v1168 = vsub.f32 1.0, %v1163
    %v1169 = vmul.f32 %v1168, %v1167
    %v1170 = vmul.f32 %v1163, %v1058
    %v1171 = vadd.f32 %v1169, %v1170
    %s1172 = scalar_lea.vmem [#allocation2], 12
    %1173 = vst [vmem:[%s1172] sm:$0xf] %v1171
    %1174 = vmatpush.msra.mxu0 %v716
    %1175 = vmatpush.msra.mxu0 %v713
    %1176 = vmatpush.msra.mxu0 %v710
    %1177 = vmatpush.msra.mxu0 %v707
    %1178 = vmatpush.msra.mxu0 %v704
    %1179 = vmatpush.msra.mxu0 %v701
    %1180 = vmatpush.msra.mxu0 %v698
    %1181 = vmatpush.msra.mxu0 %v695
    %1182 = vmatpush.msra.mxu0 %v692
    %1183 = vmatpush.msra.mxu0 %v689
    %1184 = vmatpush.msra.mxu0 %v686
    %1185 = vmatpush.msra.mxu0 %v683
    %1186 = vmatpush.msra.mxu0 %v680
    %1187 = vmatpush.msra.mxu0 %v677
    %1188 = vmatpush.msra.mxu0 %v674
    %1189 = vmatpush.msra.mxu0 %v671
    %1190 = vmatmul.f32.gmra.mxu0 %v1171
    %v1191 = vpop.f32.mrf.mxu0
    %v1192 = vadd.f32 0.0, %v1191
    %1193 = vdwg.mxu0
    %1194 = vmatpush.msra.mxu0 %v717
    %1195 = vmatpush.msra.mxu0 %v714
    %1196 = vmatpush.msra.mxu0 %v711
    %1197 = vmatpush.msra.mxu0 %v708
    %1198 = vmatpush.msra.mxu0 %v705
    %1199 = vmatpush.msra.mxu0 %v702
    %1200 = vmatpush.msra.mxu0 %v699
    %1201 = vmatpush.msra.mxu0 %v696
    %1202 = vmatpush.msra.mxu0 %v693
    %1203 = vmatpush.msra.mxu0 %v690
    %1204 = vmatpush.msra.mxu0 %v687
    %1205 = vmatpush.msra.mxu0 %v684
    %1206 = vmatpush.msra.mxu0 %v681
    %1207 = vmatpush.msra.mxu0 %v678
    %1208 = vmatpush.msra.mxu0 %v675
    %1209 = vmatpush.msra.mxu0 %v672
    %1210 = vmatmul.f32.gmra.mxu0 %v1171
    %v1211 = vpop.f32.mrf.mxu0
    %v1212 = vadd.f32 0.0, %v1211
    %1213 = vdwg.mxu0
    %1214 = vmatpush.msra.mxu0 %v718
    %1215 = vmatpush.msra.mxu0 %v715
    %1216 = vmatpush.msra.mxu0 %v712
    %1217 = vmatpush.msra.mxu0 %v709
    %1218 = vmatpush.msra.mxu0 %v706
    %1219 = vmatpush.msra.mxu0 %v703
    %1220 = vmatpush.msra.mxu0 %v700
    %1221 = vmatpush.msra.mxu0 %v697
    %1222 = vmatpush.msra.mxu0 %v694
    %1223 = vmatpush.msra.mxu0 %v691
    %1224 = vmatpush.msra.mxu0 %v688
    %1225 = vmatpush.msra.mxu0 %v685
    %1226 = vmatpush.msra.mxu0 %v682
    %1227 = vmatpush.msra.mxu0 %v679
    %1228 = vmatpush.msra.mxu0 %v676
    %1229 = vmatpush.msra.mxu0 %v673
    %1230 = vmatmul.f32.gmra.mxu0 %v1171
    %v1231 = vpop.f32.mrf.mxu0
    %v1232 = vadd.f32 0.0, %v1231
    %1233 = vdwg.mxu0
    %v1234 = vadd.f32 %v663, %v1192
    %v1235 = vxor.u32 %v1234, 2147483648
    %v1236 = vmul.f32 %v1235, 1.442695
    %v1237 = vpow.pop %v1236
    %v1238 = vadd.f32 %v1237, 1.0
    %v1239 = vrcp.pop %v1238
    %v1240 = vmul.f32 %v1238, %v1239
    %v1241 = vsub.f32 1.0, %v1240
    %v1242 = vmul.f32 %v1239, %v1241
    %v1243 = vadd.f32 %v1239, %v1242
    %vm1244 = vweird.f32 %v1238
    %vm1245 = vweird.f32 %v1239
    %vm1246 = vmor %vm1244, %vm1245
    %v1247 = vsel %vm1246, %v1239, %v1243
    %v1248 = vand.u32 2147483647, %v1238
    %vm1249 = vcmp.eq.f32.partialorder %v1248, 8.507059e+37
    %v1250 = vand.u32 %v1238, 2147483648
    %v1251 = vor.u32 1.1754944e-38, %v1250
    %v1252 = vsel %vm1249, %v1251, %v1247
    %v1253 = vmul.f32 1.0, %v1252
    %v1255 = vrot.slane %v663, 4
    %v1257 = vadd.f32 %v1255, %v1212
    %v1258 = vxor.u32 %v1257, 2147483648
    %v1259 = vmul.f32 %v1258, 1.442695
    %v1260 = vpow.pop %v1259
    %v1261 = vadd.f32 %v1260, 1.0
    %v1262 = vrcp.pop %v1261
    %v1263 = vmul.f32 %v1261, %v1262
    %v1264 = vsub.f32 1.0, %v1263
    %v1265 = vmul.f32 %v1262, %v1264
    %v1266 = vadd.f32 %v1262, %v1265
    %vm1267 = vweird.f32 %v1261
    %vm1268 = vweird.f32 %v1262
    %vm1269 = vmor %vm1267, %vm1268
    %v1270 = vsel %vm1269, %v1262, %v1266
    %v1271 = vand.u32 2147483647, %v1261
    %vm1272 = vcmp.eq.f32.partialorder %v1271, 8.507059e+37
    %v1273 = vand.u32 %v1261, 2147483648
    %v1274 = vor.u32 1.1754944e-38, %v1273
    %v1275 = vsel %vm1272, %v1274, %v1270
    %v1276 = vmul.f32 1.0, %v1275
    %v1277 = vadd.f32 %v1232, %v721
    %v1278 = vmul.f32 %v1253, %v1277
    %v1279 = vadd.f32 %v664, %v1278
    %v1280 = vtanh.pop %v1279
    %v1281 = vsub.f32 1.0, %v1276
    %v1282 = vmul.f32 %v1281, %v1280
    %v1283 = vmul.f32 %v1276, %v1171
    %v1284 = vadd.f32 %v1282, %v1283
    %s1285 = scalar_lea.vmem [#allocation2], 16
    %1286 = vst [vmem:[%s1285] sm:$0xf] %v1284
    %1287 = vmatpush.msra.mxu0 %v716
    %1288 = vmatpush.msra.mxu0 %v713
    %1289 = vmatpush.msra.mxu0 %v710
    %1290 = vmatpush.msra.mxu0 %v707
    %1291 = vmatpush.msra.mxu0 %v704
    %1292 = vmatpush.msra.mxu0 %v701
    %1293 = vmatpush.msra.mxu0 %v698
    %1294 = vmatpush.msra.mxu0 %v695
    %1295 = vmatpush.msra.mxu0 %v692
    %1296 = vmatpush.msra.mxu0 %v689
    %1297 = vmatpush.msra.mxu0 %v686
    %1298 = vmatpush.msra.mxu0 %v683
    %1299 = vmatpush.msra.mxu0 %v680
    %1300 = vmatpush.msra.mxu0 %v677
    %1301 = vmatpush.msra.mxu0 %v674
    %1302 = vmatpush.msra.mxu0 %v671
    %1303 = vmatmul.f32.gmra.mxu0 %v1284
    %v1304 = vpop.f32.mrf.mxu0
    %v1305 = vadd.f32 0.0, %v1304
    %1306 = vdwg.mxu0
    %1307 = vmatpush.msra.mxu0 %v717
    %1308 = vmatpush.msra.mxu0 %v714
    %1309 = vmatpush.msra.mxu0 %v711
    %1310 = vmatpush.msra.mxu0 %v708
    %1311 = vmatpush.msra.mxu0 %v705
    %1312 = vmatpush.msra.mxu0 %v702
    %1313 = vmatpush.msra.mxu0 %v699
    %1314 = vmatpush.msra.mxu0 %v696
    %1315 = vmatpush.msra.mxu0 %v693
    %1316 = vmatpush.msra.mxu0 %v690
    %1317 = vmatpush.msra.mxu0 %v687
    %1318 = vmatpush.msra.mxu0 %v684
    %1319 = vmatpush.msra.mxu0 %v681
    %1320 = vmatpush.msra.mxu0 %v678
    %1321 = vmatpush.msra.mxu0 %v675
    %1322 = vmatpush.msra.mxu0 %v672
    %1323 = vmatmul.f32.gmra.mxu0 %v1284
    %v1324 = vpop.f32.mrf.mxu0
    %v1325 = vadd.f32 0.0, %v1324
    %1326 = vdwg.mxu0
    %1327 = vmatpush.msra.mxu0 %v718
    %1328 = vmatpush.msra.mxu0 %v715
    %1329 = vmatpush.msra.mxu0 %v712
    %1330 = vmatpush.msra.mxu0 %v709
    %1331 = vmatpush.msra.mxu0 %v706
    %1332 = vmatpush.msra.mxu0 %v703
    %1333 = vmatpush.msra.mxu0 %v700
    %1334 = vmatpush.msra.mxu0 %v697
    %1335 = vmatpush.msra.mxu0 %v694
    %1336 = vmatpush.msra.mxu0 %v691
    %1337 = vmatpush.msra.mxu0 %v688
    %1338 = vmatpush.msra.mxu0 %v685
    %1339 = vmatpush.msra.mxu0 %v682
    %1340 = vmatpush.msra.mxu0 %v679
    %1341 = vmatpush.msra.mxu0 %v676
    %1342 = vmatpush.msra.mxu0 %v673
    %1343 = vmatmul.f32.gmra.mxu0 %v1284
    %v1344 = vpop.f32.mrf.mxu0
    %v1345 = vadd.f32 0.0, %v1344
    %1346 = vdwg.mxu0
    %v1347 = vadd.f32 %v665, %v1305
    %v1348 = vxor.u32 %v1347, 2147483648
    %v1349 = vmul.f32 %v1348, 1.442695
    %v1350 = vpow.pop %v1349
    %v1351 = vadd.f32 %v1350, 1.0
    %v1352 = vrcp.pop %v1351
    %v1353 = vmul.f32 %v1351, %v1352
    %v1354 = vsub.f32 1.0, %v1353
    %v1355 = vmul.f32 %v1352, %v1354
    %v1356 = vadd.f32 %v1352, %v1355
    %vm1357 = vweird.f32 %v1351
    %vm1358 = vweird.f32 %v1352
    %vm1359 = vmor %vm1357, %vm1358
    %v1360 = vsel %vm1359, %v1352, %v1356
    %v1361 = vand.u32 2147483647, %v1351
    %vm1362 = vcmp.eq.f32.partialorder %v1361, 8.507059e+37
    %v1363 = vand.u32 %v1351, 2147483648
    %v1364 = vor.u32 1.1754944e-38, %v1363
    %v1365 = vsel %vm1362, %v1364, %v1360
    %v1366 = vmul.f32 1.0, %v1365
    %v1368 = vrot.slane %v665, 4
    %v1370 = vadd.f32 %v1368, %v1325
    %v1371 = vxor.u32 %v1370, 2147483648
    %v1372 = vmul.f32 %v1371, 1.442695
    %v1373 = vpow.pop %v1372
    %v1374 = vadd.f32 %v1373, 1.0
    %v1375 = vrcp.pop %v1374
    %v1376 = vmul.f32 %v1374, %v1375
    %v1377 = vsub.f32 1.0, %v1376
    %v1378 = vmul.f32 %v1375, %v1377
    %v1379 = vadd.f32 %v1375, %v1378
    %vm1380 = vweird.f32 %v1374
    %vm1381 = vweird.f32 %v1375
    %vm1382 = vmor %vm1380, %vm1381
    %v1383 = vsel %vm1382, %v1375, %v1379
    %v1384 = vand.u32 2147483647, %v1374
    %vm1385 = vcmp.eq.f32.partialorder %v1384, 8.507059e+37
    %v1386 = vand.u32 %v1374, 2147483648
    %v1387 = vor.u32 1.1754944e-38, %v1386
    %v1388 = vsel %vm1385, %v1387, %v1383
    %v1389 = vmul.f32 1.0, %v1388
    %v1390 = vadd.f32 %v1345, %v721
    %v1391 = vmul.f32 %v1366, %v1390
    %v1392 = vadd.f32 %v666, %v1391
    %v1393 = vtanh.pop %v1392
    %v1394 = vsub.f32 1.0, %v1389
    %v1395 = vmul.f32 %v1394, %v1393
    %v1396 = vmul.f32 %v1389, %v1284
    %v1397 = vadd.f32 %v1395, %v1396
    %s1398 = scalar_lea.vmem [#allocation2], 20
    %1399 = vst [vmem:[%s1398] sm:$0xf] %v1397
    %1400 = vmatpush.msra.mxu0 %v716
    %1401 = vmatpush.msra.mxu0 %v713
    %1402 = vmatpush.msra.mxu0 %v710
    %1403 = vmatpush.msra.mxu0 %v707
    %1404 = vmatpush.msra.mxu0 %v704
    %1405 = vmatpush.msra.mxu0 %v701
    %1406 = vmatpush.msra.mxu0 %v698
    %1407 = vmatpush.msra.mxu0 %v695
    %1408 = vmatpush.msra.mxu0 %v692
    %1409 = vmatpush.msra.mxu0 %v689
    %1410 = vmatpush.msra.mxu0 %v686
    %1411 = vmatpush.msra.mxu0 %v683
    %1412 = vmatpush.msra.mxu0 %v680
    %1413 = vmatpush.msra.mxu0 %v677
    %1414 = vmatpush.msra.mxu0 %v674
    %1415 = vmatpush.msra.mxu0 %v671
    %1416 = vmatmul.f32.gmra.mxu0 %v1397
    %v1417 = vpop.f32.mrf.mxu0
    %v1418 = vadd.f32 0.0, %v1417
    %1419 = vdwg.mxu0
    %1420 = vmatpush.msra.mxu0 %v717
    %1421 = vmatpush.msra.mxu0 %v714
    %1422 = vmatpush.msra.mxu0 %v711
    %1423 = vmatpush.msra.mxu0 %v708
    %1424 = vmatpush.msra.mxu0 %v705
    %1425 = vmatpush.msra.mxu0 %v702
    %1426 = vmatpush.msra.mxu0 %v699
    %1427 = vmatpush.msra.mxu0 %v696
    %1428 = vmatpush.msra.mxu0 %v693
    %1429 = vmatpush.msra.mxu0 %v690
    %1430 = vmatpush.msra.mxu0 %v687
    %1431 = vmatpush.msra.mxu0 %v684
    %1432 = vmatpush.msra.mxu0 %v681
    %1433 = vmatpush.msra.mxu0 %v678
    %1434 = vmatpush.msra.mxu0 %v675
    %1435 = vmatpush.msra.mxu0 %v672
    %1436 = vmatmul.f32.gmra.mxu0 %v1397
    %v1437 = vpop.f32.mrf.mxu0
    %v1438 = vadd.f32 0.0, %v1437
    %1439 = vdwg.mxu0
    %1440 = vmatpush.msra.mxu0 %v718
    %1441 = vmatpush.msra.mxu0 %v715
    %1442 = vmatpush.msra.mxu0 %v712
    %1443 = vmatpush.msra.mxu0 %v709
    %1444 = vmatpush.msra.mxu0 %v706
    %1445 = vmatpush.msra.mxu0 %v703
    %1446 = vmatpush.msra.mxu0 %v700
    %1447 = vmatpush.msra.mxu0 %v697
    %1448 = vmatpush.msra.mxu0 %v694
    %1449 = vmatpush.msra.mxu0 %v691
    %1450 = vmatpush.msra.mxu0 %v688
    %1451 = vmatpush.msra.mxu0 %v685
    %1452 = vmatpush.msra.mxu0 %v682
    %1453 = vmatpush.msra.mxu0 %v679
    %1454 = vmatpush.msra.mxu0 %v676
    %1455 = vmatpush.msra.mxu0 %v673
    %1456 = vmatmul.f32.gmra.mxu0 %v1397
    %v1457 = vpop.f32.mrf.mxu0
    %v1458 = vadd.f32 0.0, %v1457
    %1459 = vdwg.mxu0
    %v1460 = vadd.f32 %v667, %v1418
    %v1461 = vxor.u32 %v1460, 2147483648
    %v1462 = vmul.f32 %v1461, 1.442695
    %v1463 = vpow.pop %v1462
    %v1464 = vadd.f32 %v1463, 1.0
    %v1465 = vrcp.pop %v1464
    %v1466 = vmul.f32 %v1464, %v1465
    %v1467 = vsub.f32 1.0, %v1466
    %v1468 = vmul.f32 %v1465, %v1467
    %v1469 = vadd.f32 %v1465, %v1468
    %vm1470 = vweird.f32 %v1464
    %vm1471 = vweird.f32 %v1465
    %vm1472 = vmor %vm1470, %vm1471
    %v1473 = vsel %vm1472, %v1465, %v1469
    %v1474 = vand.u32 2147483647, %v1464
    %vm1475 = vcmp.eq.f32.partialorder %v1474, 8.507059e+37
    %v1476 = vand.u32 %v1464, 2147483648
    %v1477 = vor.u32 1.1754944e-38, %v1476
    %v1478 = vsel %vm1475, %v1477, %v1473
    %v1479 = vmul.f32 1.0, %v1478
    %v1481 = vrot.slane %v667, 4
    %v1483 = vadd.f32 %v1481, %v1438
    %v1484 = vxor.u32 %v1483, 2147483648
    %v1485 = vmul.f32 %v1484, 1.442695
    %v1486 = vpow.pop %v1485
    %v1487 = vadd.f32 %v1486, 1.0
    %v1488 = vrcp.pop %v1487
    %v1489 = vmul.f32 %v1487, %v1488
    %v1490 = vsub.f32 1.0, %v1489
    %v1491 = vmul.f32 %v1488, %v1490
    %v1492 = vadd.f32 %v1488, %v1491
    %vm1493 = vweird.f32 %v1487
    %vm1494 = vweird.f32 %v1488
    %vm1495 = vmor %vm1493, %vm1494
    %v1496 = vsel %vm1495, %v1488, %v1492
    %v1497 = vand.u32 2147483647, %v1487
    %vm1498 = vcmp.eq.f32.partialorder %v1497, 8.507059e+37
    %v1499 = vand.u32 %v1487, 2147483648
    %v1500 = vor.u32 1.1754944e-38, %v1499
    %v1501 = vsel %vm1498, %v1500, %v1496
    %v1502 = vmul.f32 1.0, %v1501
    %v1503 = vadd.f32 %v1458, %v721
    %v1504 = vmul.f32 %v1479, %v1503
    %v1505 = vadd.f32 %v668, %v1504
    %v1506 = vtanh.pop %v1505
    %v1507 = vsub.f32 1.0, %v1502
    %v1508 = vmul.f32 %v1507, %v1506
    %v1509 = vmul.f32 %v1502, %v1397
    %v1510 = vadd.f32 %v1508, %v1509
    %s1511 = scalar_lea.vmem [#allocation2], 24
    %1512 = vst [vmem:[%s1511] sm:$0xf] %v1510
    %1513 = vmatpush.msra.mxu0 %v716
    %1514 = vmatpush.msra.mxu0 %v713
    %1515 = vmatpush.msra.mxu0 %v710
    %1516 = vmatpush.msra.mxu0 %v707
    %1517 = vmatpush.msra.mxu0 %v704
    %1518 = vmatpush.msra.mxu0 %v701
    %1519 = vmatpush.msra.mxu0 %v698
    %1520 = vmatpush.msra.mxu0 %v695
    %1521 = vmatpush.msra.mxu0 %v692
    %1522 = vmatpush.msra.mxu0 %v689
    %1523 = vmatpush.msra.mxu0 %v686
    %1524 = vmatpush.msra.mxu0 %v683
    %1525 = vmatpush.msra.mxu0 %v680
    %1526 = vmatpush.msra.mxu0 %v677
    %1527 = vmatpush.msra.mxu0 %v674
    %1528 = vmatpush.msra.mxu0 %v671
    %1529 = vmatmul.f32.gmra.mxu0 %v1510
    %v1530 = vpop.f32.mrf.mxu0
    %v1531 = vadd.f32 0.0, %v1530
    %1532 = vdwg.mxu0
    %1533 = vmatpush.msra.mxu0 %v717
    %1534 = vmatpush.msra.mxu0 %v714
    %1535 = vmatpush.msra.mxu0 %v711
    %1536 = vmatpush.msra.mxu0 %v708
    %1537 = vmatpush.msra.mxu0 %v705
    %1538 = vmatpush.msra.mxu0 %v702
    %1539 = vmatpush.msra.mxu0 %v699
    %1540 = vmatpush.msra.mxu0 %v696
    %1541 = vmatpush.msra.mxu0 %v693
    %1542 = vmatpush.msra.mxu0 %v690
    %1543 = vmatpush.msra.mxu0 %v687
    %1544 = vmatpush.msra.mxu0 %v684
    %1545 = vmatpush.msra.mxu0 %v681
    %1546 = vmatpush.msra.mxu0 %v678
    %1547 = vmatpush.msra.mxu0 %v675
    %1548 = vmatpush.msra.mxu0 %v672
    %1549 = vmatmul.f32.gmra.mxu0 %v1510
    %v1550 = vpop.f32.mrf.mxu0
    %v1551 = vadd.f32 0.0, %v1550
    %1552 = vdwg.mxu0
    %1553 = vmatpush.msra.mxu0 %v718
    %1554 = vmatpush.msra.mxu0 %v715
    %1555 = vmatpush.msra.mxu0 %v712
    %1556 = vmatpush.msra.mxu0 %v709
    %1557 = vmatpush.msra.mxu0 %v706
    %1558 = vmatpush.msra.mxu0 %v703
    %1559 = vmatpush.msra.mxu0 %v700
    %1560 = vmatpush.msra.mxu0 %v697
    %1561 = vmatpush.msra.mxu0 %v694
    %1562 = vmatpush.msra.mxu0 %v691
    %1563 = vmatpush.msra.mxu0 %v688
    %1564 = vmatpush.msra.mxu0 %v685
    %1565 = vmatpush.msra.mxu0 %v682
    %1566 = vmatpush.msra.mxu0 %v679
    %1567 = vmatpush.msra.mxu0 %v676
    %1568 = vmatpush.msra.mxu0 %v673
    %1569 = vmatmul.f32.gmra.mxu0 %v1510
    %v1570 = vpop.f32.mrf.mxu0
    %v1571 = vadd.f32 0.0, %v1570
    %1572 = vdwg.mxu0
    %v1573 = vadd.f32 %v669, %v1531
    %v1574 = vxor.u32 %v1573, 2147483648
    %v1575 = vmul.f32 %v1574, 1.442695
    %v1576 = vpow.pop %v1575
    %v1577 = vadd.f32 %v1576, 1.0
    %v1578 = vrcp.pop %v1577
    %v1579 = vmul.f32 %v1577, %v1578
    %v1580 = vsub.f32 1.0, %v1579
    %v1581 = vmul.f32 %v1578, %v1580
    %v1582 = vadd.f32 %v1578, %v1581
    %vm1583 = vweird.f32 %v1577
    %vm1584 = vweird.f32 %v1578
    %vm1585 = vmor %vm1583, %vm1584
    %v1586 = vsel %vm1585, %v1578, %v1582
    %v1587 = vand.u32 2147483647, %v1577
    %vm1588 = vcmp.eq.f32.partialorder %v1587, 8.507059e+37
    %v1589 = vand.u32 %v1577, 2147483648
    %v1590 = vor.u32 1.1754944e-38, %v1589
    %v1591 = vsel %vm1588, %v1590, %v1586
    %v1592 = vmul.f32 1.0, %v1591
    %v1594 = vrot.slane %v669, 4
    %v1596 = vadd.f32 %v1594, %v1551
    %v1597 = vxor.u32 %v1596, 2147483648
    %v1598 = vmul.f32 %v1597, 1.442695
    %v1599 = vpow.pop %v1598
    %v1600 = vadd.f32 %v1599, 1.0
    %v1601 = vrcp.pop %v1600
    %v1602 = vmul.f32 %v1600, %v1601
    %v1603 = vsub.f32 1.0, %v1602
    %v1604 = vmul.f32 %v1601, %v1603
    %v1605 = vadd.f32 %v1601, %v1604
    %vm1606 = vweird.f32 %v1600
    %vm1607 = vweird.f32 %v1601
    %vm1608 = vmor %vm1606, %vm1607
    %v1609 = vsel %vm1608, %v1601, %v1605
    %v1610 = vand.u32 2147483647, %v1600
    %vm1611 = vcmp.eq.f32.partialorder %v1610, 8.507059e+37
    %v1612 = vand.u32 %v1600, 2147483648
    %v1613 = vor.u32 1.1754944e-38, %v1612
    %v1614 = vsel %vm1611, %v1613, %v1609
    %v1615 = vmul.f32 1.0, %v1614
    %v1616 = vadd.f32 %v1571, %v721
    %v1617 = vmul.f32 %v1592, %v1616
    %v1618 = vadd.f32 %v670, %v1617
    %v1619 = vtanh.pop %v1618
    %v1620 = vsub.f32 1.0, %v1615
    %v1621 = vmul.f32 %v1620, %v1619
    %v1622 = vmul.f32 %v1615, %v1510
    %v1623 = vadd.f32 %v1621, %v1622
    %s1624 = scalar_lea.vmem [#allocation2], 28
    %1625 = vst [vmem:[%s1624] sm:$0xf] %v1623
    %v1626 = vld [vmem:[#allocation2] sm:$0xf]
    %v1627 = vld [vmem:[#allocation2 + $0x4] sm:$0xf]
    %v1628 = vld [vmem:[#allocation2 + $0x8] sm:$0xf]
    %v1629 = vld [vmem:[#allocation2 + $0xc] sm:$0xf]
    %v1630 = vld [vmem:[#allocation2 + $0x10] sm:$0xf]
    %v1631 = vld [vmem:[#allocation2 + $0x14] sm:$0xf]
    %v1632 = vld [vmem:[#allocation2 + $0x18] sm:$0xf]
    %v1633 = vld [vmem:[#allocation2 + $0x1c] sm:$0xf]
    %vm1634 = vcmp.lt.s32.totalorder %v121, 32
    %1635 = vset.pattern.permute.xlu0 0
    %1636 = vperm.xlu0 %1635, %v80
    %v1637 = vpop.permute.xlu0 %1636
    %1638 = vset.pattern.permute.xlu0 0
    %1639 = vperm.xlu0 %1638, %v81
    %v1640 = vpop.permute.xlu0 %1639
    %v1641 = vsel %vm1634, %v1637, %v1640
    %vm1642 = vcmp.gt.s32.totalorder %v1641, 0
    %vm1643 = vcmp.gt.s32.totalorder %v1641, 1
    %vm1644 = vcmp.gt.s32.totalorder %v1641, 2
    %vm1645 = vcmp.gt.s32.totalorder %v1641, 3
    %vm1646 = vcmp.gt.s32.totalorder %v1641, 4
    %vm1647 = vcmp.gt.s32.totalorder %v1641, 5
    %vm1648 = vcmp.gt.s32.totalorder %v1641, 6
    %vm1649 = vcmp.gt.s32.totalorder %v1641, 7
    %v1650 = vsel %vm1642, 1, 0
    %v1651 = vsel %vm1643, 1, 0
    %v1652 = vsel %vm1644, 1, 0
    %v1653 = vsel %vm1645, 1, 0
    %v1654 = vsel %vm1646, 1, 0
    %v1655 = vsel %vm1647, 1, 0
    %v1656 = vsel %vm1648, 1, 0
    %v1657 = vsel %vm1649, 1, 0
    %v1658 = vcvt.s32.f32 %v1650
    %v1659 = vcvt.s32.f32 %v1651
    %v1660 = vcvt.s32.f32 %v1652
    %v1661 = vcvt.s32.f32 %v1653
    %v1662 = vcvt.s32.f32 %v1654
    %v1663 = vcvt.s32.f32 %v1655
    %v1664 = vcvt.s32.f32 %v1656
    %v1665 = vcvt.s32.f32 %v1657
    %v1666 = vmul.f32 %v1626, %v1658
    %v1667 = vmul.f32 %v1627, %v1659
    %v1668 = vmul.f32 %v1628, %v1660
    %v1669 = vmul.f32 %v1629, %v1661
    %v1670 = vmul.f32 %v1630, %v1662
    %v1671 = vmul.f32 %v1631, %v1663
    %v1672 = vmul.f32 %v1632, %v1664
    %v1673 = vmul.f32 %v1633, %v1665
    %v1674 = vsel %vm446, %v1666, 0.0
    %v1675 = vsel %vm446, %v1667, 0.0
    %v1676 = vadd.f32 %v1674, %v1675
    %v1677 = vsel %vm446, %v1668, 0.0
    %v1678 = vadd.f32 %v1676, %v1677
    %v1679 = vsel %vm446, %v1669, 0.0
    %v1680 = vadd.f32 %v1678, %v1679
    %v1681 = vsel %vm446, %v1670, 0.0
    %v1682 = vadd.f32 %v1680, %v1681
    %v1683 = vsel %vm446, %v1671, 0.0
    %v1684 = vadd.f32 %v1682, %v1683
    %v1685 = vsel %vm446, %v1672, 0.0
    %v1686 = vadd.f32 %v1684, %v1685
    %v1687 = vsel %vm446, %v1673, 0.0
    %v1688 = vadd.f32 %v1686, %v1687
    %v1689 = vmul.f32 %v1688, 0.125
    %v1690 = vld [vmem:[%s10] sm:$0xff]
    %v1691 = vld [vmem:[%s10 + $0x8] sm:$0xff]
    %v1692 = vld [vmem:[%s10 + $0x10] sm:$0xff]
    %v1693 = vld [vmem:[%s10 + $0x18] sm:$0xff]
    %v1694 = vld [vmem:[%s10 + $0x20] sm:$0xff]
    %v1695 = vld [vmem:[%s10 + $0x28] sm:$0xff]
    %v1696 = vld [vmem:[%s10 + $0x30] sm:$0xff]
    %v1697 = vld [vmem:[%s10 + $0x38] sm:$0xff]
    %v1698 = vld [vmem:[%s10 + $0x40] sm:$0xff]
    %v1699 = vld [vmem:[%s10 + $0x48] sm:$0xff]
    %v1700 = vld [vmem:[%s10 + $0x50] sm:$0xff]
    %v1701 = vld [vmem:[%s10 + $0x58] sm:$0xff]
    %v1702 = vld [vmem:[%s10 + $0x60] sm:$0xff]
    %v1703 = vld [vmem:[%s10 + $0x68] sm:$0xff]
    %v1704 = vld [vmem:[%s10 + $0x70] sm:$0xff]
    %v1705 = vld [vmem:[%s10 + $0x78] sm:$0xff]
    %1714 = vst [vmem:[#allocation1] ss:$2 sm:$0xff] %v1666
    %s1715 = scalar_lea.vmem [#allocation1], 1
    %1716 = vst [vmem:[%s1715] ss:$2 sm:$0xff] %v1667
    %s1717 = scalar_lea.vmem [#allocation1], 16
    %1718 = vst [vmem:[%s1717] ss:$2 sm:$0xff] %v1668
    %s1719 = scalar_lea.vmem [#allocation1], 17
    %1720 = vst [vmem:[%s1719] ss:$2 sm:$0xff] %v1669
    %s1721 = scalar_lea.vmem [#allocation1], 32
    %1722 = vst [vmem:[%s1721] ss:$2 sm:$0xff] %v1670
    %s1723 = scalar_lea.vmem [#allocation1], 33
    %1724 = vst [vmem:[%s1723] ss:$2 sm:$0xff] %v1671
    %s1725 = scalar_lea.vmem [#allocation1], 48
    %1726 = vst [vmem:[%s1725] ss:$2 sm:$0xff] %v1672
    %s1727 = scalar_lea.vmem [#allocation1], 49
    %1728 = vst [vmem:[%s1727] ss:$2 sm:$0xff] %v1673
    %v1729 = vld.sshfl [vmem:[#allocation1] sm:$0xff pattern:$0x75316420]
    %v1730 = vld.sshfl [vmem:[#allocation1 + $0x10] sm:$0xff pattern:$0x75316420]
    %v1731 = vld.sshfl [vmem:[#allocation1 + $0x20] sm:$0xff pattern:$0x75316420]
    %v1732 = vld.sshfl [vmem:[#allocation1 + $0x30] sm:$0xff pattern:$0x75316420]
    %1737 = vmatpush.msra.mxu0 %v1705
    %1738 = vmatpush.msra.mxu0 %v1704
    %1739 = vmatpush.msra.mxu0 %v1703
    %1740 = vmatpush.msra.mxu0 %v1702
    %1741 = vmatpush.msra.mxu0 %v1701
    %1742 = vmatpush.msra.mxu0 %v1700
    %1743 = vmatpush.msra.mxu0 %v1699
    %1744 = vmatpush.msra.mxu0 %v1698
    %1745 = vmatpush.msra.mxu0 %v1697
    %1746 = vmatpush.msra.mxu0 %v1696
    %1747 = vmatpush.msra.mxu0 %v1695
    %1748 = vmatpush.msra.mxu0 %v1694
    %1749 = vmatpush.msra.mxu0 %v1693
    %1750 = vmatpush.msra.mxu0 %v1692
    %1751 = vmatpush.msra.mxu0 %v1691
    %1752 = vmatpush.msra.mxu0 %v1690
    %1753 = vmatmul.f32.gmra.mxu0 %v1729
    %v1754 = vpop.f32.mrf.mxu0
    %v1755 = vadd.f32 0.0, %v1754
    %1756 = vmatmul.f32.gmra.mxu0 %v1730
    %v1757 = vpop.f32.mrf.mxu0
    %v1758 = vadd.f32 0.0, %v1757
    %1759 = vmatmul.f32.gmra.mxu0 %v1731
    %v1760 = vpop.f32.mrf.mxu0
    %v1761 = vadd.f32 0.0, %v1760
    %1762 = vmatmul.f32.gmra.mxu0 %v1732
    %v1763 = vpop.f32.mrf.mxu0
    %v1764 = vadd.f32 0.0, %v1763
    %1765 = vdwg.mxu0
    %v1769 = vrot.slane %v1755, 4
    %v1770 = vrot.slane %v1758, 4
    %v1771 = vrot.slane %v1761, 4
    %v1775 = vadd.f32 %v1755, 0.0
    %v1776 = vadd.f32 %v1769, 0.0
    %v1777 = vadd.f32 %v1758, 0.0
    %v1778 = vadd.f32 %v1770, 0.0
    %v1779 = vadd.f32 %v1761, 0.0
    %v1780 = vadd.f32 %v1771, 0.0
    %v1781 = vadd.f32 %v1764, 0.0
    %v1782 = vld [vmem:[%s11] sm:$0xff]
    %v1783 = vld [vmem:[%s11 + $0x8] sm:$0xff]
    %v1784 = vld [vmem:[%s11 + $0x10] sm:$0xff]
    %v1785 = vld [vmem:[%s11 + $0x18] sm:$0xff]
    %v1786 = vld [vmem:[%s11 + $0x20] sm:$0xff]
    %v1787 = vld [vmem:[%s11 + $0x28] sm:$0xff]
    %v1788 = vld [vmem:[%s11 + $0x30] sm:$0xff]
    %v1789 = vld [vmem:[%s11 + $0x38] sm:$0xff]
    %v1790 = vld [vmem:[%s11 + $0x40] sm:$0xff]
    %v1791 = vld [vmem:[%s11 + $0x48] sm:$0xff]
    %v1792 = vld [vmem:[%s11 + $0x50] sm:$0xff]
    %v1793 = vld [vmem:[%s11 + $0x58] sm:$0xff]
    %v1794 = vld [vmem:[%s11 + $0x60] sm:$0xff]
    %v1795 = vld [vmem:[%s11 + $0x68] sm:$0xff]
    %v1796 = vld [vmem:[%s11 + $0x70] sm:$0xff]
    %v1797 = vld [vmem:[%s11 + $0x78] sm:$0xff]
    %1798 = vst [vmem:[#allocation1] ss:$2 sm:$0xff] %v1666
    %s1799 = scalar_lea.vmem [#allocation1], 1
    %1800 = vst [vmem:[%s1799] ss:$2 sm:$0xff] %v1667
    %s1801 = scalar_lea.vmem [#allocation1], 16
    %1802 = vst [vmem:[%s1801] ss:$2 sm:$0xff] %v1668
    %s1803 = scalar_lea.vmem [#allocation1], 17
    %1804 = vst [vmem:[%s1803] ss:$2 sm:$0xff] %v1669
    %s1805 = scalar_lea.vmem [#allocation1], 32
    %1806 = vst [vmem:[%s1805] ss:$2 sm:$0xff] %v1670
    %s1807 = scalar_lea.vmem [#allocation1], 33
    %1808 = vst [vmem:[%s1807] ss:$2 sm:$0xff] %v1671
    %s1809 = scalar_lea.vmem [#allocation1], 48
    %1810 = vst [vmem:[%s1809] ss:$2 sm:$0xff] %v1672
    %s1811 = scalar_lea.vmem [#allocation1], 49
    %1812 = vst [vmem:[%s1811] ss:$2 sm:$0xff] %v1673
    %v1813 = vld.sshfl [vmem:[#allocation1] sm:$0xff pattern:$0x75316420]
    %v1814 = vld.sshfl [vmem:[#allocation1 + $0x10] sm:$0xff pattern:$0x75316420]
    %v1815 = vld.sshfl [vmem:[#allocation1 + $0x20] sm:$0xff pattern:$0x75316420]
    %v1816 = vld.sshfl [vmem:[#allocation1 + $0x30] sm:$0xff pattern:$0x75316420]
    %1821 = vmatpush.msra.mxu0 %v1797
    %1822 = vmatpush.msra.mxu0 %v1796
    %1823 = vmatpush.msra.mxu0 %v1795
    %1824 = vmatpush.msra.mxu0 %v1794
    %1825 = vmatpush.msra.mxu0 %v1793
    %1826 = vmatpush.msra.mxu0 %v1792
    %1827 = vmatpush.msra.mxu0 %v1791
    %1828 = vmatpush.msra.mxu0 %v1790
    %1829 = vmatpush.msra.mxu0 %v1789
    %1830 = vmatpush.msra.mxu0 %v1788
    %1831 = vmatpush.msra.mxu0 %v1787
    %1832 = vmatpush.msra.mxu0 %v1786
    %1833 = vmatpush.msra.mxu0 %v1785
    %1834 = vmatpush.msra.mxu0 %v1784
    %1835 = vmatpush.msra.mxu0 %v1783
    %1836 = vmatpush.msra.mxu0 %v1782
    %1837 = vmatmul.f32.gmra.mxu0 %v1813
    %v1838 = vpop.f32.mrf.mxu0
    %v1839 = vadd.f32 0.0, %v1838
    %1840 = vmatmul.f32.gmra.mxu0 %v1814
    %v1841 = vpop.f32.mrf.mxu0
    %v1842 = vadd.f32 0.0, %v1841
    %1843 = vmatmul.f32.gmra.mxu0 %v1815
    %v1844 = vpop.f32.mrf.mxu0
    %v1845 = vadd.f32 0.0, %v1844
    %1846 = vmatmul.f32.gmra.mxu0 %v1816
    %v1847 = vpop.f32.mrf.mxu0
    %v1848 = vadd.f32 0.0, %v1847
    %1849 = vdwg.mxu0
    %v1854 = vrot.slane %v1839, 4
    %v1855 = vrot.slane %v1842, 4
    %v1856 = vrot.slane %v1845, 4
    %v1857 = vrot.slane %v1848, 4
    %v1862 = vadd.f32 %v1839, 0.0
    %v1863 = vadd.f32 %v1775, %v1854
    %v1864 = vadd.f32 %v1776, %v1842
    %v1865 = vadd.f32 %v1777, %v1855
    %v1866 = vadd.f32 %v1778, %v1845
    %v1867 = vadd.f32 %v1779, %v1856
    %v1868 = vadd.f32 %v1780, %v1848
    %v1869 = vadd.f32 %v1781, %v1857
    %v1870 = vld [vmem:[%s12] sm:$0xff]
    %v1871 = vld [vmem:[%s12 + $0x8] sm:$0xff]
    %v1872 = vld [vmem:[%s12 + $0x10] sm:$0xff]
    %v1873 = vld [vmem:[%s12 + $0x18] sm:$0xff]
    %v1874 = vld [vmem:[%s12 + $0x20] sm:$0xff]
    %v1875 = vld [vmem:[%s12 + $0x28] sm:$0xff]
    %v1876 = vld [vmem:[%s12 + $0x30] sm:$0xff]
    %v1877 = vld [vmem:[%s12 + $0x38] sm:$0xff]
    %v1878 = vld [vmem:[%s12 + $0x40] sm:$0xff]
    %v1879 = vld [vmem:[%s12 + $0x48] sm:$0xff]
    %v1880 = vld [vmem:[%s12 + $0x50] sm:$0xff]
    %v1881 = vld [vmem:[%s12 + $0x58] sm:$0xff]
    %v1882 = vld [vmem:[%s12 + $0x60] sm:$0xff]
    %v1883 = vld [vmem:[%s12 + $0x68] sm:$0xff]
    %v1884 = vld [vmem:[%s12 + $0x70] sm:$0xff]
    %v1885 = vld [vmem:[%s12 + $0x78] sm:$0xff]
    %1886 = vst [vmem:[#allocation1] ss:$2 sm:$0xff] %v1666
    %s1887 = scalar_lea.vmem [#allocation1], 1
    %1888 = vst [vmem:[%s1887] ss:$2 sm:$0xff] %v1667
    %s1889 = scalar_lea.vmem [#allocation1], 16
    %1890 = vst [vmem:[%s1889] ss:$2 sm:$0xff] %v1668
    %s1891 = scalar_lea.vmem [#allocation1], 17
    %1892 = vst [vmem:[%s1891] ss:$2 sm:$0xff] %v1669
    %s1893 = scalar_lea.vmem [#allocation1], 32
    %1894 = vst [vmem:[%s1893] ss:$2 sm:$0xff] %v1670
    %s1895 = scalar_lea.vmem [#allocation1], 33
    %1896 = vst [vmem:[%s1895] ss:$2 sm:$0xff] %v1671
    %s1897 = scalar_lea.vmem [#allocation1], 48
    %1898 = vst [vmem:[%s1897] ss:$2 sm:$0xff] %v1672
    %s1899 = scalar_lea.vmem [#allocation1], 49
    %1900 = vst [vmem:[%s1899] ss:$2 sm:$0xff] %v1673
    %v1901 = vld.sshfl [vmem:[#allocation1] sm:$0xff pattern:$0x75316420]
    %v1902 = vld.sshfl [vmem:[#allocation1 + $0x10] sm:$0xff pattern:$0x75316420]
    %v1903 = vld.sshfl [vmem:[#allocation1 + $0x20] sm:$0xff pattern:$0x75316420]
    %v1904 = vld.sshfl [vmem:[#allocation1 + $0x30] sm:$0xff pattern:$0x75316420]
    %1909 = vmatpush.msra.mxu0 %v1885
    %1910 = vmatpush.msra.mxu0 %v1884
    %1911 = vmatpush.msra.mxu0 %v1883
    %1912 = vmatpush.msra.mxu0 %v1882
    %1913 = vmatpush.msra.mxu0 %v1881
    %1914 = vmatpush.msra.mxu0 %v1880
    %1915 = vmatpush.msra.mxu0 %v1879
    %1916 = vmatpush.msra.mxu0 %v1878
    %1917 = vmatpush.msra.mxu0 %v1877
    %1918 = vmatpush.msra.mxu0 %v1876
    %1919 = vmatpush.msra.mxu0 %v1875
    %1920 = vmatpush.msra.mxu0 %v1874
    %1921 = vmatpush.msra.mxu0 %v1873
    %1922 = vmatpush.msra.mxu0 %v1872
    %1923 = vmatpush.msra.mxu0 %v1871
    %1924 = vmatpush.msra.mxu0 %v1870
    %1925 = vmatmul.f32.gmra.mxu0 %v1901
    %v1926 = vpop.f32.mrf.mxu0
    %v1927 = vadd.f32 0.0, %v1926
    %1928 = vmatmul.f32.gmra.mxu0 %v1902
    %v1929 = vpop.f32.mrf.mxu0
    %v1930 = vadd.f32 0.0, %v1929
    %1931 = vmatmul.f32.gmra.mxu0 %v1903
    %v1932 = vpop.f32.mrf.mxu0
    %v1933 = vadd.f32 0.0, %v1932
    %1934 = vmatmul.f32.gmra.mxu0 %v1904
    %v1935 = vpop.f32.mrf.mxu0
    %v1936 = vadd.f32 0.0, %v1935
    %1937 = vdwg.mxu0
    %v1942 = vrot.slane %v1927, 4
    %v1943 = vrot.slane %v1930, 4
    %v1944 = vrot.slane %v1933, 4
    %v1945 = vrot.slane %v1936, 4
    %v1950 = vadd.f32 %v1862, %v1942
    %v1951 = vadd.f32 %v1863, %v1930
    %v1952 = vadd.f32 %v1864, %v1943
    %v1953 = vadd.f32 %v1865, %v1933
    %v1954 = vadd.f32 %v1866, %v1944
    %v1955 = vadd.f32 %v1867, %v1936
    %v1956 = vadd.f32 %v1868, %v1945
    %v1957 = vadd.f32 %v1869, 0.0
    %v1958 = vld [vmem:[%s13] sm:$0x1]
    %v1960 = vperm.slane %v1958, 0
    %v1962 = vadd.f32 %v1950, %v1960
    %v1963 = vadd.f32 %v1951, %v1960
    %v1964 = vadd.f32 %v1952, %v1960
    %v1965 = vadd.f32 %v1953, %v1960
    %v1966 = vadd.f32 %v1954, %v1960
    %v1967 = vadd.f32 %v1955, %v1960
    %v1968 = vadd.f32 %v1956, %v1960
    %v1969 = vadd.f32 %v1957, %v1960
    %v1970 = vmax.f32 %v1962, 0.0
    %v1971 = vmax.f32 %v1963, 0.0
    %v1972 = vmax.f32 %v1964, 0.0
    %v1973 = vmax.f32 %v1965, 0.0
    %v1974 = vmax.f32 %v1966, 0.0
    %v1975 = vmax.f32 %v1967, 0.0
    %v1976 = vmax.f32 %v1968, 0.0
    %v1977 = vmax.f32 %v1969, 0.0
    %v1978 = vsel %vm82, %v1970, -inf
    %v1979 = vsel %vm82, %v1971, -inf
    %v1980 = vsel %vm82, %v1972, -inf
    %v1981 = vsel %vm82, %v1973, -inf
    %v1982 = vsel %vm82, %v1974, -inf
    %v1983 = vmax.f32 %v1978, %v1982
    %v1984 = vsel %vm82, %v1975, -inf
    %v1985 = vmax.f32 %v1979, %v1984
    %v1986 = vsel %vm82, %v1976, -inf
    %v1987 = vmax.f32 %v1980, %v1986
    %v1988 = vsel %vm82, %v1977, -inf
    %v1989 = vmax.f32 %v1981, %v1988
    %v1990 = vmax.f32 %v1983, %v1985
    %v1991 = vmax.f32 %v1987, %v1989
    %v1992 = vmax.f32 %v1990, %v1991
    %vm1993 = vcmask 519424
    %v1994 = vsel %vm1993, %v1970, -inf
    %v1995 = vsel %vm1993, %v1971, -inf
    %v1996 = vsel %vm1993, %v1972, -inf
    %v1997 = vsel %vm1993, %v1973, -inf
    %v1998 = vsel %vm1993, %v1974, -inf
    %v1999 = vmax.f32 %v1994, %v1998
    %v2000 = vsel %vm1993, %v1975, -inf
    %v2001 = vmax.f32 %v1995, %v2000
    %v2002 = vsel %vm1993, %v1976, -inf
    %v2003 = vmax.f32 %v1996, %v2002
    %v2004 = vsel %vm1993, %v1977, -inf
    %v2005 = vmax.f32 %v1997, %v2004
    %v2006 = vmax.f32 %v1999, %v2001
    %v2007 = vmax.f32 %v2003, %v2005
    %v2008 = vmax.f32 %v2006, %v2007
    %2010 = vrot.lane.b32.xlu0 %v1689, 32
    %v2011 = vpop.permute.xlu0 %2010
    %2014 = vrot.lane.b32.xlu0 %v1992, 64
    %v2015 = vpop.permute.xlu0 %2014
    %v2017 = vsel %vm334, %v118, %v2011
    %v2018 = vsel %vm257, %v2017, %v2015
    %2020 = vrot.lane.b32.xlu0 %v2008, 64
    %v2021 = vpop.permute.xlu0 %2020
    %v2023 = vsel %vm257, %v221, %v2011
    %vm2024 = vcmask 785408
    %v2025 = vsel %vm2024, %v2023, %v2021
    %v2026 = vld [vmem:[%s14] sm:$0xff]
    %v2027 = vld [vmem:[%s14 + $0x8] sm:$0xff]
    %v2028 = vld [vmem:[%s14 + $0x10] sm:$0xff]
    %v2029 = vld [vmem:[%s14 + $0x18] sm:$0xff]
    %v2030 = vld [vmem:[%s14 + $0x20] sm:$0xff]
    %v2031 = vld [vmem:[%s14 + $0x28] sm:$0xff]
    %v2032 = vld [vmem:[%s14 + $0x30] sm:$0xff]
    %v2033 = vld [vmem:[%s14 + $0x38] sm:$0xff]
    %v2034 = vld [vmem:[%s14 + $0x40] sm:$0xff]
    %v2035 = vld [vmem:[%s14 + $0x48] sm:$0xff]
    %v2036 = vld [vmem:[%s14 + $0x50] sm:$0xff]
    %v2037 = vld [vmem:[%s14 + $0x58] sm:$0xff]
    %v2038 = vld [vmem:[%s15] sm:$0x1]
    %v2040 = vperm.slane %v2038, 0
    %v2043 = vsel %vm2024, %v2018, 0
    %2045 = vmatpush.msra.mxu0 0.0
    %2046 = vmatpush.msra.mxu0 0.0
    %2047 = vmatpush.msra.mxu0 0.0
    %2048 = vmatpush.msra.mxu0 0.0
    %2049 = vmatpush.msra.mxu0 %v2037
    %2050 = vmatpush.msra.mxu0 %v2036
    %2051 = vmatpush.msra.mxu0 %v2035
    %2052 = vmatpush.msra.mxu0 %v2034
    %2053 = vmatpush.msra.mxu0 %v2033
    %2054 = vmatpush.msra.mxu0 %v2032
    %2055 = vmatpush.msra.mxu0 %v2031
    %2056 = vmatpush.msra.mxu0 %v2030
    %2057 = vmatpush.msra.mxu0 %v2029
    %2058 = vmatpush.msra.mxu0 %v2028
    %2059 = vmatpush.msra.mxu0 %v2027
    %2060 = vmatpush.msra.mxu0 %v2026
    %2061 = vmatmul.f32.gmra.mxu0 %v2043
    %v2062 = vpop.f32.mrf.mxu0
    %v2063 = vadd.f32 %v2040, %v2062
    %2064 = vdwg.mxu0
    %v2065 = vld [vmem:[%s16] sm:$0xff]
    %v2066 = vld [vmem:[%s16 + $0x8] sm:$0xff]
    %v2067 = vld [vmem:[%s16 + $0x10] sm:$0xff]
    %v2068 = vld [vmem:[%s16 + $0x18] sm:$0xff]
    %v2069 = vld [vmem:[%s16 + $0x20] sm:$0xff]
    %v2070 = vld [vmem:[%s16 + $0x28] sm:$0xff]
    %v2071 = vld [vmem:[%s16 + $0x30] sm:$0xff]
    %v2072 = vld [vmem:[%s16 + $0x38] sm:$0xff]
    %v2073 = vld [vmem:[%s16 + $0x40] sm:$0xff]
    %v2074 = vld [vmem:[%s16 + $0x48] sm:$0xff]
    %v2075 = vld [vmem:[%s16 + $0x50] sm:$0xff]
    %v2076 = vld [vmem:[%s16 + $0x58] sm:$0xff]
    %v2077 = vld [vmem:[%s16 + $0x60] sm:$0xff]
    %v2078 = vld [vmem:[%s16 + $0x68] sm:$0xff]
    %v2079 = vld [vmem:[%s16 + $0x70] sm:$0xff]
    %v2080 = vld [vmem:[%s16 + $0x78] sm:$0xff]
    %v2081 = vld [vmem:[%s17] sm:$0x1]
    %v2083 = vperm.slane %v2081, 0
    %2085 = vmatpush.msra.mxu0 %v2080
    %2086 = vmatpush.msra.mxu0 %v2079
    %2087 = vmatpush.msra.mxu0 %v2078
    %2088 = vmatpush.msra.mxu0 %v2077
    %2089 = vmatpush.msra.mxu0 %v2076
    %2090 = vmatpush.msra.mxu0 %v2075
    %2091 = vmatpush.msra.mxu0 %v2074
    %2092 = vmatpush.msra.mxu0 %v2073
    %2093 = vmatpush.msra.mxu0 %v2072
    %2094 = vmatpush.msra.mxu0 %v2071
    %2095 = vmatpush.msra.mxu0 %v2070
    %2096 = vmatpush.msra.mxu0 %v2069
    %2097 = vmatpush.msra.mxu0 %v2068
    %2098 = vmatpush.msra.mxu0 %v2067
    %2099 = vmatpush.msra.mxu0 %v2066
    %2100 = vmatpush.msra.mxu0 %v2065
    %2101 = vmatmul.f32.gmra.mxu0 %v2025
    %v2102 = vpop.f32.mrf.mxu0
    %v2103 = vadd.f32 %v2083, %v2102
    %2104 = vdwg.mxu0
    %v2105 = vmul.f32 %v2063, %v2063
    %v2106 = vsel %vm82, %v2105, 0.0
    %2107 = vadd.xlane.f32.xlu0 %v2106
    %v2108 = vpop.xlane.xlu0 %2107
    %v2109 = vadd.f32 %v2108, 1e-12
    %v2110 = vrsqrt.pop %v2109
    %v2111 = vmul.f32 %v2110, %v2109
    %v2112 = vmul.f32 %v2111, %v2110
    %v2113 = vmul.f32 0.5, %v2112
    %v2114 = vsub.f32 1.5, %v2113
    %v2115 = vmul.f32 %v2110, %v2114
    %vm2116 = vweird.f32 %v2109
    %vm2117 = vweird.f32 %v2110
    %vm2118 = vmor %vm2116, %vm2117
    %v2119 = vsel %vm2118, %v2110, %v2115
    %v2120 = vmul.f32 %v2063, %v2119
    %v2121 = vmul.f32 %v2103, %v2103
    %v2122 = vsel %vm82, %v2121, 0.0
    %2123 = vadd.xlane.f32.xlu0 %v2122
    %v2124 = vpop.xlane.xlu0 %2123
    %v2125 = vadd.f32 %v2124, 1e-12
    %v2126 = vrsqrt.pop %v2125
    %v2127 = vmul.f32 %v2126, %v2125
    %v2128 = vmul.f32 %v2127, %v2126
    %v2129 = vmul.f32 0.5, %v2128
    %v2130 = vsub.f32 1.5, %v2129
    %v2131 = vmul.f32 %v2126, %v2130
    %vm2132 = vweird.f32 %v2125
    %vm2133 = vweird.f32 %v2126
    %vm2134 = vmor %vm2132, %vm2133
    %v2135 = vsel %vm2134, %v2126, %v2131
    %v2136 = vmul.f32 %v2103, %v2135
    %v2138 = vsel %vm334, %v2120, 0
    %v2141 = vsel %vm334, %v2136, 0
    %2143 = vmatpush.xpose.msra.mxu0 0.0
    %2144 = vmatpush.xpose.msra.mxu0 0.0
    %2145 = vmatpush.xpose.msra.mxu0 0.0
    %2146 = vmatpush.xpose.msra.mxu0 0.0
    %2147 = vmatpush.xpose.msra.mxu0 0.0
    %2148 = vmatpush.xpose.msra.mxu0 0.0
    %2149 = vmatpush.xpose.msra.mxu0 0.0
    %2150 = vmatpush.xpose.msra.mxu0 0.0
    %2151 = vmatpush.xpose.msra.mxu0 0.0
    %2152 = vmatpush.xpose.msra.mxu0 0.0
    %2153 = vmatpush.xpose.msra.mxu0 0.0
    %2154 = vmatpush.xpose.msra.mxu0 0.0
    %2155 = vmatpush.xpose.msra.mxu0 0.0
    %2156 = vmatpush.xpose.msra.mxu0 0.0
    %2157 = vmatpush.xpose.msra.mxu0 0.0
    %2158 = vmatpush.xpose.msra.mxu0 %v2141
    %2159 = vmatmul.f32.gmra.mxu0 %v2138
    %v2160 = vpop.f32.mrf.mxu0
    %v2161 = vadd.f32 0.0, %v2160
    %2162 = vdwg.mxu0
    %v2163 = vld [vmem:[%s18] sm:$0xff]
    %v2164 = vld [vmem:[%s18 + $0x8] sm:$0xff]
    %v2165 = vld [vmem:[%s18 + $0x10] sm:$0xff]
    %v2166 = vld [vmem:[%s18 + $0x18] sm:$0xff]
    %v2167 = vld [vmem:[%s18 + $0x20] sm:$0xff]
    %v2168 = vld [vmem:[%s18 + $0x28] sm:$0xff]
    %v2169 = vld [vmem:[%s18 + $0x30] sm:$0xff]
    %v2170 = vld [vmem:[%s18 + $0x38] sm:$0xff]
    %v2171 = vld [vmem:[%s18 + $0x40] sm:$0xff]
    %v2172 = vld [vmem:[%s18 + $0x48] sm:$0xff]
    %v2173 = vld [vmem:[%s18 + $0x50] sm:$0xff]
    %v2174 = vld [vmem:[%s18 + $0x58] sm:$0xff]
    %v2175 = vld [vmem:[%s19] sm:$0x1]
    %v2177 = vperm.slane %v2175, 0
    %2179 = vmatpush.msra.mxu0 0.0
    %2180 = vmatpush.msra.mxu0 0.0
    %2181 = vmatpush.msra.mxu0 0.0
    %2182 = vmatpush.msra.mxu0 0.0
    %2183 = vmatpush.msra.mxu0 %v2174
    %2184 = vmatpush.msra.mxu0 %v2173
    %2185 = vmatpush.msra.mxu0 %v2172
    %2186 = vmatpush.msra.mxu0 %v2171
    %2187 = vmatpush.msra.mxu0 %v2170
    %2188 = vmatpush.msra.mxu0 %v2169
    %2189 = vmatpush.msra.mxu0 %v2168
    %2190 = vmatpush.msra.mxu0 %v2167
    %2191 = vmatpush.msra.mxu0 %v2166
    %2192 = vmatpush.msra.mxu0 %v2165
    %2193 = vmatpush.msra.mxu0 %v2164
    %2194 = vmatpush.msra.mxu0 %v2163
    %2195 = vmatmul.f32.gmra.mxu0 %v2043
    %v2196 = vpop.f32.mrf.mxu0
    %v2197 = vadd.f32 %v2177, %v2196
    %2198 = vdwg.mxu0
    %v2199 = vxor.u32 %v2197, 2147483648
    %v2200 = vmul.f32 %v2199, 1.442695
    %v2201 = vpow.pop %v2200
    %v2202 = vadd.f32 %v2201, 1.0
    %v2203 = vrcp.pop %v2202
    %v2204 = vmul.f32 %v2202, %v2203
    %v2205 = vsub.f32 1.0, %v2204
    %v2206 = vmul.f32 %v2203, %v2205
    %v2207 = vadd.f32 %v2203, %v2206
    %vm2208 = vweird.f32 %v2202
    %vm2209 = vweird.f32 %v2203
    %vm2210 = vmor %vm2208, %vm2209
    %v2211 = vsel %vm2210, %v2203, %v2207
    %v2212 = vand.u32 2147483647, %v2202
    %vm2213 = vcmp.eq.f32.partialorder %v2212, 8.507059e+37
    %v2214 = vand.u32 %v2202, 2147483648
    %v2215 = vor.u32 1.1754944e-38, %v2214
    %v2216 = vsel %vm2213, %v2215, %v2211
    %v2217 = vmul.f32 1.0, %v2216
    %v2218 = vld [vmem:[%s20] sm:$0xff]
    %v2219 = vld [vmem:[%s20 + $0x8] sm:$0xff]
    %v2220 = vld [vmem:[%s20 + $0x10] sm:$0xff]
    %v2221 = vld [vmem:[%s20 + $0x18] sm:$0xff]
    %v2222 = vld [vmem:[%s20 + $0x20] sm:$0xff]
    %v2223 = vld [vmem:[%s20 + $0x28] sm:$0xff]
    %v2224 = vld [vmem:[%s20 + $0x30] sm:$0xff]
    %v2225 = vld [vmem:[%s20 + $0x38] sm:$0xff]
    %v2226 = vld [vmem:[%s20 + $0x40] sm:$0xff]
    %v2227 = vld [vmem:[%s20 + $0x48] sm:$0xff]
    %v2228 = vld [vmem:[%s20 + $0x50] sm:$0xff]
    %v2229 = vld [vmem:[%s20 + $0x58] sm:$0xff]
    %v2230 = vld [vmem:[%s20 + $0x60] sm:$0xff]
    %v2231 = vld [vmem:[%s20 + $0x68] sm:$0xff]
    %v2232 = vld [vmem:[%s20 + $0x70] sm:$0xff]
    %v2233 = vld [vmem:[%s20 + $0x78] sm:$0xff]
    %v2234 = vld [vmem:[%s21] sm:$0x1]
    %v2236 = vperm.slane %v2234, 0
    %2238 = vmatpush.msra.mxu0 %v2233
    %2239 = vmatpush.msra.mxu0 %v2232
    %2240 = vmatpush.msra.mxu0 %v2231
    %2241 = vmatpush.msra.mxu0 %v2230
    %2242 = vmatpush.msra.mxu0 %v2229
    %2243 = vmatpush.msra.mxu0 %v2228
    %2244 = vmatpush.msra.mxu0 %v2227
    %2245 = vmatpush.msra.mxu0 %v2226
    %2246 = vmatpush.msra.mxu0 %v2225
    %2247 = vmatpush.msra.mxu0 %v2224
    %2248 = vmatpush.msra.mxu0 %v2223
    %2249 = vmatpush.msra.mxu0 %v2222
    %2250 = vmatpush.msra.mxu0 %v2221
    %2251 = vmatpush.msra.mxu0 %v2220
    %2252 = vmatpush.msra.mxu0 %v2219
    %2253 = vmatpush.msra.mxu0 %v2218
    %2254 = vmatmul.f32.gmra.mxu0 %v2025
    %v2255 = vpop.f32.mrf.mxu0
    %v2256 = vadd.f32 %v2236, %v2255
    %2257 = vdwg.mxu0
    %v2258 = vxor.u32 %v2256, 2147483648
    %v2259 = vmul.f32 %v2258, 1.442695
    %v2260 = vpow.pop %v2259
    %v2261 = vadd.f32 %v2260, 1.0
    %v2262 = vrcp.pop %v2261
    %v2263 = vmul.f32 %v2261, %v2262
    %v2264 = vsub.f32 1.0, %v2263
    %v2265 = vmul.f32 %v2262, %v2264
    %v2266 = vadd.f32 %v2262, %v2265
    %vm2267 = vweird.f32 %v2261
    %vm2268 = vweird.f32 %v2262
    %vm2269 = vmor %vm2267, %vm2268
    %v2270 = vsel %vm2269, %v2262, %v2266
    %v2271 = vand.u32 2147483647, %v2261
    %vm2272 = vcmp.eq.f32.partialorder %v2271, 8.507059e+37
    %v2273 = vand.u32 %v2261, 2147483648
    %v2274 = vor.u32 1.1754944e-38, %v2273
    %v2275 = vsel %vm2272, %v2274, %v2270
    %v2276 = vmul.f32 1.0, %v2275
    %v2278 = vrot.slane %v2217, 1
    %v2279 = vrot.slane %v2217, 2
    %v2280 = vrot.slane %v2217, 3
    %v2281 = vperm.slane %v2217, 0
    %v2282 = vperm.slane %v2278, 0
    %v2283 = vperm.slane %v2279, 0
    %v2284 = vperm.slane %v2280, 0
    %v2289 = vmin.f32 %v2281, %v2276
    %v2290 = vmin.f32 %v2282, %v2276
    %v2291 = vmin.f32 %v2283, %v2276
    %v2292 = vmin.f32 %v2284, %v2276
    %vm2293 = vcmask 388096
    %v2294 = vsel %vm2293, %v2289, 0.0
    %2295 = vadd.xlane.f32.xlu0 %v2294
    %v2296 = vpop.xlane.xlu0 %2295
    %v2297 = vsel %vm2293, %v2290, 0.0
    %2298 = vadd.xlane.f32.xlu0 %v2297
    %v2299 = vpop.xlane.xlu0 %2298
    %v2300 = vsel %vm2293, %v2291, 0.0
    %2301 = vadd.xlane.f32.xlu0 %v2300
    %v2302 = vpop.xlane.xlu0 %2301
    %v2303 = vsel %vm2293, %v2292, 0.0
    %2304 = vadd.xlane.f32.xlu0 %v2303
    %v2305 = vpop.xlane.xlu0 %2304
    %vm2306 = vcmask 392192
    %v2308 = vsel %vm2306, 1.0, 0
    %v2311 = vsel %vm2306, %v2276, 0
    %2313 = vmatpush.xpose.msra.mxu0 0.0
    %2314 = vmatpush.xpose.msra.mxu0 0.0
    %2315 = vmatpush.xpose.msra.mxu0 0.0
    %2316 = vmatpush.xpose.msra.mxu0 0.0
    %2317 = vmatpush.xpose.msra.mxu0 0.0
    %2318 = vmatpush.xpose.msra.mxu0 0.0
    %2319 = vmatpush.xpose.msra.mxu0 0.0
    %2320 = vmatpush.xpose.msra.mxu0 0.0
    %2321 = vmatpush.xpose.msra.mxu0 0.0
    %2322 = vmatpush.xpose.msra.mxu0 0.0
    %2323 = vmatpush.xpose.msra.mxu0 0.0
    %2324 = vmatpush.xpose.msra.mxu0 0.0
    %2325 = vmatpush.xpose.msra.mxu0 0.0
    %2326 = vmatpush.xpose.msra.mxu0 0.0
    %2327 = vmatpush.xpose.msra.mxu0 0.0
    %2328 = vmatpush.xpose.msra.mxu0 %v2311
    %2329 = vmatmul.f32.gmra.mxu0 %v2308
    %v2330 = vpop.f32.mrf.mxu0
    %v2331 = vadd.f32 0.0, %v2330
    %2332 = vdwg.mxu0
    %v2333 = vsel %vm2293, %v2217, 0.0
    %2334 = vadd.xlane.f32.xlu0 %v2333
    %v2335 = vpop.xlane.xlu0 %2334
    %v2336 = vperm.slane %v2331, 0
    %v2337 = vadd.f32 %v2335, %v2336
    %v2342 = vperm.slane %v2296, %v121
    %v2343 = vperm.slane %v2299, %v121
    %v2344 = vperm.slane %v2302, %v121
    %v2345 = vperm.slane %v2305, %v121
    %vm2346 = vcmask 1041409
    %v2347 = vsel %vm2346, %v2343, %v2342
    %vm2348 = vcmask 1042434
    %v2349 = vsel %vm2348, %v2344, %v2347
    %vm2350 = vcmask 1043459
    %v2351 = vsel %vm2350, %v2345, %v2349
    %v2353 = vsub.f32 %v2337, %v2351
    %v2355 = vperm.slane %v2353, 0
    %v2356 = vlaneseq
    %v2357 = vshrl.u32 %v2356, 7
    %2359 = vset.pattern.permute.xlu0 %v2357
    %2360 = vperm.xlu0 %2359, %v2355
    %v2361 = vpop.permute.xlu0 %2360
    %v2362 = vperm.slane %v2353, 1
    %v2363 = vlaneseq
    %v2364 = vshrl.u32 %v2363, 7
    %2366 = vset.pattern.permute.xlu0 %v2364
    %2367 = vperm.xlu0 %2366, %v2362
    %v2368 = vpop.permute.xlu0 %2367
    %v2369 = vperm.slane %v2353, 2
    %v2370 = vlaneseq
    %v2371 = vshrl.u32 %v2370, 7
    %2373 = vset.pattern.permute.xlu0 %v2371
    %2374 = vperm.xlu0 %2373, %v2369
    %v2375 = vpop.permute.xlu0 %2374
    %v2376 = vperm.slane %v2353, 3
    %v2377 = vlaneseq
    %v2378 = vshrl.u32 %v2377, 7
    %2380 = vset.pattern.permute.xlu0 %v2378
    %2381 = vperm.xlu0 %2380, %v2376
    %v2382 = vpop.permute.xlu0 %2381
    %v2387 = vrcp.pop %v2361
    %v2388 = vmul.f32 %v2361, %v2387
    %v2389 = vsub.f32 1.0, %v2388
    %v2390 = vmul.f32 %v2387, %v2389
    %v2391 = vadd.f32 %v2387, %v2390
    %vm2392 = vweird.f32 %v2361
    %vm2393 = vweird.f32 %v2387
    %vm2394 = vmor %vm2392, %vm2393
    %v2395 = vsel %vm2394, %v2387, %v2391
    %v2396 = vand.u32 2147483647, %v2361
    %vm2397 = vcmp.eq.f32.partialorder %v2396, 8.507059e+37
    %v2398 = vand.u32 %v2361, 2147483648
    %v2399 = vor.u32 1.1754944e-38, %v2398
    %v2400 = vsel %vm2397, %v2399, %v2395
    %v2401 = vmul.f32 %v2296, %v2400
    %v2402 = vrcp.pop %v2368
    %v2403 = vmul.f32 %v2368, %v2402
    %v2404 = vsub.f32 1.0, %v2403
    %v2405 = vmul.f32 %v2402, %v2404
    %v2406 = vadd.f32 %v2402, %v2405
    %vm2407 = vweird.f32 %v2368
    %vm2408 = vweird.f32 %v2402
    %vm2409 = vmor %vm2407, %vm2408
    %v2410 = vsel %vm2409, %v2402, %v2406
    %v2411 = vand.u32 2147483647, %v2368
    %vm2412 = vcmp.eq.f32.partialorder %v2411, 8.507059e+37
    %v2413 = vand.u32 %v2368, 2147483648
    %v2414 = vor.u32 1.1754944e-38, %v2413
    %v2415 = vsel %vm2412, %v2414, %v2410
    %v2416 = vmul.f32 %v2299, %v2415
    %v2417 = vrcp.pop %v2375
    %v2418 = vmul.f32 %v2375, %v2417
    %v2419 = vsub.f32 1.0, %v2418
    %v2420 = vmul.f32 %v2417, %v2419
    %v2421 = vadd.f32 %v2417, %v2420
    %vm2422 = vweird.f32 %v2375
    %vm2423 = vweird.f32 %v2417
    %vm2424 = vmor %vm2422, %vm2423
    %v2425 = vsel %vm2424, %v2417, %v2421
    %v2426 = vand.u32 2147483647, %v2375
    %vm2427 = vcmp.eq.f32.partialorder %v2426, 8.507059e+37
    %v2428 = vand.u32 %v2375, 2147483648
    %v2429 = vor.u32 1.1754944e-38, %v2428
    %v2430 = vsel %vm2427, %v2429, %v2425
    %v2431 = vmul.f32 %v2302, %v2430
    %v2432 = vrcp.pop %v2382
    %v2433 = vmul.f32 %v2382, %v2432
    %v2434 = vsub.f32 1.0, %v2433
    %v2435 = vmul.f32 %v2432, %v2434
    %v2436 = vadd.f32 %v2432, %v2435
    %vm2437 = vweird.f32 %v2382
    %vm2438 = vweird.f32 %v2432
    %vm2439 = vmor %vm2437, %vm2438
    %v2440 = vsel %vm2439, %v2432, %v2436
    %v2441 = vand.u32 2147483647, %v2382
    %vm2442 = vcmp.eq.f32.partialorder %v2441, 8.507059e+37
    %v2443 = vand.u32 %v2382, 2147483648
    %v2444 = vor.u32 1.1754944e-38, %v2443
    %v2445 = vsel %vm2442, %v2444, %v2440
    %v2446 = vmul.f32 %v2305, %v2445
    %vm2447 = vcmask 27648
    %v2448 = vsel %vm2447, %v2161, inf
    %2449 = vmin.xlane.f32.xlu0 %v2448
    %v2450 = vpop.xlane.xlu0 %2449
    %v2451 = vrot.slane %v2450, 4
    %v2452 = vmin.f32 %v2450, %v2451
    %v2453 = vrot.slane %v2452, 2
    %v2454 = vmin.f32 %v2452, %v2453
    %v2455 = vrot.slane %v2454, 1
    %v2456 = vmin.f32 %v2454, %v2455
    %s2457 = vtos %v2456
    %v2458 = vstv %s2457
    %v2459 = vsel %vm2447, %v2161, -inf
    %2460 = vmax.xlane.f32.xlu0 %v2459
    %v2461 = vpop.xlane.xlu0 %2460
    %v2462 = vrot.slane %v2461, 4
    %v2463 = vmax.f32 %v2461, %v2462
    %v2464 = vrot.slane %v2463, 2
    %v2465 = vmax.f32 %v2463, %v2464
    %v2466 = vrot.slane %v2465, 1
    %v2467 = vmax.f32 %v2465, %v2466
    %s2468 = vtos %v2467
    %v2469 = vstv %s2468
    %v2470 = vsub.f32 %v2161, %v2458
    %v2471 = vsub.f32 %v2469, %v2458
    %v2472 = vmax.f32 %v2471, 1e-12
    %v2473 = vrcp.pop %v2472
    %v2474 = vmul.f32 %v2472, %v2473
    %v2475 = vsub.f32 1.0, %v2474
    %v2476 = vmul.f32 %v2473, %v2475
    %v2477 = vadd.f32 %v2473, %v2476
    %vm2478 = vweird.f32 %v2472
    %vm2479 = vweird.f32 %v2473
    %vm2480 = vmor %vm2478, %vm2479
    %v2481 = vsel %vm2480, %v2473, %v2477
    %v2482 = vand.u32 2147483647, %v2472
    %vm2483 = vcmp.eq.f32.partialorder %v2482, 8.507059e+37
    %v2484 = vand.u32 %v2472, 2147483648
    %v2485 = vor.u32 1.1754944e-38, %v2484
    %v2486 = vsel %vm2483, %v2485, %v2481
    %v2487 = vmul.f32 %v2470, %v2486
    %v2488 = vmul.f32 %v2487, 0.6
    %vm2489 = vcmask 3072
    %v2490 = vsel %vm2489, %v2401, inf
    %v2491 = vsel %vm2489, %v2416, inf
    %v2492 = vsel %vm2489, %v2431, inf
    %v2493 = vsel %vm2489, %v2446, inf
    %v2494 = vmin.f32 %v2490, %v2491
    %v2495 = vmin.f32 %v2492, %v2493
    %v2496 = vmin.f32 %v2494, %v2495
    %v2497 = vrot.slane %v2496, 4
    %v2498 = vmin.f32 %v2496, %v2497
    %v2499 = vrot.slane %v2498, 2
    %v2500 = vmin.f32 %v2498, %v2499
    %v2501 = vrot.slane %v2500, 1
    %v2502 = vmin.f32 %v2500, %v2501
    %s2503 = vtos %v2502
    %v2504 = vstv %s2503
    %v2505 = vsel %vm2489, %v2401, -inf
    %v2506 = vsel %vm2489, %v2416, -inf
    %v2507 = vsel %vm2489, %v2431, -inf
    %v2508 = vsel %vm2489, %v2446, -inf
    %v2509 = vmax.f32 %v2505, %v2506
    %v2510 = vmax.f32 %v2507, %v2508
    %v2511 = vmax.f32 %v2509, %v2510
    %v2512 = vrot.slane %v2511, 4
    %v2513 = vmax.f32 %v2511, %v2512
    %v2514 = vrot.slane %v2513, 2
    %v2515 = vmax.f32 %v2513, %v2514
    %v2516 = vrot.slane %v2515, 1
    %v2517 = vmax.f32 %v2515, %v2516
    %s2518 = vtos %v2517
    %v2519 = vstv %s2518
    %v2520 = vsub.f32 %v2401, %v2504
    %v2521 = vsub.f32 %v2416, %v2504
    %v2522 = vsub.f32 %v2431, %v2504
    %v2523 = vsub.f32 %v2446, %v2504
    %v2524 = vsub.f32 %v2519, %v2504
    %v2525 = vmax.f32 %v2524, 1e-12
    %v2526 = vrcp.pop %v2525
    %v2527 = vmul.f32 %v2525, %v2526
    %v2528 = vsub.f32 1.0, %v2527
    %v2529 = vmul.f32 %v2526, %v2528
    %v2530 = vadd.f32 %v2526, %v2529
    %vm2531 = vweird.f32 %v2525
    %vm2532 = vweird.f32 %v2526
    %vm2533 = vmor %vm2531, %vm2532
    %v2534 = vsel %vm2533, %v2526, %v2530
    %v2535 = vand.u32 2147483647, %v2525
    %vm2536 = vcmp.eq.f32.partialorder %v2535, 8.507059e+37
    %v2537 = vand.u32 %v2525, 2147483648
    %v2538 = vor.u32 1.1754944e-38, %v2537
    %v2539 = vsel %vm2536, %v2538, %v2534
    %v2540 = vmul.f32 %v2520, %v2539
    %v2541 = vmul.f32 %v2521, %v2539
    %v2542 = vmul.f32 %v2522, %v2539
    %v2543 = vmul.f32 %v2523, %v2539
    %v2544 = vmul.f32 %v2540, 0.4
    %v2545 = vmul.f32 %v2541, 0.4
    %v2546 = vmul.f32 %v2542, 0.4
    %v2547 = vmul.f32 %v2543, 0.4
    %2552 = vset.pattern.permute.xlu0 0
    %2553 = vperm.xlu0 %2552, %v2544
    %v2554 = vpop.permute.xlu0 %2553
    %2555 = vset.pattern.permute.xlu0 0
    %2556 = vperm.xlu0 %2555, %v2545
    %v2557 = vpop.permute.xlu0 %2556
    %2558 = vset.pattern.permute.xlu0 0
    %2559 = vperm.xlu0 %2558, %v2546
    %v2560 = vpop.permute.xlu0 %2559
    %2561 = vset.pattern.permute.xlu0 0
    %2562 = vperm.xlu0 %2561, %v2547
    %v2563 = vpop.permute.xlu0 %2562
    %v2564 = vperm.slane %v2554, %v121
    %v2565 = vperm.slane %v2557, %v121
    %v2566 = vperm.slane %v2560, %v121
    %v2567 = vperm.slane %v2563, %v121
    %v2568 = vsel %vm2346, %v2565, %v2564
    %v2569 = vsel %vm2348, %v2566, %v2568
    %v2570 = vsel %vm2350, %v2567, %v2569
    %v2572 = vadd.f32 %v2488, %v2570
    %2573 = vst.msk [vmem:[#allocation3] sm:$0xf] %vm2447, %v2572
    // Predicated region
    $region90: #{tpu_custom_call.1} parent=1 // pred_check
      _
    $region91: #{tpu_custom_call.1} parent=1 // pred_check_branch
      %2575 = sbr.rel (0) target = $region93
    $region92: #{tpu_custom_call.1} parent=1 // pred_region
      %2577 = vsyncadd [#allocation4], 0
      %s2579 = sshll.u32 [#allocation3], 4
      %s2580 = int_to_ptr.vmem [resolvable:$true] %s2579
      %s2581 = sshll.u32 %s22, 4
      %s2582 = int_to_ptr.hbm [resolvable:$true] %s2581
      %2584 = dma.vmem_to_hbm [thread:$0]  %s2580, 64, %s2582, [#allocation4]
    $region93: #{tpu_custom_call.1} parent=1 // pred_fallthru
      _
    // Predicated region
    $region94: #{tpu_custom_call.1} parent=1 // pred_check
      _
    $region95: #{tpu_custom_call.1} parent=1 // pred_check_branch
      %2586 = sbr.rel (0) target = $region97
    $region96: #{tpu_custom_call.1} parent=1 // pred_region
      %2588 = dma.done [#allocation4], 64
    $region97: #{tpu_custom_call.1} parent=1 // pred_fallthru
      _
    %2589 = vsyncpa [#allocation4], 1

</llo_original>
